<compile_context>
chip_gen: v5e
topology: v5e:2x2
jax: 0.10.0
libtpu: 0.0.40
codegen_flags: <defaults>
</compile_context>

<pallas_src>
import functools

import jax
import jax.numpy as jnp
from jax.experimental import pallas as pl
from jax.experimental.pallas import tpu as pltpu

EXPANSION = 4
BN_EPS = 1e-5
ROW_TILE_TARGET = 256                 # rows per block for pointwise stages
MIN_VMEM_LIMIT = 32 * 1024 * 1024
MAX_VMEM_LIMIT = 100 * 1024 * 1024


def _row_tile(m, target=ROW_TILE_TARGET):
    """Largest divisor of m that is <= target and a multiple of 8 (so the
    (8,128) block constraint holds); falls back to m (single block)."""
    best = None
    t = 8
    while t <= min(m, target):
        if m % t == 0:
            best = t
        t += 8
    return best if best is not None else m


def _vmem_limit(block_bytes):
    need = 2 * int(block_bytes) + (8 << 20)   # double-buffering + headroom
    return int(min(max(need, MIN_VMEM_LIMIT), MAX_VMEM_LIMIT))


def _cparams(block_bytes):
    return pltpu.CompilerParams(
        dimension_semantics=("parallel",),
        vmem_limit_bytes=_vmem_limit(block_bytes))


def _rowsum_stats(y):
    """Per-channel (sum, sum_of_squares) of an (M, C) f32 matrix -> (2, C)."""
    s = jnp.sum(y, axis=0, keepdims=True)
    sq = jnp.sum(y * y, axis=0, keepdims=True)
    return jnp.concatenate([s, sq], axis=0)


# ---------------------------------------------------------------------------
# Kernels
# ---------------------------------------------------------------------------
def _conv1x1_stats_kernel(x_ref, w_ref, y_ref, st_ref):
    """(TR, Cin) bf16 @ (Cin, Cout) bf16 -> bf16 y + f32 (sum, sumsq)."""
    y = jnp.dot(x_ref[...], w_ref[...], preferred_element_type=jnp.float32)
    y_ref[...] = y.astype(y_ref.dtype)
    st_ref[...] = _rowsum_stats(y)[None]


def _conv1x1_proj_stats_kernel(x_ref, w1_ref, wsc_ref,
                               y1_ref, st1_ref, sc_ref, stsc_ref):
    """conv1 and the stride-1 projection shortcut share the same LHS tile."""
    x = x_ref[...]
    y1 = jnp.dot(x, w1_ref[...], preferred_element_type=jnp.float32)
    y1_ref[...] = y1.astype(y1_ref.dtype)
    st1_ref[...] = _rowsum_stats(y1)[None]
    sc = jnp.dot(x, wsc_ref[...], preferred_element_type=jnp.float32)
    sc_ref[...] = sc.astype(sc_ref.dtype)
    stsc_ref[...] = _rowsum_stats(sc)[None]


def _conv3x3_stats_kernel(stride, y1_ref, aff1_ref, w2_ref, y2_ref, st2_ref,
                          pad_ref):
    """bn1 + relu + 3x3 conv (stride, padding=1) for one image."""
    _, H, W, P = y1_ref.shape
    _, Ho, Wo, _ = y2_ref.shape

    # bn1 + relu (f32 compute from the bf16-stored conv1 output).
    aff = aff1_ref[...]
    y1 = y1_ref[...].reshape(H * W, P).astype(jnp.float32)
    a = jnp.maximum(y1 * aff[0:1, :] + aff[1:2, :], 0.0)

    # Padded scratch for the 3x3 conv: zero only the 1-pixel border.  Border
    # is re-zeroed every step because the batch grid axis is "parallel"
    # (steps may run on either TensorCore, so a program_id()==0 guard would
    # leave the other core's scratch uninitialized).
    pad_ref[0:1, :, :] = jnp.zeros((1, W + 2, P), jnp.float32)
    pad_ref[H + 1:H + 2, :, :] = jnp.zeros((1, W + 2, P), jnp.float32)
    pad_ref[1:H + 1, 0:1, :] = jnp.zeros((H, 1, P), jnp.float32)
    pad_ref[1:H + 1, W + 1:W + 2, :] = jnp.zeros((H, 1, P), jnp.float32)
    pad_ref[1:H + 1, 1:W + 1, :] = a.reshape(H, W, P)

    # 3x3 conv as 9 accumulated K=P MXU dots (no lane-axis concat: P is
    # generally not a multiple of 128 and the concat would force XLU
    # relayouts plus a (Ho*Wo, 9P) VMEM temporary).
    acc = jnp.zeros((Ho * Wo, P), jnp.float32)
    if stride == 1:
        for k in range(9):
            dy, dx = divmod(k, 3)
            patch = pad_ref[dy:dy + Ho, dx:dx + Wo, :]
            acc = acc + jnp.dot(
                patch.reshape(Ho * Wo, P).astype(jnp.bfloat16),
                w2_ref[k], preferred_element_type=jnp.float32)
    else:
        xp = pad_ref[...]
        for k in range(9):
            dy, dx = divmod(k, 3)
            he = dy + (Ho - 1) * stride + 1
            we = dx + (Wo - 1) * stride + 1
            patch = xp[dy:he:stride, dx:we:stride, :]
            acc = acc + jnp.dot(
                patch.reshape(Ho * Wo, P).astype(jnp.bfloat16),
                w2_ref[k], preferred_element_type=jnp.float32)

    y2_ref[...] = acc.astype(y2_ref.dtype).reshape(1, Ho, Wo, P)
    st2_ref[...] = _rowsum_stats(acc)[None]


def _bn_relu_conv1x1_stats_kernel(y2_ref, aff2_ref, w3_ref, y3_ref, st3_ref):
    """bn2 + relu + conv3 (1x1) on a (TR, P) row tile."""
    aff = aff2_ref[...]
    a = jnp.maximum(
        y2_ref[...].astype(jnp.float32) * aff[0:1, :] + aff[1:2, :], 0.0)
    y3 = jnp.dot(a.astype(jnp.bfloat16), w3_ref[...],
                 preferred_element_type=jnp.float32)
    y3_ref[...] = y3.astype(y3_ref.dtype)
    st3_ref[...] = _rowsum_stats(y3)[None]


def _bn_add_relu_kernel(has_proj, y3_ref, aff3_ref, sc_ref, *rest):
    """bn3 + shortcut (projection BN or identity) + relu."""
    if has_proj:
        affsc_ref, o_ref = rest
    else:
        (o_ref,) = rest
    aff3 = aff3_ref[...]
    y3 = y3_ref[...].astype(jnp.float32) * aff3[0:1, :] + aff3[1:2, :]
    sc = sc_ref[...].astype(jnp.float32)
    if has_proj:
        affsc = affsc_ref[...]
        sc = sc * affsc[0:1, :] + affsc[1:2, :]
    o_ref[...] = jnp.maximum(y3 + sc, 0.0)


# ---------------------------------------------------------------------------
# BN finalize: per-block (sum, sumsq) partials -> fused (scale, shift)
# ---------------------------------------------------------------------------
def _bn_affine(partial_stats, count, gamma, beta):
    s = jnp.sum(partial_stats[:, 0, :], axis=0)
    sq = jnp.sum(partial_stats[:, 1, :], axis=0)
    mean = s / count
    var = jnp.maximum(sq / count - mean * mean, 0.0)   # one-pass, clamped
    scale = gamma.reshape(-1) * jax.lax.rsqrt(var + BN_EPS)
    shift = beta.reshape(-1) - mean * scale
    return jnp.stack([scale, shift], axis=0).astype(jnp.float32)   # (2, C)


# ---------------------------------------------------------------------------
# Wrappers
# ---------------------------------------------------------------------------
def bottleneck_forward_nhwc(x_nhwc, params, *, stride=1):
    """NHWC in, NHWC out. Core implementation."""
    N, H, W, Cin = x_nhwc.shape
    P = params["w1"].shape[1]
    C4 = EXPANSION * P
    Ho = (H + 2 - 3) // stride + 1
    Wo = (W + 2 - 3) // stride + 1
    has_proj = (stride != 1) or (Cin != C4)
    M1, M2 = N * H * W, N * Ho * Wo

    # bf16 activations / weights for the MXU; f32 accumulation in-kernel.
    x_flat = x_nhwc.reshape(M1, Cin).astype(jnp.bfloat16)
    w1 = params["w1"].astype(jnp.bfloat16)                     # (Cin, P)
    w2 = params["w2"].reshape(9, P, P).astype(jnp.bfloat16)    # (ky*3+kx, ci, co)
    w3 = params["w3"].astype(jnp.bfloat16)                     # (P, 4P)

    tr1 = _row_tile(M1)
    tr2 = _row_tile(M2)
    g1, g2 = M1 // tr1, M2 // tr2

    def row_spec(tr, c):
        return pl.BlockSpec((tr, c), lambda i: (i, 0))

    def stat_spec(c):
        return pl.BlockSpec((1, 2, c), lambda i: (i, 0, 0))

    def full_spec(shape):
        return pl.BlockSpec(shape, lambda i: tuple(0 for _ in shape))

    def img_spec(h, w, c):
        return pl.BlockSpec((1, h, w, c), lambda n: (n, 0, 0, 0))

    # ---- stage 1: conv1 (1x1) [+ fused stride-1 projection shortcut] ------
    if has_proj and stride == 1:
        wsc = params["wsc"].astype(jnp.bfloat16)
        y1_flat, st1, sc_flat, st_sc = pl.pallas_call(
            _conv1x1_proj_stats_kernel,
            grid=(g1,),
            in_specs=[row_spec(tr1, Cin), full_spec((Cin, P)),
                      full_spec((Cin, C4))],
            out_specs=(row_spec(tr1, P), stat_spec(P),
                       row_spec(tr1, C4), stat_spec(C4)),
            out_shape=(jax.ShapeDtypeStruct((M1, P), jnp.bfloat16),
                       jax.ShapeDtypeStruct((g1, 2, P), jnp.float32),
                       jax.ShapeDtypeStruct((M1, C4), jnp.bfloat16),
                       jax.ShapeDtypeStruct((g1, 2, C4), jnp.float32)),
            compiler_params=_cparams(tr1 * (Cin + P + C4) * 2),
            cost_estimate=pl.CostEstimate(
                flops=2 * M1 * Cin * (P + C4), transcendentals=0,
                bytes_accessed=2 * M1 * (Cin + P + C4)),
        )(x_flat, w1, wsc)
    else:
        y1_flat, st1 = pl.pallas_call(
            _conv1x1_stats_kernel,
            grid=(g1,),
            in_specs=[row_spec(tr1, Cin), full_spec((Cin, P))],
            out_specs=(row_spec(tr1, P), stat_spec(P)),
            out_shape=(jax.ShapeDtypeStruct((M1, P), jnp.bfloat16),
                       jax.ShapeDtypeStruct((g1, 2, P), jnp.float32)),
            compiler_params=_cparams(tr1 * (Cin + P) * 2),
            cost_estimate=pl.CostEstimate(
                flops=2 * M1 * Cin * P, transcendentals=0,
                bytes_accessed=2 * M1 * (Cin + P)),
        )(x_flat, w1)
        if has_proj:
            # Strided projection shortcut: gather the strided rows once in
            # the wrapper (XLA strided slice) instead of in-kernel slicing.
            xs_flat = x_nhwc[:, ::stride, ::stride, :] \
                .reshape(M2, Cin).astype(jnp.bfloat16)
            sc_flat, st_sc = pl.pallas_call(
                _conv1x1_stats_kernel,
                grid=(g2,),
                in_specs=[row_spec(tr2, Cin), full_spec((Cin, C4))],
                out_specs=(row_spec(tr2, C4), stat_spec(C4)),
                out_shape=(jax.ShapeDtypeStruct((M2, C4), jnp.bfloat16),
                           jax.ShapeDtypeStruct((g2, 2, C4), jnp.float32)),
                compiler_params=_cparams(tr2 * (Cin + C4) * 2),
                cost_estimate=pl.CostEstimate(
                    flops=2 * M2 * Cin * C4, transcendentals=0,
                    bytes_accessed=2 * M2 * (Cin + C4)),
            )(xs_flat, params["wsc"].astype(jnp.bfloat16))

    # ---- stage 2: bn1 + relu + conv2 (3x3, stride, pad 1), per image ------
    aff1 = _bn_affine(st1, M1, params["g1"], params["b1"])
    y1_img = y1_flat.reshape(N, H, W, P)          # free reshape (contiguous)
    y2_img, st2 = pl.pallas_call(
        functools.partial(_conv3x3_stats_kernel, stride),
        grid=(N,),
        in_specs=[img_spec(H, W, P), full_spec((2, P)), full_spec((9, P, P))],
        out_specs=(img_spec(Ho, Wo, P), stat_spec(P)),
        out_shape=(jax.ShapeDtypeStruct((N, Ho, Wo, P), jnp.bfloat16),
                   jax.ShapeDtypeStruct((N, 2, P), jnp.float32)),
        scratch_shapes=[pltpu.VMEM((H + 2, W + 2, P), jnp.float32)],
        compiler_params=_cparams(
            (H * W + Ho * Wo) * P * 2 + (H + 2) * (W + 2) * P * 4
            + 9 * P * P * 2),
        cost_estimate=pl.CostEstimate(
            flops=2 * M2 * 9 * P * P + 4 * M1 * P, transcendentals=0,
            bytes_accessed=2 * (M1 + M2) * P + 2 * 9 * P * P),
    )(y1_img, aff1, w2)

    # ---- stage 3: bn2 + relu + conv3 (1x1), row-tiled ----------------------
    aff2 = _bn_affine(st2, M2, params["g2"], params["b2"])
    y2_flat = y2_img.reshape(M2, P)
    y3_flat, st3 = pl.pallas_call(
        _bn_relu_conv1x1_stats_kernel,
        grid=(g2,),
        in_specs=[row_spec(tr2, P), full_spec((2, P)), full_spec((P, C4))],
        out_specs=(row_spec(tr2, C4), stat_spec(C4)),
        out_shape=(jax.ShapeDtypeStruct((M2, C4), jnp.bfloat16),
                   jax.ShapeDtypeStruct((g2, 2, C4), jnp.float32)),
        compiler_params=_cparams(tr2 * (P + C4) * 2),
        cost_estimate=pl.CostEstimate(
            flops=2 * M2 * P * C4 + 4 * M2 * P, transcendentals=0,
            bytes_accessed=2 * M2 * (P + C4) + 2 * P * C4),
    )(y2_flat, aff2, w3)

    # ---- stage 4: bn3 + shortcut (+bn) + relu, row-tiled -------------------
    aff3 = _bn_affine(st3, M2, params["g3"], params["b3"])
    s4_in = [y3_flat, aff3]
    s4_specs = [row_spec(tr2, C4), full_spec((2, C4))]
    if has_proj:
        aff_sc = _bn_affine(st_sc, M2, params["gsc"], params["bsc"])
        s4_in += [sc_flat, aff_sc]
        s4_specs += [row_spec(tr2, C4), full_spec((2, C4))]
    else:
        # Identity shortcut is only valid when stride == 1 and Cin == C4.
        assert stride == 1 and Cin == C4 and M1 == M2, (stride, Cin, C4)
        s4_in.append(x_flat)
        s4_specs.append(row_spec(tr2, C4))
    # Note: no input_output_aliases — y3 is stored bf16 while the final
    # output is f32, so shapes/dtypes don't match for aliasing.
    out_flat = pl.pallas_call(
        functools.partial(_bn_add_relu_kernel, has_proj),
        grid=(g2,),
        in_specs=s4_specs,
        out_specs=row_spec(tr2, C4),
        out_shape=jax.ShapeDtypeStruct((M2, C4), jnp.float32),
        compiler_params=_cparams(tr2 * C4 * (2 + 2 + 4)),
        cost_estimate=pl.CostEstimate(
            flops=6 * M2 * C4, transcendentals=0,
            bytes_accessed=8 * M2 * C4),
    )(*s4_in)
    return out_flat.reshape(N, Ho, Wo, C4)


@functools.partial(jax.jit, static_argnames=("stride",))
def bottleneck_forward(x_nchw, params, *, stride=1):
    """PyTorch-convention wrapper: NCHW in, NCHW out."""
    x = jnp.transpose(x_nchw, (0, 2, 3, 1))
    out = bottleneck_forward_nhwc(x, params, stride=stride)
    return jnp.transpose(out, (0, 3, 1, 2))


# ---------------------------------------------------------------------------
# Params + pure-JAX reference
# ---------------------------------------------------------------------------
def init_params(key, in_planes, planes):
    """Deterministic synthetic init (conv weights uniform, BN gamma=1/beta=0)."""
    Cout = EXPANSION * planes
    k1, k2, k3, k4 = jax.random.split(key, 4)

    def w(k, shape, fan_in):
        bound = 1.0 / (fan_in ** 0.5)
        return jax.random.uniform(k, shape, jnp.float32, -bound, bound)

    p = {
        "w1": w(k1, (in_planes, planes), in_planes),          # 1x1 conv CI->CO
        "w2": w(k2, (3, 3, planes, planes), 9 * planes),      # HWIO
        "w3": w(k3, (planes, Cout), planes),
        "wsc": w(k4, (in_planes, Cout), in_planes),
    }
    for name, c in (("1", planes), ("2", planes), ("3", Cout), ("sc", Cout)):
        p["g" + name] = jnp.ones((1, c), jnp.float32)
        p["b" + name] = jnp.zeros((1, c), jnp.float32)
    return p


def ref_bottleneck(x_nchw, params, *, stride=1,
                   matmul_dtype=jnp.float32, store_dtype=jnp.float32):
    """Pure-JAX reference.  matmul_dtype = conv operand precision,
    store_dtype = precision of inter-stage activations (to match the kernel's
    bf16 intermediate storage when set to bfloat16)."""
    x = jnp.transpose(x_nchw, (0, 2, 3, 1)).astype(jnp.float32)

    def rnd(y):
        return y.astype(store_dtype).astype(jnp.float32)

    def bn(y, g, b):
        m = jnp.mean(y, axis=(0, 1, 2), keepdims=True)
        v = jnp.mean(jnp.square(y - m), axis=(0, 1, 2), keepdims=True)
        return (y - m) / jnp.sqrt(v + BN_EPS) * g.reshape(1, 1, 1, -1) \
            + b.reshape(1, 1, 1, -1)

    def mm(a, w):   # 1x1 conv as channel matmul, f32 accumulation
        return jnp.einsum("nhwc,cp->nhwp", a.astype(matmul_dtype),
                          w.astype(matmul_dtype),
                          preferred_element_type=jnp.float32)

    dn = ("NHWC", "HWIO", "NHWC")
    y = jax.nn.relu(bn(rnd(mm(x, params["w1"])), params["g1"], params["b1"]))
    y = jax.lax.conv_general_dilated(
        y.astype(matmul_dtype), params["w2"].astype(matmul_dtype),
        (stride, stride), [(1, 1), (1, 1)], dimension_numbers=dn,
        preferred_element_type=jnp.float32)
    y = jax.nn.relu(bn(rnd(y), params["g2"], params["b2"]))
    y = bn(rnd(mm(y, params["w3"])), params["g3"], params["b3"])
    C4 = y.shape[-1]
    if stride != 1 or x.shape[-1] != C4:
        xs = x[:, ::stride, ::stride, :]
        sc = bn(rnd(mm(xs, params["wsc"])), params["gsc"], params["bsc"])
    else:
        sc = rnd(x)
    out = jax.nn.relu(y + sc)
    return jnp.transpose(out, (0, 3, 1, 2))


if __name__ == "__main__":
    key = jax.random.PRNGKey(0)
    configs = [
        (4, 4, 1),     # projection shortcut (Cin != 4*planes), fused conv1+sc
        (16, 4, 1),    # identity shortcut
        (4, 4, 2),     # strided projection shortcut
    ]
    for in_planes, planes, stride in configs:
        key, kx, kp = jax.random.split(key, 3)
        x = jax.random.normal(kx, (2, in_planes, 16, 16), jnp.float32)  # NCHW
        params = init_params(kp, in_planes, planes)

        out = jax.block_until_ready(bottleneck_forward(x, params, stride=stride))
        Ho = (16 + 2 - 3) // stride + 1
        assert out.shape == (2, EXPANSION * planes, Ho, Ho), out.shape

        # Check vs a reference matching the kernel's precision choices
        # (bf16 MXU operands + bf16 inter-stage storage) ...
        ref_m = ref_bottleneck(x, params, stride=stride,
                               matmul_dtype=jnp.bfloat16,
                               store_dtype=jnp.bfloat16)
        err_m = float(jnp.max(jnp.abs(out - ref_m)))
        # ... and a loose check vs the full-f32 reference (PyTorch semantics).
        ref_f = ref_bottleneck(x, params, stride=stride)
        err_f = float(jnp.max(jnp.abs(out - ref_f)))
        if err_m > 5e-2 or err_f > 2.5e-1:
            raise SystemExit(
                f"mismatch (in={in_planes}, planes={planes}, stride={stride}): "
                f"err_matched={err_m:.3e}, err_f32={err_f:.3e}")
    print("KERNEL_OK")
</pallas_src>

<mosaic_0001>
module attributes {stable_mosaic.version = 11 : i64} {
  func.func @_conv1x1_proj_stats_kernel(%arg0: i32, %arg1: memref<256x4xbf16, #tpu.memory_space<vmem>>, %arg2: memref<4x4xbf16, #tpu.memory_space<vmem>>, %arg3: memref<4x16xbf16, #tpu.memory_space<vmem>>, %arg4: memref<256x4xbf16, #tpu.memory_space<vmem>>, %arg5: memref<1x2x4xf32, #tpu.memory_space<vmem>>, %arg6: memref<256x16xbf16, #tpu.memory_space<vmem>>, %arg7: memref<1x2x16xf32, #tpu.memory_space<vmem>>) attributes {dimension_semantics = [#tpu.dimension_semantics<parallel>], iteration_bounds = array<i64: 2>, scalar_prefetch = 0 : i64, scratch_operands = 0 : i64, tpu.core_type = #tpu.core_type<tc>, window_params = [{transform_indices = @transform_0, window_bounds = array<i64: 256, 4>}, {pipeline_mode = #tpu.pipeline_mode<synchronous>, transform_indices = @transform_1, window_bounds = array<i64: 4, 4>}, {pipeline_mode = #tpu.pipeline_mode<synchronous>, transform_indices = @transform_2, window_bounds = array<i64: 4, 16>}, {transform_indices = @transform_3, window_bounds = array<i64: 256, 4>}, {transform_indices = @transform_4, window_bounds = array<i64: 1, 2, 4>}, {transform_indices = @transform_5, window_bounds = array<i64: 256, 16>}, {transform_indices = @transform_6, window_bounds = array<i64: 1, 2, 16>}]} {
    %c0 = arith.constant 0 : index
    %c0_0 = arith.constant 0 : index
    %0 = vector.load %arg1[%c0, %c0_0] : memref<256x4xbf16, #tpu.memory_space<vmem>>, vector<256x4xbf16>
    %c0_1 = arith.constant 0 : index
    %c0_2 = arith.constant 0 : index
    %1 = vector.load %arg2[%c0_1, %c0_2] : memref<4x4xbf16, #tpu.memory_space<vmem>>, vector<4x4xbf16>
    %cst = arith.constant dense<0.000000e+00> : vector<256x4xf32>
    %2 = tpu.matmul %0, %1, %cst {dimension_numbers = #tpu.dot_dimension_numbers<[1], [0], [0], [1], [0, 0, 1, 1], [], []>} : vector<256x4xbf16>, vector<4x4xbf16>, vector<256x4xf32> -> vector<256x4xf32>
    %3 = arith.truncf %2 : vector<256x4xf32> to vector<256x4xbf16>
    %c0_3 = arith.constant 0 : index
    %c0_4 = arith.constant 0 : index
    %4 = vector.load %arg4[%c0_3, %c0_4] : memref<256x4xbf16, #tpu.memory_space<vmem>>, vector<256x4xbf16>
    tpu.vector_store %arg4[%c0_3, %c0_4], %3 {strides = array<i32>} : memref<256x4xbf16, #tpu.memory_space<vmem>>, vector<256x4xbf16>,
    %cst_5 = arith.constant dense<0.000000e+00> : vector<4xf32>
    %5 = vector.multi_reduction <add>, %2, %cst_5 [0] : vector<256x4xf32> to vector<4xf32>
    %6 = vector.shape_cast %5 : vector<4xf32> to vector<1x4xf32>
    %7 = arith.mulf %2, %2 : vector<256x4xf32>
    %cst_6 = arith.constant dense<0.000000e+00> : vector<4xf32>
    %8 = vector.multi_reduction <add>, %7, %cst_6 [0] : vector<256x4xf32> to vector<4xf32>
    %9 = vector.shape_cast %8 : vector<4xf32> to vector<1x4xf32>
    %10 = tpu.concatenate %6, %9 in 0 : vector<1x4xf32>, vector<1x4xf32> -> vector<2x4xf32>
    %11 = vector.shape_cast %10 : vector<2x4xf32> to vector<1x2x4xf32>
    %c0_7 = arith.constant 0 : index
    %c0_8 = arith.constant 0 : index
    %c0_9 = arith.constant 0 : index
    %12 = vector.load %arg5[%c0_7, %c0_8, %c0_9] : memref<1x2x4xf32, #tpu.memory_space<vmem>>, vector<1x2x4xf32>
    tpu.vector_store %arg5[%c0_7, %c0_8, %c0_9], %11 {strides = array<i32>} : memref<1x2x4xf32, #tpu.memory_space<vmem>>, vector<1x2x4xf32>,
    %c0_10 = arith.constant 0 : index
    %c0_11 = arith.constant 0 : index
    %13 = vector.load %arg3[%c0_10, %c0_11] : memref<4x16xbf16, #tpu.memory_space<vmem>>, vector<4x16xbf16>
    %cst_12 = arith.constant dense<0.000000e+00> : vector<256x16xf32>
    %14 = tpu.matmul %0, %13, %cst_12 {dimension_numbers = #tpu.dot_dimension_numbers<[1], [0], [0], [1], [0, 0, 1, 1], [], []>} : vector<256x4xbf16>, vector<4x16xbf16>, vector<256x16xf32> -> vector<256x16xf32>
    %15 = arith.truncf %14 : vector<256x16xf32> to vector<256x16xbf16>
    %c0_13 = arith.constant 0 : index
    %c0_14 = arith.constant 0 : index
    %16 = vector.load %arg6[%c0_13, %c0_14] : memref<256x16xbf16, #tpu.memory_space<vmem>>, vector<256x16xbf16>
    tpu.vector_store %arg6[%c0_13, %c0_14], %15 {strides = array<i32>} : memref<256x16xbf16, #tpu.memory_space<vmem>>, vector<256x16xbf16>,
    %cst_15 = arith.constant dense<0.000000e+00> : vector<16xf32>
    %17 = vector.multi_reduction <add>, %14, %cst_15 [0] : vector<256x16xf32> to vector<16xf32>
    %18 = vector.shape_cast %17 : vector<16xf32> to vector<1x16xf32>
    %19 = arith.mulf %14, %14 : vector<256x16xf32>
    %cst_16 = arith.constant dense<0.000000e+00> : vector<16xf32>
    %20 = vector.multi_reduction <add>, %19, %cst_16 [0] : vector<256x16xf32> to vector<16xf32>
    %21 = vector.shape_cast %20 : vector<16xf32> to vector<1x16xf32>
    %22 = tpu.concatenate %18, %21 in 0 : vector<1x16xf32>, vector<1x16xf32> -> vector<2x16xf32>
    %23 = vector.shape_cast %22 : vector<2x16xf32> to vector<1x2x16xf32>
    %c0_17 = arith.constant 0 : index
    %c0_18 = arith.constant 0 : index
    %c0_19 = arith.constant 0 : index
    %24 = vector.load %arg7[%c0_17, %c0_18, %c0_19] : memref<1x2x16xf32, #tpu.memory_space<vmem>>, vector<1x2x16xf32>
    tpu.vector_store %arg7[%c0_17, %c0_18, %c0_19], %23 {strides = array<i32>} : memref<1x2x16xf32, #tpu.memory_space<vmem>>, vector<1x2x16xf32>,
    return
  }
  func.func @transform_0(%arg0: i32) -> (i32, i32) {
    %c0_i32 = arith.constant 0 : i32
    %c0_i32_0 = arith.constant 0 : i32
    return %arg0, %c0_i32 : i32, i32
  }
  func.func @transform_1(%arg0: i32) -> (i32, i32) {
    %c0_i32 = arith.constant 0 : i32
    %c0_i32_0 = arith.constant 0 : i32
    %c0_i32_1 = arith.constant 0 : i32
    return %c0_i32, %c0_i32_0 : i32, i32
  }
  func.func @transform_2(%arg0: i32) -> (i32, i32) {
    %c0_i32 = arith.constant 0 : i32
    %c0_i32_0 = arith.constant 0 : i32
    %c0_i32_1 = arith.constant 0 : i32
    return %c0_i32, %c0_i32_0 : i32, i32
  }
  func.func @transform_3(%arg0: i32) -> (i32, i32) {
    %c0_i32 = arith.constant 0 : i32
    %c0_i32_0 = arith.constant 0 : i32
    return %arg0, %c0_i32 : i32, i32
  }
  func.func @transform_4(%arg0: i32) -> (i32, i32, i32) {
    %c0_i32 = arith.constant 0 : i32
    %c0_i32_0 = arith.constant 0 : i32
    %c0_i32_1 = arith.constant 0 : i32
    return %arg0, %c0_i32, %c0_i32_0 : i32, i32, i32
  }
  func.func @transform_5(%arg0: i32) -> (i32, i32) {
    %c0_i32 = arith.constant 0 : i32
    %c0_i32_0 = arith.constant 0 : i32
    return %arg0, %c0_i32 : i32, i32
  }
  func.func @transform_6(%arg0: i32) -> (i32, i32, i32) {
    %c0_i32 = arith.constant 0 : i32
    %c0_i32_0 = arith.constant 0 : i32
    %c0_i32_1 = arith.constant 0 : i32
    return %arg0, %c0_i32, %c0_i32_0 : i32, i32, i32
  }
}

module attributes {stable_mosaic.version = 11 : i64} {
  func.func @_conv3x3_stats_kernel(%arg0: i32, %arg1: memref<1x16x16x4xbf16, #tpu.memory_space<vmem>>, %arg2: memref<2x4xf32, #tpu.memory_space<vmem>>, %arg3: memref<9x4x4xbf16, #tpu.memory_space<vmem>>, %arg4: memref<1x16x16x4xbf16, #tpu.memory_space<vmem>>, %arg5: memref<1x2x4xf32, #tpu.memory_space<vmem>>, %arg6: memref<18x18x4xf32, #tpu.memory_space<vmem>>) attributes {dimension_semantics = [#tpu.dimension_semantics<parallel>], iteration_bounds = array<i64: 2>, scalar_prefetch = 0 : i64, scratch_operands = 1 : i64, tpu.core_type = #tpu.core_type<tc>, window_params = [{transform_indices = @transform_0, window_bounds = array<i64: 1, 16, 16, 4>}, {pipeline_mode = #tpu.pipeline_mode<synchronous>, transform_indices = @transform_1, window_bounds = array<i64: 2, 4>}, {pipeline_mode = #tpu.pipeline_mode<synchronous>, transform_indices = @transform_2, window_bounds = array<i64: 9, 4, 4>}, {transform_indices = @transform_3, window_bounds = array<i64: 1, 16, 16, 4>}, {transform_indices = @transform_4, window_bounds = array<i64: 1, 2, 4>}]} {
    %c0 = arith.constant 0 : index
    %c0_0 = arith.constant 0 : index
    %0 = vector.load %arg2[%c0, %c0_0] : memref<2x4xf32, #tpu.memory_space<vmem>>, vector<2x4xf32>
    %c0_1 = arith.constant 0 : index
    %c0_2 = arith.constant 0 : index
    %c0_3 = arith.constant 0 : index
    %c0_4 = arith.constant 0 : index
    %1 = vector.load %arg1[%c0_1, %c0_2, %c0_3, %c0_4] : memref<1x16x16x4xbf16, #tpu.memory_space<vmem>>, vector<1x16x16x4xbf16>
    %2 = vector.shape_cast %1 : vector<1x16x16x4xbf16> to vector<256x4xbf16>
    %3 = arith.extf %2 : vector<256x4xbf16> to vector<256x4xf32>
    %4 = vector.extract_strided_slice %0 {offsets = [0, 0], sizes = [1, 4], strides = [1, 1]} : vector<2x4xf32> to vector<1x4xf32>
    %5 = vector.broadcast %4 : vector<1x4xf32> to vector<256x4xf32>
    %6 = arith.mulf %3, %5 : vector<256x4xf32>
    %7 = vector.extract_strided_slice %0 {offsets = [1, 0], sizes = [1, 4], strides = [1, 1]} : vector<2x4xf32> to vector<1x4xf32>
    %8 = vector.broadcast %7 : vector<1x4xf32> to vector<256x4xf32>
    %9 = arith.addf %6, %8 : vector<256x4xf32>
    %cst = arith.constant 0.000000e+00 : f32
    %10 = vector.broadcast %cst : f32 to vector<256x4xf32>
    %11 = arith.maximumf %9, %10 : vector<256x4xf32>
    %cst_5 = arith.constant 0.000000e+00 : f32
    %12 = vector.broadcast %cst_5 : f32 to vector<1x18x4xf32>
    %c0_6 = arith.constant 0 : index
    %c0_7 = arith.constant 0 : index
    %c0_8 = arith.constant 0 : index
    %13 = vector.load %arg6[%c0_6, %c0_7, %c0_8] : memref<18x18x4xf32, #tpu.memory_space<vmem>>, vector<1x18x4xf32>
    tpu.vector_store %arg6[%c0_6, %c0_7, %c0_8], %12 {strides = array<i32>} : memref<18x18x4xf32, #tpu.memory_space<vmem>>, vector<1x18x4xf32>,
    %cst_9 = arith.constant 0.000000e+00 : f32
    %14 = vector.broadcast %cst_9 : f32 to vector<1x18x4xf32>
    %c17 = arith.constant 17 : index
    %c0_10 = arith.constant 0 : index
    %c0_11 = arith.constant 0 : index
    %15 = vector.load %arg6[%c17, %c0_10, %c0_11] : memref<18x18x4xf32, #tpu.memory_space<vmem>>, vector<1x18x4xf32>
    tpu.vector_store %arg6[%c17, %c0_10, %c0_11], %14 {strides = array<i32>} : memref<18x18x4xf32, #tpu.memory_space<vmem>>, vector<1x18x4xf32>,
    %cst_12 = arith.constant 0.000000e+00 : f32
    %16 = vector.broadcast %cst_12 : f32 to vector<16x1x4xf32>
    %c1 = arith.constant 1 : index
    %c0_13 = arith.constant 0 : index
    %c0_14 = arith.constant 0 : index
    %17 = vector.load %arg6[%c1, %c0_13, %c0_14] : memref<18x18x4xf32, #tpu.memory_space<vmem>>, vector<16x1x4xf32>
    tpu.vector_store %arg6[%c1, %c0_13, %c0_14], %16 {strides = array<i32>} : memref<18x18x4xf32, #tpu.memory_space<vmem>>, vector<16x1x4xf32>,
    %cst_15 = arith.constant 0.000000e+00 : f32
    %18 = vector.broadcast %cst_15 : f32 to vector<16x1x4xf32>
    %c1_16 = arith.constant 1 : index
    %c17_17 = arith.constant 17 : index
    %c0_18 = arith.constant 0 : index
    %19 = vector.load %arg6[%c1_16, %c17_17, %c0_18] : memref<18x18x4xf32, #tpu.memory_space<vmem>>, vector<16x1x4xf32>
    tpu.vector_store %arg6[%c1_16, %c17_17, %c0_18], %18 {strides = array<i32>} : memref<18x18x4xf32, #tpu.memory_space<vmem>>, vector<16x1x4xf32>,
    %20 = vector.shape_cast %11 : vector<256x4xf32> to vector<16x16x4xf32>
    %c1_19 = arith.constant 1 : index
    %c1_20 = arith.constant 1 : index
    %c0_21 = arith.constant 0 : index
    %21 = vector.load %arg6[%c1_19, %c1_20, %c0_21] : memref<18x18x4xf32, #tpu.memory_space<vmem>>, vector<16x16x4xf32>
    tpu.vector_store %arg6[%c1_19, %c1_20, %c0_21], %20 {strides = array<i32>} : memref<18x18x4xf32, #tpu.memory_space<vmem>>, vector<16x16x4xf32>,
    %cst_22 = arith.constant 0.000000e+00 : f32
    %22 = vector.broadcast %cst_22 : f32 to vector<256x4xf32>
    %c0_23 = arith.constant 0 : index
    %c0_24 = arith.constant 0 : index
    %c0_25 = arith.constant 0 : index
    %23 = vector.load %arg6[%c0_23, %c0_24, %c0_25] : memref<18x18x4xf32, #tpu.memory_space<vmem>>, vector<16x16x4xf32>
    %24 = vector.shape_cast %23 : vector<16x16x4xf32> to vector<256x4xf32>
    %25 = arith.truncf %24 : vector<256x4xf32> to vector<256x4xbf16>
    %c0_26 = arith.constant 0 : index
    %c0_27 = arith.constant 0 : index
    %c0_28 = arith.constant 0 : index
    %26 = vector.load %arg3[%c0_26, %c0_27, %c0_28] : memref<9x4x4xbf16, #tpu.memory_space<vmem>>, vector<1x4x4xbf16>
    %27 = vector.shape_cast %26 : vector<1x4x4xbf16> to vector<4x4xbf16>
    %cst_29 = arith.constant dense<0.000000e+00> : vector<256x4xf32>
    %28 = tpu.matmul %25, %27, %cst_29 {dimension_numbers = #tpu.dot_dimension_numbers<[1], [0], [0], [1], [0, 0, 1, 1], [], []>} : vector<256x4xbf16>, vector<4x4xbf16>, vector<256x4xf32> -> vector<256x4xf32>
    %29 = arith.addf %22, %28 : vector<256x4xf32>
    %c0_30 = arith.constant 0 : index
    %c1_31 = arith.constant 1 : index
    %c0_32 = arith.constant 0 : index
    %30 = vector.load %arg6[%c0_30, %c1_31, %c0_32] : memref<18x18x4xf32, #tpu.memory_space<vmem>>, vector<16x16x4xf32>
    %31 = vector.shape_cast %30 : vector<16x16x4xf32> to vector<256x4xf32>
    %32 = arith.truncf %31 : vector<256x4xf32> to vector<256x4xbf16>
    %c1_33 = arith.constant 1 : index
    %c0_34 = arith.constant 0 : index
    %c0_35 = arith.constant 0 : index
    %33 = vector.load %arg3[%c1_33, %c0_34, %c0_35] : memref<9x4x4xbf16, #tpu.memory_space<vmem>>, vector<1x4x4xbf16>
    %34 = vector.shape_cast %33 : vector<1x4x4xbf16> to vector<4x4xbf16>
    %cst_36 = arith.constant dense<0.000000e+00> : vector<256x4xf32>
    %35 = tpu.matmul %32, %34, %cst_36 {dimension_numbers = #tpu.dot_dimension_numbers<[1], [0], [0], [1], [0, 0, 1, 1], [], []>} : vector<256x4xbf16>, vector<4x4xbf16>, vector<256x4xf32> -> vector<256x4xf32>
    %36 = arith.addf %29, %35 : vector<256x4xf32>
    %c0_37 = arith.constant 0 : index
    %c2 = arith.constant 2 : index
    %c0_38 = arith.constant 0 : index
    %37 = vector.load %arg6[%c0_37, %c2, %c0_38] : memref<18x18x4xf32, #tpu.memory_space<vmem>>, vector<16x16x4xf32>
    %38 = vector.shape_cast %37 : vector<16x16x4xf32> to vector<256x4xf32>
    %39 = arith.truncf %38 : vector<256x4xf32> to vector<256x4xbf16>
    %c2_39 = arith.constant 2 : index
    %c0_40 = arith.constant 0 : index
    %c0_41 = arith.constant 0 : index
    %40 = vector.load %arg3[%c2_39, %c0_40, %c0_41] : memref<9x4x4xbf16, #tpu.memory_space<vmem>>, vector<1x4x4xbf16>
    %41 = vector.shape_cast %40 : vector<1x4x4xbf16> to vector<4x4xbf16>
    %cst_42 = arith.constant dense<0.000000e+00> : vector<256x4xf32>
    %42 = tpu.matmul %39, %41, %cst_42 {dimension_numbers = #tpu.dot_dimension_numbers<[1], [0], [0], [1], [0, 0, 1, 1], [], []>} : vector<256x4xbf16>, vector<4x4xbf16>, vector<256x4xf32> -> vector<256x4xf32>
    %43 = arith.addf %36, %42 : vector<256x4xf32>
    %c1_43 = arith.constant 1 : index
    %c0_44 = arith.constant 0 : index
    %c0_45 = arith.constant 0 : index
    %44 = vector.load %arg6[%c1_43, %c0_44, %c0_45] : memref<18x18x4xf32, #tpu.memory_space<vmem>>, vector<16x16x4xf32>
    %45 = vector.shape_cast %44 : vector<16x16x4xf32> to vector<256x4xf32>
    %46 = arith.truncf %45 : vector<256x4xf32> to vector<256x4xbf16>
    %c3 = arith.constant 3 : index
    %c0_46 = arith.constant 0 : index
    %c0_47 = arith.constant 0 : index
    %47 = vector.load %arg3[%c3, %c0_46, %c0_47] : memref<9x4x4xbf16, #tpu.memory_space<vmem>>, vector<1x4x4xbf16>
    %48 = vector.shape_cast %47 : vector<1x4x4xbf16> to vector<4x4xbf16>
    %cst_48 = arith.constant dense<0.000000e+00> : vector<256x4xf32>
    %49 = tpu.matmul %46, %48, %cst_48 {dimension_numbers = #tpu.dot_dimension_numbers<[1], [0], [0], [1], [0, 0, 1, 1], [], []>} : vector<256x4xbf16>, vector<4x4xbf16>, vector<256x4xf32> -> vector<256x4xf32>
    %50 = arith.addf %43, %49 : vector<256x4xf32>
    %c1_49 = arith.constant 1 : index
    %c1_50 = arith.constant 1 : index
    %c0_51 = arith.constant 0 : index
    %51 = vector.load %arg6[%c1_49, %c1_50, %c0_51] : memref<18x18x4xf32, #tpu.memory_space<vmem>>, vector<16x16x4xf32>
    %52 = vector.shape_cast %51 : vector<16x16x4xf32> to vector<256x4xf32>
    %53 = arith.truncf %52 : vector<256x4xf32> to vector<256x4xbf16>
    %c4 = arith.constant 4 : index
    %c0_52 = arith.constant 0 : index
    %c0_53 = arith.constant 0 : index
    %54 = vector.load %arg3[%c4, %c0_52, %c0_53] : memref<9x4x4xbf16, #tpu.memory_space<vmem>>, vector<1x4x4xbf16>
    %55 = vector.shape_cast %54 : vector<1x4x4xbf16> to vector<4x4xbf16>
    %cst_54 = arith.constant dense<0.000000e+00> : vector<256x4xf32>
    %56 = tpu.matmul %53, %55, %cst_54 {dimension_numbers = #tpu.dot_dimension_numbers<[1], [0], [0], [1], [0, 0, 1, 1], [], []>} : vector<256x4xbf16>, vector<4x4xbf16>, vector<256x4xf32> -> vector<256x4xf32>
    %57 = arith.addf %50, %56 : vector<256x4xf32>
    %c1_55 = arith.constant 1 : index
    %c2_56 = arith.constant 2 : index
    %c0_57 = arith.constant 0 : index
    %58 = vector.load %arg6[%c1_55, %c2_56, %c0_57] : memref<18x18x4xf32, #tpu.memory_space<vmem>>, vector<16x16x4xf32>
    %59 = vector.shape_cast %58 : vector<16x16x4xf32> to vector<256x4xf32>
    %60 = arith.truncf %59 : vector<256x4xf32> to vector<256x4xbf16>
    %c5 = arith.constant 5 : index
    %c0_58 = arith.constant 0 : index
    %c0_59 = arith.constant 0 : index
    %61 = vector.load %arg3[%c5, %c0_58, %c0_59] : memref<9x4x4xbf16, #tpu.memory_space<vmem>>, vector<1x4x4xbf16>
    %62 = vector.shape_cast %61 : vector<1x4x4xbf16> to vector<4x4xbf16>
    %cst_60 = arith.constant dense<0.000000e+00> : vector<256x4xf32>
    %63 = tpu.matmul %60, %62, %cst_60 {dimension_numbers = #tpu.dot_dimension_numbers<[1], [0], [0], [1], [0, 0, 1, 1], [], []>} : vector<256x4xbf16>, vector<4x4xbf16>, vector<256x4xf32> -> vector<256x4xf32>
    %64 = arith.addf %57, %63 : vector<256x4xf32>
    %c2_61 = arith.constant 2 : index
    %c0_62 = arith.constant 0 : index
    %c0_63 = arith.constant 0 : index
    %65 = vector.load %arg6[%c2_61, %c0_62, %c0_63] : memref<18x18x4xf32, #tpu.memory_space<vmem>>, vector<16x16x4xf32>
    %66 = vector.shape_cast %65 : vector<16x16x4xf32> to vector<256x4xf32>
    %67 = arith.truncf %66 : vector<256x4xf32> to vector<256x4xbf16>
    %c6 = arith.constant 6 : index
    %c0_64 = arith.constant 0 : index
    %c0_65 = arith.constant 0 : index
    %68 = vector.load %arg3[%c6, %c0_64, %c0_65] : memref<9x4x4xbf16, #tpu.memory_space<vmem>>, vector<1x4x4xbf16>
    %69 = vector.shape_cast %68 : vector<1x4x4xbf16> to vector<4x4xbf16>
    %cst_66 = arith.constant dense<0.000000e+00> : vector<256x4xf32>
    %70 = tpu.matmul %67, %69, %cst_66 {dimension_numbers = #tpu.dot_dimension_numbers<[1], [0], [0], [1], [0, 0, 1, 1], [], []>} : vector<256x4xbf16>, vector<4x4xbf16>, vector<256x4xf32> -> vector<256x4xf32>
    %71 = arith.addf %64, %70 : vector<256x4xf32>
    %c2_67 = arith.constant 2 : index
    %c1_68 = arith.constant 1 : index
    %c0_69 = arith.constant 0 : index
    %72 = vector.load %arg6[%c2_67, %c1_68, %c0_69] : memref<18x18x4xf32, #tpu.memory_space<vmem>>, vector<16x16x4xf32>
    %73 = vector.shape_cast %72 : vector<16x16x4xf32> to vector<256x4xf32>
    %74 = arith.truncf %73 : vector<256x4xf32> to vector<256x4xbf16>
    %c7 = arith.constant 7 : index
    %c0_70 = arith.constant 0 : index
    %c0_71 = arith.constant 0 : index
    %75 = vector.load %arg3[%c7, %c0_70, %c0_71] : memref<9x4x4xbf16, #tpu.memory_space<vmem>>, vector<1x4x4xbf16>
    %76 = vector.shape_cast %75 : vector<1x4x4xbf16> to vector<4x4xbf16>
    %cst_72 = arith.constant dense<0.000000e+00> : vector<256x4xf32>
    %77 = tpu.matmul %74, %76, %cst_72 {dimension_numbers = #tpu.dot_dimension_numbers<[1], [0], [0], [1], [0, 0, 1, 1], [], []>} : vector<256x4xbf16>, vector<4x4xbf16>, vector<256x4xf32> -> vector<256x4xf32>
    %78 = arith.addf %71, %77 : vector<256x4xf32>
    %c2_73 = arith.constant 2 : index
    %c2_74 = arith.constant 2 : index
    %c0_75 = arith.constant 0 : index
    %79 = vector.load %arg6[%c2_73, %c2_74, %c0_75] : memref<18x18x4xf32, #tpu.memory_space<vmem>>, vector<16x16x4xf32>
    %80 = vector.shape_cast %79 : vector<16x16x4xf32> to vector<256x4xf32>
    %81 = arith.truncf %80 : vector<256x4xf32> to vector<256x4xbf16>
    %c8 = arith.constant 8 : index
    %c0_76 = arith.constant 0 : index
    %c0_77 = arith.constant 0 : index
    %82 = vector.load %arg3[%c8, %c0_76, %c0_77] : memref<9x4x4xbf16, #tpu.memory_space<vmem>>, vector<1x4x4xbf16>
    %83 = vector.shape_cast %82 : vector<1x4x4xbf16> to vector<4x4xbf16>
    %cst_78 = arith.constant dense<0.000000e+00> : vector<256x4xf32>
    %84 = tpu.matmul %81, %83, %cst_78 {dimension_numbers = #tpu.dot_dimension_numbers<[1], [0], [0], [1], [0, 0, 1, 1], [], []>} : vector<256x4xbf16>, vector<4x4xbf16>, vector<256x4xf32> -> vector<256x4xf32>
    %85 = arith.addf %78, %84 : vector<256x4xf32>
    %86 = arith.truncf %85 : vector<256x4xf32> to vector<256x4xbf16>
    %87 = vector.shape_cast %86 : vector<256x4xbf16> to vector<1x16x16x4xbf16>
    %c0_79 = arith.constant 0 : index
    %c0_80 = arith.constant 0 : index
    %c0_81 = arith.constant 0 : index
    %c0_82 = arith.constant 0 : index
    %88 = vector.load %arg4[%c0_79, %c0_80, %c0_81, %c0_82] : memref<1x16x16x4xbf16, #tpu.memory_space<vmem>>, vector<1x16x16x4xbf16>
    tpu.vector_store %arg4[%c0_79, %c0_80, %c0_81, %c0_82], %87 {strides = array<i32>} : memref<1x16x16x4xbf16, #tpu.memory_space<vmem>>, vector<1x16x16x4xbf16>,
    %cst_83 = arith.constant dense<0.000000e+00> : vector<4xf32>
    %89 = vector.multi_reduction <add>, %85, %cst_83 [0] : vector<256x4xf32> to vector<4xf32>
    %90 = vector.shape_cast %89 : vector<4xf32> to vector<1x4xf32>
    %91 = arith.mulf %85, %85 : vector<256x4xf32>
    %cst_84 = arith.constant dense<0.000000e+00> : vector<4xf32>
    %92 = vector.multi_reduction <add>, %91, %cst_84 [0] : vector<256x4xf32> to vector<4xf32>
    %93 = vector.shape_cast %92 : vector<4xf32> to vector<1x4xf32>
    %94 = tpu.concatenate %90, %93 in 0 : vector<1x4xf32>, vector<1x4xf32> -> vector<2x4xf32>
    %95 = vector.shape_cast %94 : vector<2x4xf32> to vector<1x2x4xf32>
    %c0_85 = arith.constant 0 : index
    %c0_86 = arith.constant 0 : index
    %c0_87 = arith.constant 0 : index
    %96 = vector.load %arg5[%c0_85, %c0_86, %c0_87] : memref<1x2x4xf32, #tpu.memory_space<vmem>>, vector<1x2x4xf32>
    tpu.vector_store %arg5[%c0_85, %c0_86, %c0_87], %95 {strides = array<i32>} : memref<1x2x4xf32, #tpu.memory_space<vmem>>, vector<1x2x4xf32>,
    return
  }
  func.func @transform_0(%arg0: i32) -> (i32, i32, i32, i32) {
    %c0_i32 = arith.constant 0 : i32
    %c0_i32_0 = arith.constant 0 : i32
    %c0_i32_1 = arith.constant 0 : i32
    %c0_i32_2 = arith.constant 0 : i32
    return %arg0, %c0_i32, %c0_i32_0, %c0_i32_1 : i32, i32, i32, i32
  }
  func.func @transform_1(%arg0: i32) -> (i32, i32) {
    %c0_i32 = arith.constant 0 : i32
    %c0_i32_0 = arith.constant 0 : i32
    %c0_i32_1 = arith.constant 0 : i32
    return %c0_i32, %c0_i32_0 : i32, i32
  }
  func.func @transform_2(%arg0: i32) -> (i32, i32, i32) {
    %c0_i32 = arith.constant 0 : i32
    %c0_i32_0 = arith.constant 0 : i32
    %c0_i32_1 = arith.constant 0 : i32
    %c0_i32_2 = arith.constant 0 : i32
    return %c0_i32, %c0_i32_0, %c0_i32_1 : i32, i32, i32
  }
  func.func @transform_3(%arg0: i32) -> (i32, i32, i32, i32) {
    %c0_i32 = arith.constant 0 : i32
    %c0_i32_0 = arith.constant 0 : i32
    %c0_i32_1 = arith.constant 0 : i32
    %c0_i32_2 = arith.constant 0 : i32
    return %arg0, %c0_i32, %c0_i32_0, %c0_i32_1 : i32, i32, i32, i32
  }
  func.func @transform_4(%arg0: i32) -> (i32, i32, i32) {
    %c0_i32 = arith.constant 0 : i32
    %c0_i32_0 = arith.constant 0 : i32
    %c0_i32_1 = arith.constant 0 : i32
    return %arg0, %c0_i32, %c0_i32_0 : i32, i32, i32
  }
}

module attributes {stable_mosaic.version = 11 : i64} {
  func.func @_bn_relu_conv1x1_stats_kernel(%arg0: i32, %arg1: memref<256x4xbf16, #tpu.memory_space<vmem>>, %arg2: memref<2x4xf32, #tpu.memory_space<vmem>>, %arg3: memref<4x16xbf16, #tpu.memory_space<vmem>>, %arg4: memref<256x16xbf16, #tpu.memory_space<vmem>>, %arg5: memref<1x2x16xf32, #tpu.memory_space<vmem>>) attributes {dimension_semantics = [#tpu.dimension_semantics<parallel>], iteration_bounds = array<i64: 2>, scalar_prefetch = 0 : i64, scratch_operands = 0 : i64, tpu.core_type = #tpu.core_type<tc>, window_params = [{transform_indices = @transform_0, window_bounds = array<i64: 256, 4>}, {pipeline_mode = #tpu.pipeline_mode<synchronous>, transform_indices = @transform_1, window_bounds = array<i64: 2, 4>}, {pipeline_mode = #tpu.pipeline_mode<synchronous>, transform_indices = @transform_2, window_bounds = array<i64: 4, 16>}, {transform_indices = @transform_3, window_bounds = array<i64: 256, 16>}, {transform_indices = @transform_4, window_bounds = array<i64: 1, 2, 16>}]} {
    %c0 = arith.constant 0 : index
    %c0_0 = arith.constant 0 : index
    %0 = vector.load %arg2[%c0, %c0_0] : memref<2x4xf32, #tpu.memory_space<vmem>>, vector<2x4xf32>
    %c0_1 = arith.constant 0 : index
    %c0_2 = arith.constant 0 : index
    %1 = vector.load %arg1[%c0_1, %c0_2] : memref<256x4xbf16, #tpu.memory_space<vmem>>, vector<256x4xbf16>
    %2 = arith.extf %1 : vector<256x4xbf16> to vector<256x4xf32>
    %3 = vector.extract_strided_slice %0 {offsets = [0, 0], sizes = [1, 4], strides = [1, 1]} : vector<2x4xf32> to vector<1x4xf32>
    %4 = vector.broadcast %3 : vector<1x4xf32> to vector<256x4xf32>
    %5 = arith.mulf %2, %4 : vector<256x4xf32>
    %6 = vector.extract_strided_slice %0 {offsets = [1, 0], sizes = [1, 4], strides = [1, 1]} : vector<2x4xf32> to vector<1x4xf32>
    %7 = vector.broadcast %6 : vector<1x4xf32> to vector<256x4xf32>
    %8 = arith.addf %5, %7 : vector<256x4xf32>
    %cst = arith.constant 0.000000e+00 : f32
    %9 = vector.broadcast %cst : f32 to vector<256x4xf32>
    %10 = arith.maximumf %8, %9 : vector<256x4xf32>
    %11 = arith.truncf %10 : vector<256x4xf32> to vector<256x4xbf16>
    %c0_3 = arith.constant 0 : index
    %c0_4 = arith.constant 0 : index
    %12 = vector.load %arg3[%c0_3, %c0_4] : memref<4x16xbf16, #tpu.memory_space<vmem>>, vector<4x16xbf16>
    %cst_5 = arith.constant dense<0.000000e+00> : vector<256x16xf32>
    %13 = tpu.matmul %11, %12, %cst_5 {dimension_numbers = #tpu.dot_dimension_numbers<[1], [0], [0], [1], [0, 0, 1, 1], [], []>} : vector<256x4xbf16>, vector<4x16xbf16>, vector<256x16xf32> -> vector<256x16xf32>
    %14 = arith.truncf %13 : vector<256x16xf32> to vector<256x16xbf16>
    %c0_6 = arith.constant 0 : index
    %c0_7 = arith.constant 0 : index
    %15 = vector.load %arg4[%c0_6, %c0_7] : memref<256x16xbf16, #tpu.memory_space<vmem>>, vector<256x16xbf16>
    tpu.vector_store %arg4[%c0_6, %c0_7], %14 {strides = array<i32>} : memref<256x16xbf16, #tpu.memory_space<vmem>>, vector<256x16xbf16>,
    %cst_8 = arith.constant dense<0.000000e+00> : vector<16xf32>
    %16 = vector.multi_reduction <add>, %13, %cst_8 [0] : vector<256x16xf32> to vector<16xf32>
    %17 = vector.shape_cast %16 : vector<16xf32> to vector<1x16xf32>
    %18 = arith.mulf %13, %13 : vector<256x16xf32>
    %cst_9 = arith.constant dense<0.000000e+00> : vector<16xf32>
    %19 = vector.multi_reduction <add>, %18, %cst_9 [0] : vector<256x16xf32> to vector<16xf32>
    %20 = vector.shape_cast %19 : vector<16xf32> to vector<1x16xf32>
    %21 = tpu.concatenate %17, %20 in 0 : vector<1x16xf32>, vector<1x16xf32> -> vector<2x16xf32>
    %22 = vector.shape_cast %21 : vector<2x16xf32> to vector<1x2x16xf32>
    %c0_10 = arith.constant 0 : index
    %c0_11 = arith.constant 0 : index
    %c0_12 = arith.constant 0 : index
    %23 = vector.load %arg5[%c0_10, %c0_11, %c0_12] : memref<1x2x16xf32, #tpu.memory_space<vmem>>, vector<1x2x16xf32>
    tpu.vector_store %arg5[%c0_10, %c0_11, %c0_12], %22 {strides = array<i32>} : memref<1x2x16xf32, #tpu.memory_space<vmem>>, vector<1x2x16xf32>,
    return
  }
  func.func @transform_0(%arg0: i32) -> (i32, i32) {
    %c0_i32 = arith.constant 0 : i32
    %c0_i32_0 = arith.constant 0 : i32
    return %arg0, %c0_i32 : i32, i32
  }
  func.func @transform_1(%arg0: i32) -> (i32, i32) {
    %c0_i32 = arith.constant 0 : i32
    %c0_i32_0 = arith.constant 0 : i32
    %c0_i32_1 = arith.constant 0 : i32
    return %c0_i32, %c0_i32_0 : i32, i32
  }
  func.func @transform_2(%arg0: i32) -> (i32, i32) {
    %c0_i32 = arith.constant 0 : i32
    %c0_i32_0 = arith.constant 0 : i32
    %c0_i32_1 = arith.constant 0 : i32
    return %c0_i32, %c0_i32_0 : i32, i32
  }
  func.func @transform_3(%arg0: i32) -> (i32, i32) {
    %c0_i32 = arith.constant 0 : i32
    %c0_i32_0 = arith.constant 0 : i32
    return %arg0, %c0_i32 : i32, i32
  }
  func.func @transform_4(%arg0: i32) -> (i32, i32, i32) {
    %c0_i32 = arith.constant 0 : i32
    %c0_i32_0 = arith.constant 0 : i32
    %c0_i32_1 = arith.constant 0 : i32
    return %arg0, %c0_i32, %c0_i32_0 : i32, i32, i32
  }
}

module attributes {stable_mosaic.version = 11 : i64} {
  func.func @_bn_add_relu_kernel(%arg0: i32, %arg1: memref<256x16xbf16, #tpu.memory_space<vmem>>, %arg2: memref<2x16xf32, #tpu.memory_space<vmem>>, %arg3: memref<256x16xbf16, #tpu.memory_space<vmem>>, %arg4: memref<2x16xf32, #tpu.memory_space<vmem>>, %arg5: memref<256x16xf32, #tpu.memory_space<vmem>>) attributes {dimension_semantics = [#tpu.dimension_semantics<parallel>], iteration_bounds = array<i64: 2>, scalar_prefetch = 0 : i64, scratch_operands = 0 : i64, tpu.core_type = #tpu.core_type<tc>, window_params = [{transform_indices = @transform_0, window_bounds = array<i64: 256, 16>}, {pipeline_mode = #tpu.pipeline_mode<synchronous>, transform_indices = @transform_1, window_bounds = array<i64: 2, 16>}, {transform_indices = @transform_2, window_bounds = array<i64: 256, 16>}, {pipeline_mode = #tpu.pipeline_mode<synchronous>, transform_indices = @transform_3, window_bounds = array<i64: 2, 16>}, {transform_indices = @transform_4, window_bounds = array<i64: 256, 16>}]} {
    %c0 = arith.constant 0 : index
    %c0_0 = arith.constant 0 : index
    %0 = vector.load %arg2[%c0, %c0_0] : memref<2x16xf32, #tpu.memory_space<vmem>>, vector<2x16xf32>
    %c0_1 = arith.constant 0 : index
    %c0_2 = arith.constant 0 : index
    %1 = vector.load %arg1[%c0_1, %c0_2] : memref<256x16xbf16, #tpu.memory_space<vmem>>, vector<256x16xbf16>
    %2 = arith.extf %1 : vector<256x16xbf16> to vector<256x16xf32>
    %3 = vector.extract_strided_slice %0 {offsets = [0, 0], sizes = [1, 16], strides = [1, 1]} : vector<2x16xf32> to vector<1x16xf32>
    %4 = vector.broadcast %3 : vector<1x16xf32> to vector<256x16xf32>
    %5 = arith.mulf %2, %4 : vector<256x16xf32>
    %6 = vector.extract_strided_slice %0 {offsets = [1, 0], sizes = [1, 16], strides = [1, 1]} : vector<2x16xf32> to vector<1x16xf32>
    %7 = vector.broadcast %6 : vector<1x16xf32> to vector<256x16xf32>
    %8 = arith.addf %5, %7 : vector<256x16xf32>
    %c0_3 = arith.constant 0 : index
    %c0_4 = arith.constant 0 : index
    %9 = vector.load %arg3[%c0_3, %c0_4] : memref<256x16xbf16, #tpu.memory_space<vmem>>, vector<256x16xbf16>
    %10 = arith.extf %9 : vector<256x16xbf16> to vector<256x16xf32>
    %c0_5 = arith.constant 0 : index
    %c0_6 = arith.constant 0 : index
    %11 = vector.load %arg4[%c0_5, %c0_6] : memref<2x16xf32, #tpu.memory_space<vmem>>, vector<2x16xf32>
    %12 = vector.extract_strided_slice %11 {offsets = [0, 0], sizes = [1, 16], strides = [1, 1]} : vector<2x16xf32> to vector<1x16xf32>
    %13 = vector.broadcast %12 : vector<1x16xf32> to vector<256x16xf32>
    %14 = arith.mulf %10, %13 : vector<256x16xf32>
    %15 = vector.extract_strided_slice %11 {offsets = [1, 0], sizes = [1, 16], strides = [1, 1]} : vector<2x16xf32> to vector<1x16xf32>
    %16 = vector.broadcast %15 : vector<1x16xf32> to vector<256x16xf32>
    %17 = arith.addf %14, %16 : vector<256x16xf32>
    %18 = arith.addf %8, %17 : vector<256x16xf32>
    %cst = arith.constant 0.000000e+00 : f32
    %19 = vector.broadcast %cst : f32 to vector<256x16xf32>
    %20 = arith.maximumf %18, %19 : vector<256x16xf32>
    %c0_7 = arith.constant 0 : index
    %c0_8 = arith.constant 0 : index
    %21 = vector.load %arg5[%c0_7, %c0_8] : memref<256x16xf32, #tpu.memory_space<vmem>>, vector<256x16xf32>
    tpu.vector_store %arg5[%c0_7, %c0_8], %20 {strides = array<i32>} : memref<256x16xf32, #tpu.memory_space<vmem>>, vector<256x16xf32>,
    return
  }
  func.func @transform_0(%arg0: i32) -> (i32, i32) {
    %c0_i32 = arith.constant 0 : i32
    %c0_i32_0 = arith.constant 0 : i32
    return %arg0, %c0_i32 : i32, i32
  }
  func.func @transform_1(%arg0: i32) -> (i32, i32) {
    %c0_i32 = arith.constant 0 : i32
    %c0_i32_0 = arith.constant 0 : i32
    %c0_i32_1 = arith.constant 0 : i32
    return %c0_i32, %c0_i32_0 : i32, i32
  }
  func.func @transform_2(%arg0: i32) -> (i32, i32) {
    %c0_i32 = arith.constant 0 : i32
    %c0_i32_0 = arith.constant 0 : i32
    return %arg0, %c0_i32 : i32, i32
  }
  func.func @transform_3(%arg0: i32) -> (i32, i32) {
    %c0_i32 = arith.constant 0 : i32
    %c0_i32_0 = arith.constant 0 : i32
    %c0_i32_1 = arith.constant 0 : i32
    return %c0_i32, %c0_i32_0 : i32, i32
  }
  func.func @transform_4(%arg0: i32) -> (i32, i32) {
    %c0_i32 = arith.constant 0 : i32
    %c0_i32_0 = arith.constant 0 : i32
    return %arg0, %c0_i32 : i32, i32
  }
}

</mosaic_0001>

<llo_original>
// kernel: bottleneck_forward.6
$region0: #{bottleneck_forward.6}
  #allocation0 [shape = 'u32[]', space=smem, size = 0x4, offset = 0x4, fixed_abs, tag = 'smem constant byte address 0x4 - core index']
  #allocation1 [shape = 'u32[72,128]{1,0:T(1,128)}', space=vmem, size = 0x9000, scoped, tag = 'internal scratch']
  %s0 = inlined_call_operand.vmem [shape: bf16[512,4], index: 0, kind: input, shape index: {}]
  %s1 = inlined_call_operand.vmem [shape: f32[2,4], index: 1, kind: input, shape index: {}]
  %s2 = inlined_call_operand.vmem [shape: bf16[4,16], index: 2, kind: input, shape index: {}]
  %s3 = inlined_call_operand.vmem [shape: bf16[512,16], index: 3, kind: output, shape index: {0}]
  %s4 = inlined_call_operand.vmem [shape: f32[2,2,16], index: 4, kind: output, shape index: {1}]
  %5 = xla_tuple %s3, %s4
  %s6 = sld [smem:[#allocation0]]
  $region53: #{bottleneck_forward.6} parent=0
    _
  %s8 = ssub.s32 1, %s6
  %s9 = scalar_select 0, %s8, %s6
  loop: start=0, step=1, limit=4
  $region2: #{bottleneck_forward.6} parent=0 // loop_pre_header
    _
  $region3: #{bottleneck_forward.6} parent=0 // loop_header
    %s11 = sphi 0, %s15
    %p12 = scmp.ge.s32.totalorder %s11, 4
    %s21 = sphi 0, %s23
    %s24 = sphi 0, %s21
    %s25 = sphi 0, %s24
    %s41 = sphi 0, %s25
    %s45 = sphi 0, %s45
    %s47 = sphi 0, %s45
    %s48 = sphi 0, %s47
    %s62 = sphi 0, %s48
    %s66 = sphi 0, %s66
    %s68 = sphi 0, %s66
    %s69 = sphi 0, %s68
    %s83 = sphi 0, %s69
    %s89 = sphi 0, %s91
    %s92 = sphi 0, %s89
    %s93 = sphi 0, %s92
    %s109 = sphi 0, %s93
    %s115 = sphi 0, %s117
    %s118 = sphi 0, %s115
    %s119 = sphi 0, %s118
    %s135 = sphi 0, %s119
  $region4: #{bottleneck_forward.6} parent=0 // loop_header_branch
    %14 = sbr.rel (%p12) target = $region8
  $region5: #{bottleneck_forward.6} parent=0 // loop_body
    %s16 = ssub.s32 %s11, 1
    %s17 = ssub.s32 %s11, 2
    %s18 = sadd.s32 %s11, 1
    %s19 = ssub.s32 %s11, %s18
    %p20 = scmp.eq.s32.totalorder %s19, 0
    %s22 = sadd.s32 %s21, 1
    %s23 = scalar_select %p20, %s21, %s22
    %p26 = pneg %p20
    %p27 = scmp.eq.s32.totalorder %s11, 1
    %p28 = por %p26, %p27
    %p29 = scmp.ne.s32.totalorder %s21, %s24
    %p30 = scmp.eq.s32.totalorder %s11, 0
    %p31 = por %p29, %p30
    %p32 = scmp.ne.s32.totalorder %s21, %s24
    %p33 = scmp.eq.s32.totalorder %s16, 1
    %p34 = por %p32, %p33
    %p35 = scmp.ne.s32.totalorder %s24, %s25
    %p36 = scmp.eq.s32.totalorder %s16, 0
    %p37 = por %p35, %p36
    %p38 = scmp.ne.s32.totalorder %s24, %s25
    %p39 = scmp.eq.s32.totalorder %s17, 1
    %p40 = por %p38, %p39
    %p42 = scmp.ne.s32.totalorder %s25, %s41
    %p43 = scmp.eq.s32.totalorder %s17, 0
    %p44 = por %p42, %p43
    %s46 = sadd.s32 %s45, 1
    %p49 = scmp.eq.s32.totalorder %s11, 1
    %p50 = scmp.ne.s32.totalorder %s45, %s47
    %p51 = scmp.eq.s32.totalorder %s11, 0
    %p52 = por %p50, %p51
    %p53 = scmp.ne.s32.totalorder %s45, %s47
    %p54 = scmp.eq.s32.totalorder %s16, 1
    %p55 = por %p53, %p54
    %p56 = scmp.ne.s32.totalorder %s47, %s48
    %p57 = scmp.eq.s32.totalorder %s16, 0
    %p58 = por %p56, %p57
    %p59 = scmp.ne.s32.totalorder %s47, %s48
    %p60 = scmp.eq.s32.totalorder %s17, 1
    %p61 = por %p59, %p60
    %p63 = scmp.ne.s32.totalorder %s48, %s62
    %p64 = scmp.eq.s32.totalorder %s17, 0
    %p65 = por %p63, %p64
    %s67 = sadd.s32 %s66, 1
    %p70 = scmp.eq.s32.totalorder %s11, 1
    %p71 = scmp.ne.s32.totalorder %s66, %s68
    %p72 = scmp.eq.s32.totalorder %s11, 0
    %p73 = por %p71, %p72
    %p74 = scmp.ne.s32.totalorder %s66, %s68
    %p75 = scmp.eq.s32.totalorder %s16, 1
    %p76 = por %p74, %p75
    %p77 = scmp.ne.s32.totalorder %s68, %s69
    %p78 = scmp.eq.s32.totalorder %s16, 0
    %p79 = por %p77, %p78
    %p80 = scmp.ne.s32.totalorder %s68, %s69
    %p81 = scmp.eq.s32.totalorder %s17, 1
    %p82 = por %p80, %p81
    %p84 = scmp.ne.s32.totalorder %s69, %s83
    %p85 = scmp.eq.s32.totalorder %s17, 0
    %p86 = por %p84, %p85
    %s87 = ssub.s32 %s11, %s18
    %p88 = scmp.eq.s32.totalorder %s87, 0
    %s90 = sadd.s32 %s89, 1
    %s91 = scalar_select %p88, %s89, %s90
    %p94 = pneg %p88
    %p95 = scmp.eq.s32.totalorder %s11, 1
    %p96 = por %p94, %p95
    %p97 = scmp.ne.s32.totalorder %s89, %s92
    %p98 = scmp.eq.s32.totalorder %s11, 0
    %p99 = por %p97, %p98
    %p100 = scmp.ne.s32.totalorder %s89, %s92
    %p101 = scmp.eq.s32.totalorder %s16, 1
    %p102 = por %p100, %p101
    %p103 = scmp.ne.s32.totalorder %s92, %s93
    %p104 = scmp.eq.s32.totalorder %s16, 0
    %p105 = por %p103, %p104
    %p106 = scmp.ne.s32.totalorder %s92, %s93
    %p107 = scmp.eq.s32.totalorder %s17, 1
    %p108 = por %p106, %p107
    %p110 = scmp.ne.s32.totalorder %s93, %s109
    %p111 = scmp.eq.s32.totalorder %s17, 0
    %p112 = por %p110, %p111
    %s113 = ssub.s32 %s11, %s18
    %p114 = scmp.eq.s32.totalorder %s113, 0
    %s116 = sadd.s32 %s115, 1
    %s117 = scalar_select %p114, %s115, %s116
    %p120 = pneg %p114
    %p121 = scmp.eq.s32.totalorder %s11, 1
    %p122 = por %p120, %p121
    %p123 = scmp.ne.s32.totalorder %s115, %s118
    %p124 = scmp.eq.s32.totalorder %s11, 0
    %p125 = por %p123, %p124
    %p126 = scmp.ne.s32.totalorder %s115, %s118
    %p127 = scmp.eq.s32.totalorder %s16, 1
    %p128 = por %p126, %p127
    %p129 = scmp.ne.s32.totalorder %s118, %s119
    %p130 = scmp.eq.s32.totalorder %s16, 0
    %p131 = por %p129, %p130
    %p132 = scmp.ne.s32.totalorder %s118, %s119
    %p133 = scmp.eq.s32.totalorder %s17, 1
    %p134 = por %p132, %p133
    %p136 = scmp.ne.s32.totalorder %s119, %s135
    %p137 = scmp.eq.s32.totalorder %s17, 0
    %p138 = por %p136, %p137
    %p139 = scmp.le.s32.totalorder 1, %s11
    %p140 = scmp.lt.s32.totalorder %s11, 3
    %p141 = pnand %p139, %p140
    %p142 = pneg %p141
    // Predicated region
    $region9: #{bottleneck_forward.6} parent=5 // pred_check
      _
    $region10: #{bottleneck_forward.6} parent=5 // pred_check_branch
      %144 = sbr.rel (%p141) target = $region12
    $region11: #{bottleneck_forward.6} parent=5 // pred_region
      %s145 = ssub.s32 %s11, 1
      // Predicated region
      $region13: #{bottleneck_forward.6} parent=11 // pred_check
        %p146 = pneg %p58
      $region14: #{bottleneck_forward.6} parent=11 // pred_check_branch
        %148 = sbr.rel (%p146) target = $region16
      $region15: #{bottleneck_forward.6} parent=11 // pred_region
        _
      $region16: #{bottleneck_forward.6} parent=11 // pred_fallthru
        _
      // Predicated region
      $region17: #{bottleneck_forward.6} parent=11 // pred_check
        %p149 = pneg %p79
      $region18: #{bottleneck_forward.6} parent=11 // pred_check_branch
        %151 = sbr.rel (%p149) target = $region20
      $region19: #{bottleneck_forward.6} parent=11 // pred_region
        _
      $region20: #{bottleneck_forward.6} parent=11 // pred_fallthru
        _
    $region12: #{bottleneck_forward.6} parent=5 // pred_fallthru
      _
    %p152 = scmp.lt.s32.totalorder %s11, 2
    // Predicated region
    $region21: #{bottleneck_forward.6} parent=5 // pred_check
      %p153 = pneg %p152
    $region22: #{bottleneck_forward.6} parent=5 // pred_check_branch
      %155 = sbr.rel (%p153) target = $region24
    $region23: #{bottleneck_forward.6} parent=5 // pred_region
      // Predicated region
      $region25: #{bottleneck_forward.6} parent=23 // pred_check
        %p156 = pneg %p31
      $region26: #{bottleneck_forward.6} parent=23 // pred_check_branch
        %158 = sbr.rel (%p156) target = $region28
      $region27: #{bottleneck_forward.6} parent=23 // pred_region
        %s159 = smul.u32 32, %s11
        %p160 = scmp.lt.s32.totalorder %s159, 63
        %s161 = scalar_select %p160, %s159, 63
        %s162 = smul.addr %s161, 4
        %s163 = scalar_lea.vmem %s0, %s162
        %s164 = smul.u32 32, %s11
      $region28: #{bottleneck_forward.6} parent=23 // pred_fallthru
        _
    $region24: #{bottleneck_forward.6} parent=5 // pred_fallthru
      _
    %p165 = scmp.le.s32.totalorder 1, %s11
    %p166 = scmp.lt.s32.totalorder %s11, 3
    %p167 = pnand %p165, %p166
    %p168 = pneg %p167
    // Predicated region
    $region29: #{bottleneck_forward.6} parent=5 // pred_check
      _
    $region30: #{bottleneck_forward.6} parent=5 // pred_check_branch
      %170 = sbr.rel (%p167) target = $region32
    $region31: #{bottleneck_forward.6} parent=5 // pred_region
      %s171 = ssub.s32 %s11, 1
      %s172 = smul.u32 32, %s16
      %p173 = scmp.lt.s32.totalorder %s172, 63
      %s174 = scalar_select %p173, %s172, 63
      %s175 = smul.addr %s174, 4
      %s176 = scalar_lea.vmem %s0, %s175
      %p177 = pneg %p37
      %p178 = pneg %p34
      %p179 = pneg %p58
      %p180 = pneg %p55
      %p181 = pneg %p79
      %p182 = pneg %p76
      %p183 = pneg %p105
      %p184 = pneg %p102
      %s185 = smul.u32 32, %s16
      %p186 = scmp.lt.s32.totalorder %s185, 63
      %s187 = scalar_select %p186, %s185, 63
      %s188 = smul.addr %s187, 4
      %s189 = scalar_lea.vmem %s3, %s188
      %p190 = pneg %p131
      %p191 = pneg %p128
      %p192 = scmp.lt.s32.totalorder %s16, 1
      %s193 = scalar_select %p192, %s16, 1
      %s194 = smul.addr %s193, 2
      %s195 = scalar_lea.vmem %s4, %s194
      %s196 = smul.u32 32, %s16
      %p197 = scmp.lt.s32.totalorder %s196, 63
      %s198 = scalar_select %p197, %s196, 63
      %s199 = smul.addr %s198, 4
      %s200 = scalar_lea.vmem %s0, %s199
      %s201 = smul.u32 32, %s16
      %s202 = smul.u32 32, %s16
      %p203 = scmp.lt.s32.totalorder %s202, 63
      %s204 = scalar_select %p203, %s202, 63
      %s205 = smul.addr %s204, 4
      %s206 = scalar_lea.vmem %s3, %s205
      %s207 = smul.u32 32, %s16
      %p208 = scmp.lt.s32.totalorder %s16, 1
      %s209 = scalar_select %p208, %s16, 1
      %s210 = smul.addr %s209, 2
      %s211 = scalar_lea.vmem %s4, %s210
      %v213 = vld [vmem:[%s1] sm:$0x3]
      %v214 = vld [vmem:[%s200] sm:$0xf]
      %v215 = vld [vmem:[%s200 + $0x4] sm:$0xf]
      %v216 = vld [vmem:[%s200 + $0x8] sm:$0xf]
      %v217 = vld [vmem:[%s200 + $0xc] sm:$0xf]
      %v218 = vld [vmem:[%s200 + $0x10] sm:$0xf]
      %v219 = vld [vmem:[%s200 + $0x14] sm:$0xf]
      %v220 = vld [vmem:[%s200 + $0x18] sm:$0xf]
      %v221 = vld [vmem:[%s200 + $0x1c] sm:$0xf]
      %v222 = vld [vmem:[%s200 + $0x20] sm:$0xf]
      %v223 = vld [vmem:[%s200 + $0x24] sm:$0xf]
      %v224 = vld [vmem:[%s200 + $0x28] sm:$0xf]
      %v225 = vld [vmem:[%s200 + $0x2c] sm:$0xf]
      %v226 = vld [vmem:[%s200 + $0x30] sm:$0xf]
      %v227 = vld [vmem:[%s200 + $0x34] sm:$0xf]
      %v228 = vld [vmem:[%s200 + $0x38] sm:$0xf]
      %v229 = vld [vmem:[%s200 + $0x3c] sm:$0xf]
      %v230 = vld [vmem:[%s200 + $0x40] sm:$0xf]
      %v231 = vld [vmem:[%s200 + $0x44] sm:$0xf]
      %v232 = vld [vmem:[%s200 + $0x48] sm:$0xf]
      %v233 = vld [vmem:[%s200 + $0x4c] sm:$0xf]
      %v234 = vld [vmem:[%s200 + $0x50] sm:$0xf]
      %v235 = vld [vmem:[%s200 + $0x54] sm:$0xf]
      %v236 = vld [vmem:[%s200 + $0x58] sm:$0xf]
      %v237 = vld [vmem:[%s200 + $0x5c] sm:$0xf]
      %v238 = vld [vmem:[%s200 + $0x60] sm:$0xf]
      %v239 = vld [vmem:[%s200 + $0x64] sm:$0xf]
      %v240 = vld [vmem:[%s200 + $0x68] sm:$0xf]
      %v241 = vld [vmem:[%s200 + $0x6c] sm:$0xf]
      %v242 = vld [vmem:[%s200 + $0x70] sm:$0xf]
      %v243 = vld [vmem:[%s200 + $0x74] sm:$0xf]
      %v244 = vld [vmem:[%s200 + $0x78] sm:$0xf]
      %v245 = vld [vmem:[%s200 + $0x7c] sm:$0xf]
      %v246 = vunpack.c.l.bf16 %v214
      %v247 = vunpack.c.l.bf16 %v215
      %v248 = vunpack.c.l.bf16 %v216
      %v249 = vunpack.c.l.bf16 %v217
      %v250 = vunpack.c.l.bf16 %v218
      %v251 = vunpack.c.l.bf16 %v219
      %v252 = vunpack.c.l.bf16 %v220
      %v253 = vunpack.c.l.bf16 %v221
      %v254 = vunpack.c.l.bf16 %v222
      %v255 = vunpack.c.l.bf16 %v223
      %v256 = vunpack.c.l.bf16 %v224
      %v257 = vunpack.c.l.bf16 %v225
      %v258 = vunpack.c.l.bf16 %v226
      %v259 = vunpack.c.l.bf16 %v227
      %v260 = vunpack.c.l.bf16 %v228
      %v261 = vunpack.c.l.bf16 %v229
      %v262 = vunpack.c.l.bf16 %v230
      %v263 = vunpack.c.l.bf16 %v231
      %v264 = vunpack.c.l.bf16 %v232
      %v265 = vunpack.c.l.bf16 %v233
      %v266 = vunpack.c.l.bf16 %v234
      %v267 = vunpack.c.l.bf16 %v235
      %v268 = vunpack.c.l.bf16 %v236
      %v269 = vunpack.c.l.bf16 %v237
      %v270 = vunpack.c.l.bf16 %v238
      %v271 = vunpack.c.l.bf16 %v239
      %v272 = vunpack.c.l.bf16 %v240
      %v273 = vunpack.c.l.bf16 %v241
      %v274 = vunpack.c.l.bf16 %v242
      %v275 = vunpack.c.l.bf16 %v243
      %v276 = vunpack.c.l.bf16 %v244
      %v277 = vunpack.c.l.bf16 %v245
      %v278 = vperm.slane %v213, 0
      %v279 = vmul.f32 %v246, %v278
      %v280 = vmul.f32 %v247, %v278
      %v281 = vmul.f32 %v248, %v278
      %v282 = vmul.f32 %v249, %v278
      %v283 = vmul.f32 %v250, %v278
      %v284 = vmul.f32 %v251, %v278
      %v285 = vmul.f32 %v252, %v278
      %v286 = vmul.f32 %v253, %v278
      %v287 = vmul.f32 %v254, %v278
      %v288 = vmul.f32 %v255, %v278
      %v289 = vmul.f32 %v256, %v278
      %v290 = vmul.f32 %v257, %v278
      %v291 = vmul.f32 %v258, %v278
      %v292 = vmul.f32 %v259, %v278
      %v293 = vmul.f32 %v260, %v278
      %v294 = vmul.f32 %v261, %v278
      %v295 = vmul.f32 %v262, %v278
      %v296 = vmul.f32 %v263, %v278
      %v297 = vmul.f32 %v264, %v278
      %v298 = vmul.f32 %v265, %v278
      %v299 = vmul.f32 %v266, %v278
      %v300 = vmul.f32 %v267, %v278
      %v301 = vmul.f32 %v268, %v278
      %v302 = vmul.f32 %v269, %v278
      %v303 = vmul.f32 %v270, %v278
      %v304 = vmul.f32 %v271, %v278
      %v305 = vmul.f32 %v272, %v278
      %v306 = vmul.f32 %v273, %v278
      %v307 = vmul.f32 %v274, %v278
      %v308 = vmul.f32 %v275, %v278
      %v309 = vmul.f32 %v276, %v278
      %v310 = vmul.f32 %v277, %v278
      %v311 = vperm.slane %v213, 1
      %v312 = vadd.f32 %v279, %v311
      %v313 = vadd.f32 %v280, %v311
      %v314 = vadd.f32 %v281, %v311
      %v315 = vadd.f32 %v282, %v311
      %v316 = vadd.f32 %v283, %v311
      %v317 = vadd.f32 %v284, %v311
      %v318 = vadd.f32 %v285, %v311
      %v319 = vadd.f32 %v286, %v311
      %v320 = vadd.f32 %v287, %v311
      %v321 = vadd.f32 %v288, %v311
      %v322 = vadd.f32 %v289, %v311
      %v323 = vadd.f32 %v290, %v311
      %v324 = vadd.f32 %v291, %v311
      %v325 = vadd.f32 %v292, %v311
      %v326 = vadd.f32 %v293, %v311
      %v327 = vadd.f32 %v294, %v311
      %v328 = vadd.f32 %v295, %v311
      %v329 = vadd.f32 %v296, %v311
      %v330 = vadd.f32 %v297, %v311
      %v331 = vadd.f32 %v298, %v311
      %v332 = vadd.f32 %v299, %v311
      %v333 = vadd.f32 %v300, %v311
      %v334 = vadd.f32 %v301, %v311
      %v335 = vadd.f32 %v302, %v311
      %v336 = vadd.f32 %v303, %v311
      %v337 = vadd.f32 %v304, %v311
      %v338 = vadd.f32 %v305, %v311
      %v339 = vadd.f32 %v306, %v311
      %v340 = vadd.f32 %v307, %v311
      %v341 = vadd.f32 %v308, %v311
      %v342 = vadd.f32 %v309, %v311
      %v343 = vadd.f32 %v310, %v311
      %v344 = vmax.f32 %v312, 0.0
      %v345 = vmax.f32 %v313, 0.0
      %v346 = vmax.f32 %v314, 0.0
      %v347 = vmax.f32 %v315, 0.0
      %v348 = vmax.f32 %v316, 0.0
      %v349 = vmax.f32 %v317, 0.0
      %v350 = vmax.f32 %v318, 0.0
      %v351 = vmax.f32 %v319, 0.0
      %v352 = vmax.f32 %v320, 0.0
      %v353 = vmax.f32 %v321, 0.0
      %v354 = vmax.f32 %v322, 0.0
      %v355 = vmax.f32 %v323, 0.0
      %v356 = vmax.f32 %v324, 0.0
      %v357 = vmax.f32 %v325, 0.0
      %v358 = vmax.f32 %v326, 0.0
      %v359 = vmax.f32 %v327, 0.0
      %v360 = vmax.f32 %v328, 0.0
      %v361 = vmax.f32 %v329, 0.0
      %v362 = vmax.f32 %v330, 0.0
      %v363 = vmax.f32 %v331, 0.0
      %v364 = vmax.f32 %v332, 0.0
      %v365 = vmax.f32 %v333, 0.0
      %v366 = vmax.f32 %v334, 0.0
      %v367 = vmax.f32 %v335, 0.0
      %v368 = vmax.f32 %v336, 0.0
      %v369 = vmax.f32 %v337, 0.0
      %v370 = vmax.f32 %v338, 0.0
      %v371 = vmax.f32 %v339, 0.0
      %v372 = vmax.f32 %v340, 0.0
      %v373 = vmax.f32 %v341, 0.0
      %v374 = vmax.f32 %v342, 0.0
      %v375 = vmax.f32 %v343, 0.0
      %v376 = vpack.c.bf16 %v345, %v344
      %v377 = vpack.c.bf16 %v347, %v346
      %v378 = vpack.c.bf16 %v349, %v348
      %v379 = vpack.c.bf16 %v351, %v350
      %v380 = vpack.c.bf16 %v353, %v352
      %v381 = vpack.c.bf16 %v355, %v354
      %v382 = vpack.c.bf16 %v357, %v356
      %v383 = vpack.c.bf16 %v359, %v358
      %v384 = vpack.c.bf16 %v361, %v360
      %v385 = vpack.c.bf16 %v363, %v362
      %v386 = vpack.c.bf16 %v365, %v364
      %v387 = vpack.c.bf16 %v367, %v366
      %v388 = vpack.c.bf16 %v369, %v368
      %v389 = vpack.c.bf16 %v371, %v370
      %v390 = vpack.c.bf16 %v373, %v372
      %v391 = vpack.c.bf16 %v375, %v374
      %v392 = vld [vmem:[%s2] sm:$0x3]
      %vm393 = vcmask 31744
      %v395 = vsel %vm393, %v376, 0
      %v398 = vsel %vm393, %v377, 0
      %v401 = vsel %vm393, %v378, 0
      %v404 = vsel %vm393, %v379, 0
      %v407 = vsel %vm393, %v380, 0
      %v410 = vsel %vm393, %v381, 0
      %v413 = vsel %vm393, %v382, 0
      %v416 = vsel %vm393, %v383, 0
      %v419 = vsel %vm393, %v384, 0
      %v422 = vsel %vm393, %v385, 0
      %v425 = vsel %vm393, %v386, 0
      %v428 = vsel %vm393, %v387, 0
      %v431 = vsel %vm393, %v388, 0
      %v434 = vsel %vm393, %v389, 0
      %v437 = vsel %vm393, %v390, 0
      %v440 = vsel %vm393, %v391, 0
      %vm442 = vcmask 1041408
      %v444 = vsel %vm442, %v392, 0
      %446 = vmatpush.bf16.msra.mxu0 0
      %447 = vmatpush.bf16.msra.mxu0 0
      %448 = vmatpush.bf16.msra.mxu0 0
      %449 = vmatpush.bf16.msra.mxu0 0
      %450 = vmatpush.bf16.msra.mxu0 0
      %451 = vmatpush.bf16.msra.mxu0 0
      %452 = vmatpush.bf16.msra.mxu0 0
      %453 = vmatpush.bf16.msra.mxu0 %v444
      %454 = vmatmul.bf16.gmra.mxu0 %v395
      %v455 = vpop.f32.mrf.mxu0
      %v456 = vadd.f32 0.0, %v455
      %v457 = vpop.f32.mrf.mxu0
      %v458 = vadd.f32 0.0, %v457
      %459 = vmatmul.bf16.gmra.mxu0 %v398
      %v460 = vpop.f32.mrf.mxu0
      %v461 = vadd.f32 0.0, %v460
      %v462 = vpop.f32.mrf.mxu0
      %v463 = vadd.f32 0.0, %v462
      %464 = vmatmul.bf16.gmra.mxu0 %v401
      %v465 = vpop.f32.mrf.mxu0
      %v466 = vadd.f32 0.0, %v465
      %v467 = vpop.f32.mrf.mxu0
      %v468 = vadd.f32 0.0, %v467
      %469 = vmatmul.bf16.gmra.mxu0 %v404
      %v470 = vpop.f32.mrf.mxu0
      %v471 = vadd.f32 0.0, %v470
      %v472 = vpop.f32.mrf.mxu0
      %v473 = vadd.f32 0.0, %v472
      %474 = vmatmul.bf16.gmra.mxu0 %v407
      %v475 = vpop.f32.mrf.mxu0
      %v476 = vadd.f32 0.0, %v475
      %v477 = vpop.f32.mrf.mxu0
      %v478 = vadd.f32 0.0, %v477
      %479 = vmatmul.bf16.gmra.mxu0 %v410
      %v480 = vpop.f32.mrf.mxu0
      %v481 = vadd.f32 0.0, %v480
      %v482 = vpop.f32.mrf.mxu0
      %v483 = vadd.f32 0.0, %v482
      %484 = vmatmul.bf16.gmra.mxu0 %v413
      %v485 = vpop.f32.mrf.mxu0
      %v486 = vadd.f32 0.0, %v485
      %v487 = vpop.f32.mrf.mxu0
      %v488 = vadd.f32 0.0, %v487
      %489 = vmatmul.bf16.gmra.mxu0 %v416
      %v490 = vpop.f32.mrf.mxu0
      %v491 = vadd.f32 0.0, %v490
      %v492 = vpop.f32.mrf.mxu0
      %v493 = vadd.f32 0.0, %v492
      %494 = vmatmul.bf16.gmra.mxu0 %v419
      %v495 = vpop.f32.mrf.mxu0
      %v496 = vadd.f32 0.0, %v495
      %v497 = vpop.f32.mrf.mxu0
      %v498 = vadd.f32 0.0, %v497
      %499 = vmatmul.bf16.gmra.mxu0 %v422
      %v500 = vpop.f32.mrf.mxu0
      %v501 = vadd.f32 0.0, %v500
      %v502 = vpop.f32.mrf.mxu0
      %v503 = vadd.f32 0.0, %v502
      %504 = vmatmul.bf16.gmra.mxu0 %v425
      %v505 = vpop.f32.mrf.mxu0
      %v506 = vadd.f32 0.0, %v505
      %v507 = vpop.f32.mrf.mxu0
      %v508 = vadd.f32 0.0, %v507
      %509 = vmatmul.bf16.gmra.mxu0 %v428
      %v510 = vpop.f32.mrf.mxu0
      %v511 = vadd.f32 0.0, %v510
      %v512 = vpop.f32.mrf.mxu0
      %v513 = vadd.f32 0.0, %v512
      %514 = vmatmul.bf16.gmra.mxu0 %v431
      %v515 = vpop.f32.mrf.mxu0
      %v516 = vadd.f32 0.0, %v515
      %v517 = vpop.f32.mrf.mxu0
      %v518 = vadd.f32 0.0, %v517
      %519 = vmatmul.bf16.gmra.mxu0 %v434
      %v520 = vpop.f32.mrf.mxu0
      %v521 = vadd.f32 0.0, %v520
      %v522 = vpop.f32.mrf.mxu0
      %v523 = vadd.f32 0.0, %v522
      %524 = vmatmul.bf16.gmra.mxu0 %v437
      %v525 = vpop.f32.mrf.mxu0
      %v526 = vadd.f32 0.0, %v525
      %v527 = vpop.f32.mrf.mxu0
      %v528 = vadd.f32 0.0, %v527
      %529 = vmatmul.bf16.gmra.mxu0 %v440
      %v530 = vpop.f32.mrf.mxu0
      %v531 = vadd.f32 0.0, %v530
      %v532 = vpop.f32.mrf.mxu0
      %v533 = vadd.f32 0.0, %v532
      %534 = vdwg.mxu0
      %v535 = vpack.c.bf16 %v456, %v456
      %v536 = vpack.c.bf16 %v458, %v458
      %v537 = vpack.c.bf16 %v461, %v461
      %v538 = vpack.c.bf16 %v463, %v463
      %v539 = vpack.c.bf16 %v466, %v466
      %v540 = vpack.c.bf16 %v468, %v468
      %v541 = vpack.c.bf16 %v471, %v471
      %v542 = vpack.c.bf16 %v473, %v473
      %v543 = vpack.c.bf16 %v476, %v476
      %v544 = vpack.c.bf16 %v478, %v478
      %v545 = vpack.c.bf16 %v481, %v481
      %v546 = vpack.c.bf16 %v483, %v483
      %v547 = vpack.c.bf16 %v486, %v486
      %v548 = vpack.c.bf16 %v488, %v488
      %v549 = vpack.c.bf16 %v491, %v491
      %v550 = vpack.c.bf16 %v493, %v493
      %v551 = vpack.c.bf16 %v496, %v496
      %v552 = vpack.c.bf16 %v498, %v498
      %v553 = vpack.c.bf16 %v501, %v501
      %v554 = vpack.c.bf16 %v503, %v503
      %v555 = vpack.c.bf16 %v506, %v506
      %v556 = vpack.c.bf16 %v508, %v508
      %v557 = vpack.c.bf16 %v511, %v511
      %v558 = vpack.c.bf16 %v513, %v513
      %v559 = vpack.c.bf16 %v516, %v516
      %v560 = vpack.c.bf16 %v518, %v518
      %v561 = vpack.c.bf16 %v521, %v521
      %v562 = vpack.c.bf16 %v523, %v523
      %v563 = vpack.c.bf16 %v526, %v526
      %v564 = vpack.c.bf16 %v528, %v528
      %v565 = vpack.c.bf16 %v531, %v531
      %v566 = vpack.c.bf16 %v533, %v533
      %vm567 = vcmask 125952
      %568 = vst.msk [vmem:[%s206] sm:$0xf] %vm567, %v535
      %569 = vst.msk [vmem:[%s206 + $0x4] sm:$0xf] %vm567, %v536
      %570 = vst.msk [vmem:[%s206 + $0x8] sm:$0xf] %vm567, %v537
      %571 = vst.msk [vmem:[%s206 + $0xc] sm:$0xf] %vm567, %v538
      %572 = vst.msk [vmem:[%s206 + $0x10] sm:$0xf] %vm567, %v539
      %573 = vst.msk [vmem:[%s206 + $0x14] sm:$0xf] %vm567, %v540
      %574 = vst.msk [vmem:[%s206 + $0x18] sm:$0xf] %vm567, %v541
      %575 = vst.msk [vmem:[%s206 + $0x1c] sm:$0xf] %vm567, %v542
      %576 = vst.msk [vmem:[%s206 + $0x20] sm:$0xf] %vm567, %v543
      %577 = vst.msk [vmem:[%s206 + $0x24] sm:$0xf] %vm567, %v544
      %578 = vst.msk [vmem:[%s206 + $0x28] sm:$0xf] %vm567, %v545
      %579 = vst.msk [vmem:[%s206 + $0x2c] sm:$0xf] %vm567, %v546
      %580 = vst.msk [vmem:[%s206 + $0x30] sm:$0xf] %vm567, %v547
      %581 = vst.msk [vmem:[%s206 + $0x34] sm:$0xf] %vm567, %v548
      %582 = vst.msk [vmem:[%s206 + $0x38] sm:$0xf] %vm567, %v549
      %583 = vst.msk [vmem:[%s206 + $0x3c] sm:$0xf] %vm567, %v550
      %584 = vst.msk [vmem:[%s206 + $0x40] sm:$0xf] %vm567, %v551
      %585 = vst.msk [vmem:[%s206 + $0x44] sm:$0xf] %vm567, %v552
      %586 = vst.msk [vmem:[%s206 + $0x48] sm:$0xf] %vm567, %v553
      %587 = vst.msk [vmem:[%s206 + $0x4c] sm:$0xf] %vm567, %v554
      %588 = vst.msk [vmem:[%s206 + $0x50] sm:$0xf] %vm567, %v555
      %589 = vst.msk [vmem:[%s206 + $0x54] sm:$0xf] %vm567, %v556
      %590 = vst.msk [vmem:[%s206 + $0x58] sm:$0xf] %vm567, %v557
      %591 = vst.msk [vmem:[%s206 + $0x5c] sm:$0xf] %vm567, %v558
      %592 = vst.msk [vmem:[%s206 + $0x60] sm:$0xf] %vm567, %v559
      %593 = vst.msk [vmem:[%s206 + $0x64] sm:$0xf] %vm567, %v560
      %594 = vst.msk [vmem:[%s206 + $0x68] sm:$0xf] %vm567, %v561
      %595 = vst.msk [vmem:[%s206 + $0x6c] sm:$0xf] %vm567, %v562
      %596 = vst.msk [vmem:[%s206 + $0x70] sm:$0xf] %vm567, %v563
      %597 = vst.msk [vmem:[%s206 + $0x74] sm:$0xf] %vm567, %v564
      %598 = vst.msk [vmem:[%s206 + $0x78] sm:$0xf] %vm567, %v565
      %599 = vst.msk [vmem:[%s206 + $0x7c] sm:$0xf] %vm567, %v566
      %vm600 = vcmask 130048
      %v601 = vsel %vm600, %v456, 0.0
      %v602 = vsel %vm600, %v458, 0.0
      %v603 = vadd.f32 %v601, %v602
      %v604 = vsel %vm600, %v461, 0.0
      %v605 = vadd.f32 %v603, %v604
      %v606 = vsel %vm600, %v463, 0.0
      %v607 = vadd.f32 %v605, %v606
      %v608 = vsel %vm600, %v466, 0.0
      %v609 = vadd.f32 %v607, %v608
      %v610 = vsel %vm600, %v468, 0.0
      %v611 = vadd.f32 %v609, %v610
      %v612 = vsel %vm600, %v471, 0.0
      %v613 = vadd.f32 %v611, %v612
      %v614 = vsel %vm600, %v473, 0.0
      %v615 = vadd.f32 %v613, %v614
      %v616 = vsel %vm600, %v476, 0.0
      %v617 = vadd.f32 %v615, %v616
      %v618 = vsel %vm600, %v478, 0.0
      %v619 = vadd.f32 %v617, %v618
      %v620 = vsel %vm600, %v481, 0.0
      %v621 = vadd.f32 %v619, %v620
      %v622 = vsel %vm600, %v483, 0.0
      %v623 = vadd.f32 %v621, %v622
      %v624 = vsel %vm600, %v486, 0.0
      %v625 = vadd.f32 %v623, %v624
      %v626 = vsel %vm600, %v488, 0.0
      %v627 = vadd.f32 %v625, %v626
      %v628 = vsel %vm600, %v491, 0.0
      %v629 = vadd.f32 %v627, %v628
      %v630 = vsel %vm600, %v493, 0.0
      %v631 = vadd.f32 %v629, %v630
      %v632 = vsel %vm600, %v496, 0.0
      %v633 = vadd.f32 %v631, %v632
      %v634 = vsel %vm600, %v498, 0.0
      %v635 = vadd.f32 %v633, %v634
      %v636 = vsel %vm600, %v501, 0.0
      %v637 = vadd.f32 %v635, %v636
      %v638 = vsel %vm600, %v503, 0.0
      %v639 = vadd.f32 %v637, %v638
      %v640 = vsel %vm600, %v506, 0.0
      %v641 = vadd.f32 %v639, %v640
      %v642 = vsel %vm600, %v508, 0.0
      %v643 = vadd.f32 %v641, %v642
      %v644 = vsel %vm600, %v511, 0.0
      %v645 = vadd.f32 %v643, %v644
      %v646 = vsel %vm600, %v513, 0.0
      %v647 = vadd.f32 %v645, %v646
      %v648 = vsel %vm600, %v516, 0.0
      %v649 = vadd.f32 %v647, %v648
      %v650 = vsel %vm600, %v518, 0.0
      %v651 = vadd.f32 %v649, %v650
      %v652 = vsel %vm600, %v521, 0.0
      %v653 = vadd.f32 %v651, %v652
      %v654 = vsel %vm600, %v523, 0.0
      %v655 = vadd.f32 %v653, %v654
      %v656 = vsel %vm600, %v526, 0.0
      %v657 = vadd.f32 %v655, %v656
      %v658 = vsel %vm600, %v528, 0.0
      %v659 = vadd.f32 %v657, %v658
      %v660 = vsel %vm600, %v531, 0.0
      %v661 = vadd.f32 %v659, %v660
      %v662 = vsel %vm600, %v533, 0.0
      %v663 = vadd.f32 %v661, %v662
      %v664 = vrot.slane %v663, 4
      %v665 = vadd.f32 %v663, %v664
      %v666 = vrot.slane %v665, 2
      %v667 = vadd.f32 %v665, %v666
      %v668 = vrot.slane %v667, 1
      %v669 = vadd.f32 %v667, %v668
      %v670 = vmul.f32 %v456, %v456
      %v671 = vmul.f32 %v458, %v458
      %v672 = vmul.f32 %v461, %v461
      %v673 = vmul.f32 %v463, %v463
      %v674 = vmul.f32 %v466, %v466
      %v675 = vmul.f32 %v468, %v468
      %v676 = vmul.f32 %v471, %v471
      %v677 = vmul.f32 %v473, %v473
      %v678 = vmul.f32 %v476, %v476
      %v679 = vmul.f32 %v478, %v478
      %v680 = vmul.f32 %v481, %v481
      %v681 = vmul.f32 %v483, %v483
      %v682 = vmul.f32 %v486, %v486
      %v683 = vmul.f32 %v488, %v488
      %v684 = vmul.f32 %v491, %v491
      %v685 = vmul.f32 %v493, %v493
      %v686 = vmul.f32 %v496, %v496
      %v687 = vmul.f32 %v498, %v498
      %v688 = vmul.f32 %v501, %v501
      %v689 = vmul.f32 %v503, %v503
      %v690 = vmul.f32 %v506, %v506
      %v691 = vmul.f32 %v508, %v508
      %v692 = vmul.f32 %v511, %v511
      %v693 = vmul.f32 %v513, %v513
      %v694 = vmul.f32 %v516, %v516
      %v695 = vmul.f32 %v518, %v518
      %v696 = vmul.f32 %v521, %v521
      %v697 = vmul.f32 %v523, %v523
      %v698 = vmul.f32 %v526, %v526
      %v699 = vmul.f32 %v528, %v528
      %v700 = vmul.f32 %v531, %v531
      %v701 = vmul.f32 %v533, %v533
      %v702 = vsel %vm600, %v670, 0.0
      %v703 = vsel %vm600, %v671, 0.0
      %v704 = vadd.f32 %v702, %v703
      %v705 = vsel %vm600, %v672, 0.0
      %v706 = vadd.f32 %v704, %v705
      %v707 = vsel %vm600, %v673, 0.0
      %v708 = vadd.f32 %v706, %v707
      %v709 = vsel %vm600, %v674, 0.0
      %v710 = vadd.f32 %v708, %v709
      %v711 = vsel %vm600, %v675, 0.0
      %v712 = vadd.f32 %v710, %v711
      %v713 = vsel %vm600, %v676, 0.0
      %v714 = vadd.f32 %v712, %v713
      %v715 = vsel %vm600, %v677, 0.0
      %v716 = vadd.f32 %v714, %v715
      %v717 = vsel %vm600, %v678, 0.0
      %v718 = vadd.f32 %v716, %v717
      %v719 = vsel %vm600, %v679, 0.0
      %v720 = vadd.f32 %v718, %v719
      %v721 = vsel %vm600, %v680, 0.0
      %v722 = vadd.f32 %v720, %v721
      %v723 = vsel %vm600, %v681, 0.0
      %v724 = vadd.f32 %v722, %v723
      %v725 = vsel %vm600, %v682, 0.0
      %v726 = vadd.f32 %v724, %v725
      %v727 = vsel %vm600, %v683, 0.0
      %v728 = vadd.f32 %v726, %v727
      %v729 = vsel %vm600, %v684, 0.0
      %v730 = vadd.f32 %v728, %v729
      %v731 = vsel %vm600, %v685, 0.0
      %v732 = vadd.f32 %v730, %v731
      %v733 = vsel %vm600, %v686, 0.0
      %v734 = vadd.f32 %v732, %v733
      %v735 = vsel %vm600, %v687, 0.0
      %v736 = vadd.f32 %v734, %v735
      %v737 = vsel %vm600, %v688, 0.0
      %v738 = vadd.f32 %v736, %v737
      %v739 = vsel %vm600, %v689, 0.0
      %v740 = vadd.f32 %v738, %v739
      %v741 = vsel %vm600, %v690, 0.0
      %v742 = vadd.f32 %v740, %v741
      %v743 = vsel %vm600, %v691, 0.0
      %v744 = vadd.f32 %v742, %v743
      %v745 = vsel %vm600, %v692, 0.0
      %v746 = vadd.f32 %v744, %v745
      %v747 = vsel %vm600, %v693, 0.0
      %v748 = vadd.f32 %v746, %v747
      %v749 = vsel %vm600, %v694, 0.0
      %v750 = vadd.f32 %v748, %v749
      %v751 = vsel %vm600, %v695, 0.0
      %v752 = vadd.f32 %v750, %v751
      %v753 = vsel %vm600, %v696, 0.0
      %v754 = vadd.f32 %v752, %v753
      %v755 = vsel %vm600, %v697, 0.0
      %v756 = vadd.f32 %v754, %v755
      %v757 = vsel %vm600, %v698, 0.0
      %v758 = vadd.f32 %v756, %v757
      %v759 = vsel %vm600, %v699, 0.0
      %v760 = vadd.f32 %v758, %v759
      %v761 = vsel %vm600, %v700, 0.0
      %v762 = vadd.f32 %v760, %v761
      %v763 = vsel %vm600, %v701, 0.0
      %v764 = vadd.f32 %v762, %v763
      %v765 = vrot.slane %v764, 4
      %v766 = vadd.f32 %v764, %v765
      %v767 = vrot.slane %v766, 2
      %v768 = vadd.f32 %v766, %v767
      %v769 = vrot.slane %v768, 1
      %v770 = vadd.f32 %v768, %v769
      %vm771 = vcmask 1040384
      %v772 = vsel %vm771, %v669, %v770
      %vm773 = vcmask 123904
      %774 = vst.msk [vmem:[%s211] sm:$0x3] %vm773, %v772
      %s775 = smul.u32 32, %s16
      %p776 = scmp.lt.s32.totalorder %s775, 63
      %s777 = scalar_select %p776, %s775, 63
      %s778 = smul.addr %s777, 4
      %s779 = scalar_lea.vmem %s3, %s778
      %p780 = scmp.lt.s32.totalorder %s16, 1
      %s781 = scalar_select %p780, %s16, 1
      %s782 = smul.addr %s781, 2
      %s783 = scalar_lea.vmem %s4, %s782
      // Predicated region
      $region33: #{bottleneck_forward.6} parent=31 // pred_check
        %p784 = pneg %p102
      $region34: #{bottleneck_forward.6} parent=31 // pred_check_branch
        %786 = sbr.rel (%p784) target = $region36
      $region35: #{bottleneck_forward.6} parent=31 // pred_region
        %s787 = smul.u32 32, %s16
      $region36: #{bottleneck_forward.6} parent=31 // pred_fallthru
        _
      // Predicated region
      $region37: #{bottleneck_forward.6} parent=31 // pred_check
        %p788 = pneg %p128
      $region38: #{bottleneck_forward.6} parent=31 // pred_check_branch
        %790 = sbr.rel (%p788) target = $region40
      $region39: #{bottleneck_forward.6} parent=31 // pred_region
        _
      $region40: #{bottleneck_forward.6} parent=31 // pred_fallthru
        _
    $region32: #{bottleneck_forward.6} parent=5 // pred_fallthru
      _
    %p791 = scmp.le.s32.totalorder 2, %s11
    // Predicated region
    $region41: #{bottleneck_forward.6} parent=5 // pred_check
      %p792 = pneg %p791
    $region42: #{bottleneck_forward.6} parent=5 // pred_check_branch
      %794 = sbr.rel (%p792) target = $region44
    $region43: #{bottleneck_forward.6} parent=5 // pred_region
      %s795 = ssub.s32 %s11, 2
      // Predicated region
      $region45: #{bottleneck_forward.6} parent=43 // pred_check
        %p796 = pneg %p108
      $region46: #{bottleneck_forward.6} parent=43 // pred_check_branch
        %798 = sbr.rel (%p796) target = $region48
      $region47: #{bottleneck_forward.6} parent=43 // pred_region
        %s799 = smul.u32 32, %s17
        %p800 = scmp.lt.s32.totalorder %s799, 63
        %s801 = scalar_select %p800, %s799, 63
        %s802 = smul.addr %s801, 4
        %s803 = scalar_lea.vmem %s3, %s802
      $region48: #{bottleneck_forward.6} parent=43 // pred_fallthru
        _
      // Predicated region
      $region49: #{bottleneck_forward.6} parent=43 // pred_check
        %p804 = pneg %p134
      $region50: #{bottleneck_forward.6} parent=43 // pred_check_branch
        %806 = sbr.rel (%p804) target = $region52
      $region51: #{bottleneck_forward.6} parent=43 // pred_region
        %p807 = scmp.lt.s32.totalorder %s17, 1
        %s808 = scalar_select %p807, %s17, 1
        %s809 = smul.addr %s808, 2
        %s810 = scalar_lea.vmem %s4, %s809
      $region52: #{bottleneck_forward.6} parent=43 // pred_fallthru
        _
    $region44: #{bottleneck_forward.6} parent=5 // pred_fallthru
      _
  $region6: #{bottleneck_forward.6} parent=0 // loop_footer
    %s15 = sadd.s32 1, %s11
  $region7: #{bottleneck_forward.6} parent=0 // loop_footer_branch
    %10 = sbr.rel target = $region3
  $region8: #{bottleneck_forward.6} parent=0 // loop_exit
    _

// kernel: bottleneck_forward.4
$region0: #{bottleneck_forward.4}
  #allocation0 [shape = 'u32[]', space=smem, size = 0x4, offset = 0x4, fixed_abs, tag = 'smem constant byte address 0x4 - core index']
  #allocation1 [shape = 'u32[72,128]{1,0:T(1,128)}', space=vmem, size = 0x9000, scoped, tag = 'internal scratch']
  %s0 = inlined_call_operand.vmem [shape: bf16[512,4], index: 0, kind: input, shape index: {}]
  %s1 = inlined_call_operand.vmem [shape: bf16[4,4], index: 1, kind: input, shape index: {}]
  %s2 = inlined_call_operand.vmem [shape: bf16[4,16], index: 2, kind: input, shape index: {}]
  %s3 = inlined_call_operand.vmem [shape: bf16[512,4], index: 3, kind: output, shape index: {0}]
  %s4 = inlined_call_operand.vmem [shape: f32[2,2,4], index: 4, kind: output, shape index: {1}]
  %s5 = inlined_call_operand.vmem [shape: bf16[512,16], index: 5, kind: output, shape index: {2}]
  %s6 = inlined_call_operand.vmem [shape: f32[2,2,16], index: 6, kind: output, shape index: {3}]
  %7 = xla_tuple %s3, %s4, %s5, %s6
  %s8 = sld [smem:[#allocation0]]
  $region69: #{bottleneck_forward.4} parent=0
    _
  %s10 = ssub.s32 1, %s8
  %s11 = scalar_select 0, %s10, %s8
  loop: start=0, step=1, limit=4
  $region2: #{bottleneck_forward.4} parent=0 // loop_pre_header
    _
  $region3: #{bottleneck_forward.4} parent=0 // loop_header
    %s13 = sphi 0, %s17
    %p14 = scmp.ge.s32.totalorder %s13, 4
    %s23 = sphi 0, %s25
    %s26 = sphi 0, %s23
    %s27 = sphi 0, %s26
    %s43 = sphi 0, %s27
    %s47 = sphi 0, %s47
    %s49 = sphi 0, %s47
    %s50 = sphi 0, %s49
    %s64 = sphi 0, %s50
    %s68 = sphi 0, %s68
    %s70 = sphi 0, %s68
    %s71 = sphi 0, %s70
    %s85 = sphi 0, %s71
    %s91 = sphi 0, %s93
    %s94 = sphi 0, %s91
    %s95 = sphi 0, %s94
    %s111 = sphi 0, %s95
    %s117 = sphi 0, %s119
    %s120 = sphi 0, %s117
    %s121 = sphi 0, %s120
    %s137 = sphi 0, %s121
    %s143 = sphi 0, %s145
    %s146 = sphi 0, %s143
    %s147 = sphi 0, %s146
    %s163 = sphi 0, %s147
    %s169 = sphi 0, %s171
    %s172 = sphi 0, %s169
    %s173 = sphi 0, %s172
    %s189 = sphi 0, %s173
  $region4: #{bottleneck_forward.4} parent=0 // loop_header_branch
    %16 = sbr.rel (%p14) target = $region8
  $region5: #{bottleneck_forward.4} parent=0 // loop_body
    %s18 = ssub.s32 %s13, 1
    %s19 = ssub.s32 %s13, 2
    %s20 = sadd.s32 %s13, 1
    %s21 = ssub.s32 %s13, %s20
    %p22 = scmp.eq.s32.totalorder %s21, 0
    %s24 = sadd.s32 %s23, 1
    %s25 = scalar_select %p22, %s23, %s24
    %p28 = pneg %p22
    %p29 = scmp.eq.s32.totalorder %s13, 1
    %p30 = por %p28, %p29
    %p31 = scmp.ne.s32.totalorder %s23, %s26
    %p32 = scmp.eq.s32.totalorder %s13, 0
    %p33 = por %p31, %p32
    %p34 = scmp.ne.s32.totalorder %s23, %s26
    %p35 = scmp.eq.s32.totalorder %s18, 1
    %p36 = por %p34, %p35
    %p37 = scmp.ne.s32.totalorder %s26, %s27
    %p38 = scmp.eq.s32.totalorder %s18, 0
    %p39 = por %p37, %p38
    %p40 = scmp.ne.s32.totalorder %s26, %s27
    %p41 = scmp.eq.s32.totalorder %s19, 1
    %p42 = por %p40, %p41
    %p44 = scmp.ne.s32.totalorder %s27, %s43
    %p45 = scmp.eq.s32.totalorder %s19, 0
    %p46 = por %p44, %p45
    %s48 = sadd.s32 %s47, 1
    %p51 = scmp.eq.s32.totalorder %s13, 1
    %p52 = scmp.ne.s32.totalorder %s47, %s49
    %p53 = scmp.eq.s32.totalorder %s13, 0
    %p54 = por %p52, %p53
    %p55 = scmp.ne.s32.totalorder %s47, %s49
    %p56 = scmp.eq.s32.totalorder %s18, 1
    %p57 = por %p55, %p56
    %p58 = scmp.ne.s32.totalorder %s49, %s50
    %p59 = scmp.eq.s32.totalorder %s18, 0
    %p60 = por %p58, %p59
    %p61 = scmp.ne.s32.totalorder %s49, %s50
    %p62 = scmp.eq.s32.totalorder %s19, 1
    %p63 = por %p61, %p62
    %p65 = scmp.ne.s32.totalorder %s50, %s64
    %p66 = scmp.eq.s32.totalorder %s19, 0
    %p67 = por %p65, %p66
    %s69 = sadd.s32 %s68, 1
    %p72 = scmp.eq.s32.totalorder %s13, 1
    %p73 = scmp.ne.s32.totalorder %s68, %s70
    %p74 = scmp.eq.s32.totalorder %s13, 0
    %p75 = por %p73, %p74
    %p76 = scmp.ne.s32.totalorder %s68, %s70
    %p77 = scmp.eq.s32.totalorder %s18, 1
    %p78 = por %p76, %p77
    %p79 = scmp.ne.s32.totalorder %s70, %s71
    %p80 = scmp.eq.s32.totalorder %s18, 0
    %p81 = por %p79, %p80
    %p82 = scmp.ne.s32.totalorder %s70, %s71
    %p83 = scmp.eq.s32.totalorder %s19, 1
    %p84 = por %p82, %p83
    %p86 = scmp.ne.s32.totalorder %s71, %s85
    %p87 = scmp.eq.s32.totalorder %s19, 0
    %p88 = por %p86, %p87
    %s89 = ssub.s32 %s13, %s20
    %p90 = scmp.eq.s32.totalorder %s89, 0
    %s92 = sadd.s32 %s91, 1
    %s93 = scalar_select %p90, %s91, %s92
    %p96 = pneg %p90
    %p97 = scmp.eq.s32.totalorder %s13, 1
    %p98 = por %p96, %p97
    %p99 = scmp.ne.s32.totalorder %s91, %s94
    %p100 = scmp.eq.s32.totalorder %s13, 0
    %p101 = por %p99, %p100
    %p102 = scmp.ne.s32.totalorder %s91, %s94
    %p103 = scmp.eq.s32.totalorder %s18, 1
    %p104 = por %p102, %p103
    %p105 = scmp.ne.s32.totalorder %s94, %s95
    %p106 = scmp.eq.s32.totalorder %s18, 0
    %p107 = por %p105, %p106
    %p108 = scmp.ne.s32.totalorder %s94, %s95
    %p109 = scmp.eq.s32.totalorder %s19, 1
    %p110 = por %p108, %p109
    %p112 = scmp.ne.s32.totalorder %s95, %s111
    %p113 = scmp.eq.s32.totalorder %s19, 0
    %p114 = por %p112, %p113
    %s115 = ssub.s32 %s13, %s20
    %p116 = scmp.eq.s32.totalorder %s115, 0
    %s118 = sadd.s32 %s117, 1
    %s119 = scalar_select %p116, %s117, %s118
    %p122 = pneg %p116
    %p123 = scmp.eq.s32.totalorder %s13, 1
    %p124 = por %p122, %p123
    %p125 = scmp.ne.s32.totalorder %s117, %s120
    %p126 = scmp.eq.s32.totalorder %s13, 0
    %p127 = por %p125, %p126
    %p128 = scmp.ne.s32.totalorder %s117, %s120
    %p129 = scmp.eq.s32.totalorder %s18, 1
    %p130 = por %p128, %p129
    %p131 = scmp.ne.s32.totalorder %s120, %s121
    %p132 = scmp.eq.s32.totalorder %s18, 0
    %p133 = por %p131, %p132
    %p134 = scmp.ne.s32.totalorder %s120, %s121
    %p135 = scmp.eq.s32.totalorder %s19, 1
    %p136 = por %p134, %p135
    %p138 = scmp.ne.s32.totalorder %s121, %s137
    %p139 = scmp.eq.s32.totalorder %s19, 0
    %p140 = por %p138, %p139
    %s141 = ssub.s32 %s13, %s20
    %p142 = scmp.eq.s32.totalorder %s141, 0
    %s144 = sadd.s32 %s143, 1
    %s145 = scalar_select %p142, %s143, %s144
    %p148 = pneg %p142
    %p149 = scmp.eq.s32.totalorder %s13, 1
    %p150 = por %p148, %p149
    %p151 = scmp.ne.s32.totalorder %s143, %s146
    %p152 = scmp.eq.s32.totalorder %s13, 0
    %p153 = por %p151, %p152
    %p154 = scmp.ne.s32.totalorder %s143, %s146
    %p155 = scmp.eq.s32.totalorder %s18, 1
    %p156 = por %p154, %p155
    %p157 = scmp.ne.s32.totalorder %s146, %s147
    %p158 = scmp.eq.s32.totalorder %s18, 0
    %p159 = por %p157, %p158
    %p160 = scmp.ne.s32.totalorder %s146, %s147
    %p161 = scmp.eq.s32.totalorder %s19, 1
    %p162 = por %p160, %p161
    %p164 = scmp.ne.s32.totalorder %s147, %s163
    %p165 = scmp.eq.s32.totalorder %s19, 0
    %p166 = por %p164, %p165
    %s167 = ssub.s32 %s13, %s20
    %p168 = scmp.eq.s32.totalorder %s167, 0
    %s170 = sadd.s32 %s169, 1
    %s171 = scalar_select %p168, %s169, %s170
    %p174 = pneg %p168
    %p175 = scmp.eq.s32.totalorder %s13, 1
    %p176 = por %p174, %p175
    %p177 = scmp.ne.s32.totalorder %s169, %s172
    %p178 = scmp.eq.s32.totalorder %s13, 0
    %p179 = por %p177, %p178
    %p180 = scmp.ne.s32.totalorder %s169, %s172
    %p181 = scmp.eq.s32.totalorder %s18, 1
    %p182 = por %p180, %p181
    %p183 = scmp.ne.s32.totalorder %s172, %s173
    %p184 = scmp.eq.s32.totalorder %s18, 0
    %p185 = por %p183, %p184
    %p186 = scmp.ne.s32.totalorder %s172, %s173
    %p187 = scmp.eq.s32.totalorder %s19, 1
    %p188 = por %p186, %p187
    %p190 = scmp.ne.s32.totalorder %s173, %s189
    %p191 = scmp.eq.s32.totalorder %s19, 0
    %p192 = por %p190, %p191
    %p193 = scmp.le.s32.totalorder 1, %s13
    %p194 = scmp.lt.s32.totalorder %s13, 3
    %p195 = pnand %p193, %p194
    %p196 = pneg %p195
    // Predicated region
    $region9: #{bottleneck_forward.4} parent=5 // pred_check
      _
    $region10: #{bottleneck_forward.4} parent=5 // pred_check_branch
      %198 = sbr.rel (%p195) target = $region12
    $region11: #{bottleneck_forward.4} parent=5 // pred_region
      %s199 = ssub.s32 %s13, 1
      // Predicated region
      $region13: #{bottleneck_forward.4} parent=11 // pred_check
        %p200 = pneg %p60
      $region14: #{bottleneck_forward.4} parent=11 // pred_check_branch
        %202 = sbr.rel (%p200) target = $region16
      $region15: #{bottleneck_forward.4} parent=11 // pred_region
        _
      $region16: #{bottleneck_forward.4} parent=11 // pred_fallthru
        _
      // Predicated region
      $region17: #{bottleneck_forward.4} parent=11 // pred_check
        %p203 = pneg %p81
      $region18: #{bottleneck_forward.4} parent=11 // pred_check_branch
        %205 = sbr.rel (%p203) target = $region20
      $region19: #{bottleneck_forward.4} parent=11 // pred_region
        _
      $region20: #{bottleneck_forward.4} parent=11 // pred_fallthru
        _
    $region12: #{bottleneck_forward.4} parent=5 // pred_fallthru
      _
    %p206 = scmp.lt.s32.totalorder %s13, 2
    // Predicated region
    $region21: #{bottleneck_forward.4} parent=5 // pred_check
      %p207 = pneg %p206
    $region22: #{bottleneck_forward.4} parent=5 // pred_check_branch
      %209 = sbr.rel (%p207) target = $region24
    $region23: #{bottleneck_forward.4} parent=5 // pred_region
      // Predicated region
      $region25: #{bottleneck_forward.4} parent=23 // pred_check
        %p210 = pneg %p33
      $region26: #{bottleneck_forward.4} parent=23 // pred_check_branch
        %212 = sbr.rel (%p210) target = $region28
      $region27: #{bottleneck_forward.4} parent=23 // pred_region
        %s213 = smul.u32 32, %s13
        %p214 = scmp.lt.s32.totalorder %s213, 63
        %s215 = scalar_select %p214, %s213, 63
        %s216 = smul.addr %s215, 4
        %s217 = scalar_lea.vmem %s0, %s216
        %s218 = smul.u32 32, %s13
      $region28: #{bottleneck_forward.4} parent=23 // pred_fallthru
        _
    $region24: #{bottleneck_forward.4} parent=5 // pred_fallthru
      _
    %p219 = scmp.le.s32.totalorder 1, %s13
    %p220 = scmp.lt.s32.totalorder %s13, 3
    %p221 = pnand %p219, %p220
    %p222 = pneg %p221
    // Predicated region
    $region29: #{bottleneck_forward.4} parent=5 // pred_check
      _
    $region30: #{bottleneck_forward.4} parent=5 // pred_check_branch
      %224 = sbr.rel (%p221) target = $region32
    $region31: #{bottleneck_forward.4} parent=5 // pred_region
      %s225 = ssub.s32 %s13, 1
      %s226 = smul.u32 32, %s18
      %p227 = scmp.lt.s32.totalorder %s226, 63
      %s228 = scalar_select %p227, %s226, 63
      %s229 = smul.addr %s228, 4
      %s230 = scalar_lea.vmem %s0, %s229
      %p231 = pneg %p39
      %p232 = pneg %p36
      %p233 = pneg %p60
      %p234 = pneg %p57
      %p235 = pneg %p81
      %p236 = pneg %p78
      %p237 = pneg %p107
      %p238 = pneg %p104
      %s239 = smul.u32 32, %s18
      %p240 = scmp.lt.s32.totalorder %s239, 63
      %s241 = scalar_select %p240, %s239, 63
      %s242 = smul.addr %s241, 4
      %s243 = scalar_lea.vmem %s3, %s242
      %p244 = pneg %p133
      %p245 = pneg %p130
      %p246 = scmp.lt.s32.totalorder %s18, 1
      %s247 = scalar_select %p246, %s18, 1
      %s248 = smul.addr %s247, 2
      %s249 = scalar_lea.vmem %s4, %s248
      %p250 = pneg %p159
      %p251 = pneg %p156
      %s252 = smul.u32 32, %s18
      %p253 = scmp.lt.s32.totalorder %s252, 63
      %s254 = scalar_select %p253, %s252, 63
      %s255 = smul.addr %s254, 4
      %s256 = scalar_lea.vmem %s5, %s255
      %p257 = pneg %p185
      %p258 = pneg %p182
      %p259 = scmp.lt.s32.totalorder %s18, 1
      %s260 = scalar_select %p259, %s18, 1
      %s261 = smul.addr %s260, 2
      %s262 = scalar_lea.vmem %s6, %s261
      %s263 = smul.u32 32, %s18
      %p264 = scmp.lt.s32.totalorder %s263, 63
      %s265 = scalar_select %p264, %s263, 63
      %s266 = smul.addr %s265, 4
      %s267 = scalar_lea.vmem %s0, %s266
      %s268 = smul.u32 32, %s18
      %s269 = smul.u32 32, %s18
      %p270 = scmp.lt.s32.totalorder %s269, 63
      %s271 = scalar_select %p270, %s269, 63
      %s272 = smul.addr %s271, 4
      %s273 = scalar_lea.vmem %s3, %s272
      %s274 = smul.u32 32, %s18
      %p275 = scmp.lt.s32.totalorder %s18, 1
      %s276 = scalar_select %p275, %s18, 1
      %s277 = smul.addr %s276, 2
      %s278 = scalar_lea.vmem %s4, %s277
      %s279 = smul.u32 32, %s18
      %p280 = scmp.lt.s32.totalorder %s279, 63
      %s281 = scalar_select %p280, %s279, 63
      %s282 = smul.addr %s281, 4
      %s283 = scalar_lea.vmem %s5, %s282
      %s284 = smul.u32 32, %s18
      %p285 = scmp.lt.s32.totalorder %s18, 1
      %s286 = scalar_select %p285, %s18, 1
      %s287 = smul.addr %s286, 2
      %s288 = scalar_lea.vmem %s6, %s287
      %v290 = vld [vmem:[%s267] sm:$0xf]
      %v291 = vld [vmem:[%s267 + $0x4] sm:$0xf]
      %v292 = vld [vmem:[%s267 + $0x8] sm:$0xf]
      %v293 = vld [vmem:[%s267 + $0xc] sm:$0xf]
      %v294 = vld [vmem:[%s267 + $0x10] sm:$0xf]
      %v295 = vld [vmem:[%s267 + $0x14] sm:$0xf]
      %v296 = vld [vmem:[%s267 + $0x18] sm:$0xf]
      %v297 = vld [vmem:[%s267 + $0x1c] sm:$0xf]
      %v298 = vld [vmem:[%s267 + $0x20] sm:$0xf]
      %v299 = vld [vmem:[%s267 + $0x24] sm:$0xf]
      %v300 = vld [vmem:[%s267 + $0x28] sm:$0xf]
      %v301 = vld [vmem:[%s267 + $0x2c] sm:$0xf]
      %v302 = vld [vmem:[%s267 + $0x30] sm:$0xf]
      %v303 = vld [vmem:[%s267 + $0x34] sm:$0xf]
      %v304 = vld [vmem:[%s267 + $0x38] sm:$0xf]
      %v305 = vld [vmem:[%s267 + $0x3c] sm:$0xf]
      %v306 = vld [vmem:[%s267 + $0x40] sm:$0xf]
      %v307 = vld [vmem:[%s267 + $0x44] sm:$0xf]
      %v308 = vld [vmem:[%s267 + $0x48] sm:$0xf]
      %v309 = vld [vmem:[%s267 + $0x4c] sm:$0xf]
      %v310 = vld [vmem:[%s267 + $0x50] sm:$0xf]
      %v311 = vld [vmem:[%s267 + $0x54] sm:$0xf]
      %v312 = vld [vmem:[%s267 + $0x58] sm:$0xf]
      %v313 = vld [vmem:[%s267 + $0x5c] sm:$0xf]
      %v314 = vld [vmem:[%s267 + $0x60] sm:$0xf]
      %v315 = vld [vmem:[%s267 + $0x64] sm:$0xf]
      %v316 = vld [vmem:[%s267 + $0x68] sm:$0xf]
      %v317 = vld [vmem:[%s267 + $0x6c] sm:$0xf]
      %v318 = vld [vmem:[%s267 + $0x70] sm:$0xf]
      %v319 = vld [vmem:[%s267 + $0x74] sm:$0xf]
      %v320 = vld [vmem:[%s267 + $0x78] sm:$0xf]
      %v321 = vld [vmem:[%s267 + $0x7c] sm:$0xf]
      %v322 = vld [vmem:[%s1] sm:$0x3]
      %v355 = vunpack.c.l.b16 %v290
      %v356 = vunpack.c.l.b16 %v291
      %v357 = vunpack.c.l.b16 %v292
      %v358 = vunpack.c.l.b16 %v293
      %v359 = vunpack.c.l.b16 %v294
      %v360 = vunpack.c.l.b16 %v295
      %v361 = vunpack.c.l.b16 %v296
      %v362 = vunpack.c.l.b16 %v297
      %v363 = vunpack.c.l.b16 %v298
      %v364 = vunpack.c.l.b16 %v299
      %v365 = vunpack.c.l.b16 %v300
      %v366 = vunpack.c.l.b16 %v301
      %v367 = vunpack.c.l.b16 %v302
      %v368 = vunpack.c.l.b16 %v303
      %v369 = vunpack.c.l.b16 %v304
      %v370 = vunpack.c.l.b16 %v305
      %v371 = vunpack.c.l.b16 %v306
      %v372 = vunpack.c.l.b16 %v307
      %v373 = vunpack.c.l.b16 %v308
      %v374 = vunpack.c.l.b16 %v309
      %v375 = vunpack.c.l.b16 %v310
      %v376 = vunpack.c.l.b16 %v311
      %v377 = vunpack.c.l.b16 %v312
      %v378 = vunpack.c.l.b16 %v313
      %v379 = vunpack.c.l.b16 %v314
      %v380 = vunpack.c.l.b16 %v315
      %v381 = vunpack.c.l.b16 %v316
      %v382 = vunpack.c.l.b16 %v317
      %v383 = vunpack.c.l.b16 %v318
      %v384 = vunpack.c.l.b16 %v319
      %v385 = vunpack.c.l.b16 %v320
      %v386 = vunpack.c.l.b16 %v321
      %v387 = vpack.c.b16 %v356, %v355
      %v388 = vpack.c.b16 %v358, %v357
      %v389 = vpack.c.b16 %v360, %v359
      %v390 = vpack.c.b16 %v362, %v361
      %v391 = vpack.c.b16 %v364, %v363
      %v392 = vpack.c.b16 %v366, %v365
      %v393 = vpack.c.b16 %v368, %v367
      %v394 = vpack.c.b16 %v370, %v369
      %v395 = vpack.c.b16 %v372, %v371
      %v396 = vpack.c.b16 %v374, %v373
      %v397 = vpack.c.b16 %v376, %v375
      %v398 = vpack.c.b16 %v378, %v377
      %v399 = vpack.c.b16 %v380, %v379
      %v400 = vpack.c.b16 %v382, %v381
      %v401 = vpack.c.b16 %v384, %v383
      %v402 = vpack.c.b16 %v386, %v385
      %vm403 = vcmask 31744
      %v405 = vsel %vm403, %v387, 0
      %v408 = vsel %vm403, %v388, 0
      %v411 = vsel %vm403, %v389, 0
      %v414 = vsel %vm403, %v390, 0
      %v417 = vsel %vm403, %v391, 0
      %v420 = vsel %vm403, %v392, 0
      %v423 = vsel %vm403, %v393, 0
      %v426 = vsel %vm403, %v394, 0
      %v429 = vsel %vm403, %v395, 0
      %v432 = vsel %vm403, %v396, 0
      %v435 = vsel %vm403, %v397, 0
      %v438 = vsel %vm403, %v398, 0
      %v441 = vsel %vm403, %v399, 0
      %v444 = vsel %vm403, %v400, 0
      %v447 = vsel %vm403, %v401, 0
      %v450 = vsel %vm403, %v402, 0
      %vm452 = vcmask 1041408
      %v454 = vsel %vm452, %v322, 0
      %456 = vmatpush.bf16.msra.mxu0 0
      %457 = vmatpush.bf16.msra.mxu0 0
      %458 = vmatpush.bf16.msra.mxu0 0
      %459 = vmatpush.bf16.msra.mxu0 0
      %460 = vmatpush.bf16.msra.mxu0 0
      %461 = vmatpush.bf16.msra.mxu0 0
      %462 = vmatpush.bf16.msra.mxu0 0
      %463 = vmatpush.bf16.msra.mxu0 %v454
      %464 = vmatmul.bf16.gmra.mxu0 %v405
      %v465 = vpop.f32.mrf.mxu0
      %v466 = vadd.f32 0.0, %v465
      %v467 = vpop.f32.mrf.mxu0
      %v468 = vadd.f32 0.0, %v467
      %469 = vmatmul.bf16.gmra.mxu0 %v408
      %v470 = vpop.f32.mrf.mxu0
      %v471 = vadd.f32 0.0, %v470
      %v472 = vpop.f32.mrf.mxu0
      %v473 = vadd.f32 0.0, %v472
      %474 = vmatmul.bf16.gmra.mxu0 %v411
      %v475 = vpop.f32.mrf.mxu0
      %v476 = vadd.f32 0.0, %v475
      %v477 = vpop.f32.mrf.mxu0
      %v478 = vadd.f32 0.0, %v477
      %479 = vmatmul.bf16.gmra.mxu0 %v414
      %v480 = vpop.f32.mrf.mxu0
      %v481 = vadd.f32 0.0, %v480
      %v482 = vpop.f32.mrf.mxu0
      %v483 = vadd.f32 0.0, %v482
      %484 = vmatmul.bf16.gmra.mxu0 %v417
      %v485 = vpop.f32.mrf.mxu0
      %v486 = vadd.f32 0.0, %v485
      %v487 = vpop.f32.mrf.mxu0
      %v488 = vadd.f32 0.0, %v487
      %489 = vmatmul.bf16.gmra.mxu0 %v420
      %v490 = vpop.f32.mrf.mxu0
      %v491 = vadd.f32 0.0, %v490
      %v492 = vpop.f32.mrf.mxu0
      %v493 = vadd.f32 0.0, %v492
      %494 = vmatmul.bf16.gmra.mxu0 %v423
      %v495 = vpop.f32.mrf.mxu0
      %v496 = vadd.f32 0.0, %v495
      %v497 = vpop.f32.mrf.mxu0
      %v498 = vadd.f32 0.0, %v497
      %499 = vmatmul.bf16.gmra.mxu0 %v426
      %v500 = vpop.f32.mrf.mxu0
      %v501 = vadd.f32 0.0, %v500
      %v502 = vpop.f32.mrf.mxu0
      %v503 = vadd.f32 0.0, %v502
      %504 = vmatmul.bf16.gmra.mxu0 %v429
      %v505 = vpop.f32.mrf.mxu0
      %v506 = vadd.f32 0.0, %v505
      %v507 = vpop.f32.mrf.mxu0
      %v508 = vadd.f32 0.0, %v507
      %509 = vmatmul.bf16.gmra.mxu0 %v432
      %v510 = vpop.f32.mrf.mxu0
      %v511 = vadd.f32 0.0, %v510
      %v512 = vpop.f32.mrf.mxu0
      %v513 = vadd.f32 0.0, %v512
      %514 = vmatmul.bf16.gmra.mxu0 %v435
      %v515 = vpop.f32.mrf.mxu0
      %v516 = vadd.f32 0.0, %v515
      %v517 = vpop.f32.mrf.mxu0
      %v518 = vadd.f32 0.0, %v517
      %519 = vmatmul.bf16.gmra.mxu0 %v438
      %v520 = vpop.f32.mrf.mxu0
      %v521 = vadd.f32 0.0, %v520
      %v522 = vpop.f32.mrf.mxu0
      %v523 = vadd.f32 0.0, %v522
      %524 = vmatmul.bf16.gmra.mxu0 %v441
      %v525 = vpop.f32.mrf.mxu0
      %v526 = vadd.f32 0.0, %v525
      %v527 = vpop.f32.mrf.mxu0
      %v528 = vadd.f32 0.0, %v527
      %529 = vmatmul.bf16.gmra.mxu0 %v444
      %v530 = vpop.f32.mrf.mxu0
      %v531 = vadd.f32 0.0, %v530
      %v532 = vpop.f32.mrf.mxu0
      %v533 = vadd.f32 0.0, %v532
      %534 = vmatmul.bf16.gmra.mxu0 %v447
      %v535 = vpop.f32.mrf.mxu0
      %v536 = vadd.f32 0.0, %v535
      %v537 = vpop.f32.mrf.mxu0
      %v538 = vadd.f32 0.0, %v537
      %539 = vmatmul.bf16.gmra.mxu0 %v450
      %v540 = vpop.f32.mrf.mxu0
      %v541 = vadd.f32 0.0, %v540
      %v542 = vpop.f32.mrf.mxu0
      %v543 = vadd.f32 0.0, %v542
      %544 = vdwg.mxu0
      %v545 = vpack.c.bf16 %v466, %v466
      %v546 = vpack.c.bf16 %v468, %v468
      %v547 = vpack.c.bf16 %v471, %v471
      %v548 = vpack.c.bf16 %v473, %v473
      %v549 = vpack.c.bf16 %v476, %v476
      %v550 = vpack.c.bf16 %v478, %v478
      %v551 = vpack.c.bf16 %v481, %v481
      %v552 = vpack.c.bf16 %v483, %v483
      %v553 = vpack.c.bf16 %v486, %v486
      %v554 = vpack.c.bf16 %v488, %v488
      %v555 = vpack.c.bf16 %v491, %v491
      %v556 = vpack.c.bf16 %v493, %v493
      %v557 = vpack.c.bf16 %v496, %v496
      %v558 = vpack.c.bf16 %v498, %v498
      %v559 = vpack.c.bf16 %v501, %v501
      %v560 = vpack.c.bf16 %v503, %v503
      %v561 = vpack.c.bf16 %v506, %v506
      %v562 = vpack.c.bf16 %v508, %v508
      %v563 = vpack.c.bf16 %v511, %v511
      %v564 = vpack.c.bf16 %v513, %v513
      %v565 = vpack.c.bf16 %v516, %v516
      %v566 = vpack.c.bf16 %v518, %v518
      %v567 = vpack.c.bf16 %v521, %v521
      %v568 = vpack.c.bf16 %v523, %v523
      %v569 = vpack.c.bf16 %v526, %v526
      %v570 = vpack.c.bf16 %v528, %v528
      %v571 = vpack.c.bf16 %v531, %v531
      %v572 = vpack.c.bf16 %v533, %v533
      %v573 = vpack.c.bf16 %v536, %v536
      %v574 = vpack.c.bf16 %v538, %v538
      %v575 = vpack.c.bf16 %v541, %v541
      %v576 = vpack.c.bf16 %v543, %v543
      %vm577 = vcmask 27648
      %578 = vst.msk [vmem:[%s273] sm:$0xf] %vm577, %v545
      %579 = vst.msk [vmem:[%s273 + $0x4] sm:$0xf] %vm577, %v546
      %580 = vst.msk [vmem:[%s273 + $0x8] sm:$0xf] %vm577, %v547
      %581 = vst.msk [vmem:[%s273 + $0xc] sm:$0xf] %vm577, %v548
      %582 = vst.msk [vmem:[%s273 + $0x10] sm:$0xf] %vm577, %v549
      %583 = vst.msk [vmem:[%s273 + $0x14] sm:$0xf] %vm577, %v550
      %584 = vst.msk [vmem:[%s273 + $0x18] sm:$0xf] %vm577, %v551
      %585 = vst.msk [vmem:[%s273 + $0x1c] sm:$0xf] %vm577, %v552
      %586 = vst.msk [vmem:[%s273 + $0x20] sm:$0xf] %vm577, %v553
      %587 = vst.msk [vmem:[%s273 + $0x24] sm:$0xf] %vm577, %v554
      %588 = vst.msk [vmem:[%s273 + $0x28] sm:$0xf] %vm577, %v555
      %589 = vst.msk [vmem:[%s273 + $0x2c] sm:$0xf] %vm577, %v556
      %590 = vst.msk [vmem:[%s273 + $0x30] sm:$0xf] %vm577, %v557
      %591 = vst.msk [vmem:[%s273 + $0x34] sm:$0xf] %vm577, %v558
      %592 = vst.msk [vmem:[%s273 + $0x38] sm:$0xf] %vm577, %v559
      %593 = vst.msk [vmem:[%s273 + $0x3c] sm:$0xf] %vm577, %v560
      %594 = vst.msk [vmem:[%s273 + $0x40] sm:$0xf] %vm577, %v561
      %595 = vst.msk [vmem:[%s273 + $0x44] sm:$0xf] %vm577, %v562
      %596 = vst.msk [vmem:[%s273 + $0x48] sm:$0xf] %vm577, %v563
      %597 = vst.msk [vmem:[%s273 + $0x4c] sm:$0xf] %vm577, %v564
      %598 = vst.msk [vmem:[%s273 + $0x50] sm:$0xf] %vm577, %v565
      %599 = vst.msk [vmem:[%s273 + $0x54] sm:$0xf] %vm577, %v566
      %600 = vst.msk [vmem:[%s273 + $0x58] sm:$0xf] %vm577, %v567
      %601 = vst.msk [vmem:[%s273 + $0x5c] sm:$0xf] %vm577, %v568
      %602 = vst.msk [vmem:[%s273 + $0x60] sm:$0xf] %vm577, %v569
      %603 = vst.msk [vmem:[%s273 + $0x64] sm:$0xf] %vm577, %v570
      %604 = vst.msk [vmem:[%s273 + $0x68] sm:$0xf] %vm577, %v571
      %605 = vst.msk [vmem:[%s273 + $0x6c] sm:$0xf] %vm577, %v572
      %606 = vst.msk [vmem:[%s273 + $0x70] sm:$0xf] %vm577, %v573
      %607 = vst.msk [vmem:[%s273 + $0x74] sm:$0xf] %vm577, %v574
      %608 = vst.msk [vmem:[%s273 + $0x78] sm:$0xf] %vm577, %v575
      %609 = vst.msk [vmem:[%s273 + $0x7c] sm:$0xf] %vm577, %v576
      %v610 = vsel %vm403, %v466, 0.0
      %v611 = vsel %vm403, %v468, 0.0
      %v612 = vadd.f32 %v610, %v611
      %v613 = vsel %vm403, %v471, 0.0
      %v614 = vadd.f32 %v612, %v613
      %v615 = vsel %vm403, %v473, 0.0
      %v616 = vadd.f32 %v614, %v615
      %v617 = vsel %vm403, %v476, 0.0
      %v618 = vadd.f32 %v616, %v617
      %v619 = vsel %vm403, %v478, 0.0
      %v620 = vadd.f32 %v618, %v619
      %v621 = vsel %vm403, %v481, 0.0
      %v622 = vadd.f32 %v620, %v621
      %v623 = vsel %vm403, %v483, 0.0
      %v624 = vadd.f32 %v622, %v623
      %v625 = vsel %vm403, %v486, 0.0
      %v626 = vadd.f32 %v624, %v625
      %v627 = vsel %vm403, %v488, 0.0
      %v628 = vadd.f32 %v626, %v627
      %v629 = vsel %vm403, %v491, 0.0
      %v630 = vadd.f32 %v628, %v629
      %v631 = vsel %vm403, %v493, 0.0
      %v632 = vadd.f32 %v630, %v631
      %v633 = vsel %vm403, %v496, 0.0
      %v634 = vadd.f32 %v632, %v633
      %v635 = vsel %vm403, %v498, 0.0
      %v636 = vadd.f32 %v634, %v635
      %v637 = vsel %vm403, %v501, 0.0
      %v638 = vadd.f32 %v636, %v637
      %v639 = vsel %vm403, %v503, 0.0
      %v640 = vadd.f32 %v638, %v639
      %v641 = vsel %vm403, %v506, 0.0
      %v642 = vadd.f32 %v640, %v641
      %v643 = vsel %vm403, %v508, 0.0
      %v644 = vadd.f32 %v642, %v643
      %v645 = vsel %vm403, %v511, 0.0
      %v646 = vadd.f32 %v644, %v645
      %v647 = vsel %vm403, %v513, 0.0
      %v648 = vadd.f32 %v646, %v647
      %v649 = vsel %vm403, %v516, 0.0
      %v650 = vadd.f32 %v648, %v649
      %v651 = vsel %vm403, %v518, 0.0
      %v652 = vadd.f32 %v650, %v651
      %v653 = vsel %vm403, %v521, 0.0
      %v654 = vadd.f32 %v652, %v653
      %v655 = vsel %vm403, %v523, 0.0
      %v656 = vadd.f32 %v654, %v655
      %v657 = vsel %vm403, %v526, 0.0
      %v658 = vadd.f32 %v656, %v657
      %v659 = vsel %vm403, %v528, 0.0
      %v660 = vadd.f32 %v658, %v659
      %v661 = vsel %vm403, %v531, 0.0
      %v662 = vadd.f32 %v660, %v661
      %v663 = vsel %vm403, %v533, 0.0
      %v664 = vadd.f32 %v662, %v663
      %v665 = vsel %vm403, %v536, 0.0
      %v666 = vadd.f32 %v664, %v665
      %v667 = vsel %vm403, %v538, 0.0
      %v668 = vadd.f32 %v666, %v667
      %v669 = vsel %vm403, %v541, 0.0
      %v670 = vadd.f32 %v668, %v669
      %v671 = vsel %vm403, %v543, 0.0
      %v672 = vadd.f32 %v670, %v671
      %v673 = vrot.slane %v672, 4
      %v674 = vadd.f32 %v672, %v673
      %v675 = vrot.slane %v674, 2
      %v676 = vadd.f32 %v674, %v675
      %v677 = vrot.slane %v676, 1
      %v678 = vadd.f32 %v676, %v677
      %v679 = vmul.f32 %v466, %v466
      %v680 = vmul.f32 %v468, %v468
      %v681 = vmul.f32 %v471, %v471
      %v682 = vmul.f32 %v473, %v473
      %v683 = vmul.f32 %v476, %v476
      %v684 = vmul.f32 %v478, %v478
      %v685 = vmul.f32 %v481, %v481
      %v686 = vmul.f32 %v483, %v483
      %v687 = vmul.f32 %v486, %v486
      %v688 = vmul.f32 %v488, %v488
      %v689 = vmul.f32 %v491, %v491
      %v690 = vmul.f32 %v493, %v493
      %v691 = vmul.f32 %v496, %v496
      %v692 = vmul.f32 %v498, %v498
      %v693 = vmul.f32 %v501, %v501
      %v694 = vmul.f32 %v503, %v503
      %v695 = vmul.f32 %v506, %v506
      %v696 = vmul.f32 %v508, %v508
      %v697 = vmul.f32 %v511, %v511
      %v698 = vmul.f32 %v513, %v513
      %v699 = vmul.f32 %v516, %v516
      %v700 = vmul.f32 %v518, %v518
      %v701 = vmul.f32 %v521, %v521
      %v702 = vmul.f32 %v523, %v523
      %v703 = vmul.f32 %v526, %v526
      %v704 = vmul.f32 %v528, %v528
      %v705 = vmul.f32 %v531, %v531
      %v706 = vmul.f32 %v533, %v533
      %v707 = vmul.f32 %v536, %v536
      %v708 = vmul.f32 %v538, %v538
      %v709 = vmul.f32 %v541, %v541
      %v710 = vmul.f32 %v543, %v543
      %v711 = vsel %vm403, %v679, 0.0
      %v712 = vsel %vm403, %v680, 0.0
      %v713 = vadd.f32 %v711, %v712
      %v714 = vsel %vm403, %v681, 0.0
      %v715 = vadd.f32 %v713, %v714
      %v716 = vsel %vm403, %v682, 0.0
      %v717 = vadd.f32 %v715, %v716
      %v718 = vsel %vm403, %v683, 0.0
      %v719 = vadd.f32 %v717, %v718
      %v720 = vsel %vm403, %v684, 0.0
      %v721 = vadd.f32 %v719, %v720
      %v722 = vsel %vm403, %v685, 0.0
      %v723 = vadd.f32 %v721, %v722
      %v724 = vsel %vm403, %v686, 0.0
      %v725 = vadd.f32 %v723, %v724
      %v726 = vsel %vm403, %v687, 0.0
      %v727 = vadd.f32 %v725, %v726
      %v728 = vsel %vm403, %v688, 0.0
      %v729 = vadd.f32 %v727, %v728
      %v730 = vsel %vm403, %v689, 0.0
      %v731 = vadd.f32 %v729, %v730
      %v732 = vsel %vm403, %v690, 0.0
      %v733 = vadd.f32 %v731, %v732
      %v734 = vsel %vm403, %v691, 0.0
      %v735 = vadd.f32 %v733, %v734
      %v736 = vsel %vm403, %v692, 0.0
      %v737 = vadd.f32 %v735, %v736
      %v738 = vsel %vm403, %v693, 0.0
      %v739 = vadd.f32 %v737, %v738
      %v740 = vsel %vm403, %v694, 0.0
      %v741 = vadd.f32 %v739, %v740
      %v742 = vsel %vm403, %v695, 0.0
      %v743 = vadd.f32 %v741, %v742
      %v744 = vsel %vm403, %v696, 0.0
      %v745 = vadd.f32 %v743, %v744
      %v746 = vsel %vm403, %v697, 0.0
      %v747 = vadd.f32 %v745, %v746
      %v748 = vsel %vm403, %v698, 0.0
      %v749 = vadd.f32 %v747, %v748
      %v750 = vsel %vm403, %v699, 0.0
      %v751 = vadd.f32 %v749, %v750
      %v752 = vsel %vm403, %v700, 0.0
      %v753 = vadd.f32 %v751, %v752
      %v754 = vsel %vm403, %v701, 0.0
      %v755 = vadd.f32 %v753, %v754
      %v756 = vsel %vm403, %v702, 0.0
      %v757 = vadd.f32 %v755, %v756
      %v758 = vsel %vm403, %v703, 0.0
      %v759 = vadd.f32 %v757, %v758
      %v760 = vsel %vm403, %v704, 0.0
      %v761 = vadd.f32 %v759, %v760
      %v762 = vsel %vm403, %v705, 0.0
      %v763 = vadd.f32 %v761, %v762
      %v764 = vsel %vm403, %v706, 0.0
      %v765 = vadd.f32 %v763, %v764
      %v766 = vsel %vm403, %v707, 0.0
      %v767 = vadd.f32 %v765, %v766
      %v768 = vsel %vm403, %v708, 0.0
      %v769 = vadd.f32 %v767, %v768
      %v770 = vsel %vm403, %v709, 0.0
      %v771 = vadd.f32 %v769, %v770
      %v772 = vsel %vm403, %v710, 0.0
      %v773 = vadd.f32 %v771, %v772
      %v774 = vrot.slane %v773, 4
      %v775 = vadd.f32 %v773, %v774
      %v776 = vrot.slane %v775, 2
      %v777 = vadd.f32 %v775, %v776
      %v778 = vrot.slane %v777, 1
      %v779 = vadd.f32 %v777, %v778
      %vm780 = vcmask 1040384
      %v781 = vsel %vm780, %v678, %v779
      %vm782 = vcmask 25600
      %783 = vst.msk [vmem:[%s278] sm:$0x3] %vm782, %v781
      %v784 = vld [vmem:[%s2] sm:$0x3]
      %v786 = vsel %vm452, %v784, 0
      %788 = vmatpush.bf16.msra.mxu0 0
      %789 = vmatpush.bf16.msra.mxu0 0
      %790 = vmatpush.bf16.msra.mxu0 0
      %791 = vmatpush.bf16.msra.mxu0 0
      %792 = vmatpush.bf16.msra.mxu0 0
      %793 = vmatpush.bf16.msra.mxu0 0
      %794 = vmatpush.bf16.msra.mxu0 0
      %795 = vmatpush.bf16.msra.mxu0 %v786
      %796 = vmatmul.bf16.gmra.mxu0 %v405
      %v797 = vpop.f32.mrf.mxu0
      %v798 = vadd.f32 0.0, %v797
      %v799 = vpop.f32.mrf.mxu0
      %v800 = vadd.f32 0.0, %v799
      %801 = vmatmul.bf16.gmra.mxu0 %v408
      %v802 = vpop.f32.mrf.mxu0
      %v803 = vadd.f32 0.0, %v802
      %v804 = vpop.f32.mrf.mxu0
      %v805 = vadd.f32 0.0, %v804
      %806 = vmatmul.bf16.gmra.mxu0 %v411
      %v807 = vpop.f32.mrf.mxu0
      %v808 = vadd.f32 0.0, %v807
      %v809 = vpop.f32.mrf.mxu0
      %v810 = vadd.f32 0.0, %v809
      %811 = vmatmul.bf16.gmra.mxu0 %v414
      %v812 = vpop.f32.mrf.mxu0
      %v813 = vadd.f32 0.0, %v812
      %v814 = vpop.f32.mrf.mxu0
      %v815 = vadd.f32 0.0, %v814
      %816 = vmatmul.bf16.gmra.mxu0 %v417
      %v817 = vpop.f32.mrf.mxu0
      %v818 = vadd.f32 0.0, %v817
      %v819 = vpop.f32.mrf.mxu0
      %v820 = vadd.f32 0.0, %v819
      %821 = vmatmul.bf16.gmra.mxu0 %v420
      %v822 = vpop.f32.mrf.mxu0
      %v823 = vadd.f32 0.0, %v822
      %v824 = vpop.f32.mrf.mxu0
      %v825 = vadd.f32 0.0, %v824
      %826 = vmatmul.bf16.gmra.mxu0 %v423
      %v827 = vpop.f32.mrf.mxu0
      %v828 = vadd.f32 0.0, %v827
      %v829 = vpop.f32.mrf.mxu0
      %v830 = vadd.f32 0.0, %v829
      %831 = vmatmul.bf16.gmra.mxu0 %v426
      %v832 = vpop.f32.mrf.mxu0
      %v833 = vadd.f32 0.0, %v832
      %v834 = vpop.f32.mrf.mxu0
      %v835 = vadd.f32 0.0, %v834
      %836 = vmatmul.bf16.gmra.mxu0 %v429
      %v837 = vpop.f32.mrf.mxu0
      %v838 = vadd.f32 0.0, %v837
      %v839 = vpop.f32.mrf.mxu0
      %v840 = vadd.f32 0.0, %v839
      %841 = vmatmul.bf16.gmra.mxu0 %v432
      %v842 = vpop.f32.mrf.mxu0
      %v843 = vadd.f32 0.0, %v842
      %v844 = vpop.f32.mrf.mxu0
      %v845 = vadd.f32 0.0, %v844
      %846 = vmatmul.bf16.gmra.mxu0 %v435
      %v847 = vpop.f32.mrf.mxu0
      %v848 = vadd.f32 0.0, %v847
      %v849 = vpop.f32.mrf.mxu0
      %v850 = vadd.f32 0.0, %v849
      %851 = vmatmul.bf16.gmra.mxu0 %v438
      %v852 = vpop.f32.mrf.mxu0
      %v853 = vadd.f32 0.0, %v852
      %v854 = vpop.f32.mrf.mxu0
      %v855 = vadd.f32 0.0, %v854
      %856 = vmatmul.bf16.gmra.mxu0 %v441
      %v857 = vpop.f32.mrf.mxu0
      %v858 = vadd.f32 0.0, %v857
      %v859 = vpop.f32.mrf.mxu0
      %v860 = vadd.f32 0.0, %v859
      %861 = vmatmul.bf16.gmra.mxu0 %v444
      %v862 = vpop.f32.mrf.mxu0
      %v863 = vadd.f32 0.0, %v862
      %v864 = vpop.f32.mrf.mxu0
      %v865 = vadd.f32 0.0, %v864
      %866 = vmatmul.bf16.gmra.mxu0 %v447
      %v867 = vpop.f32.mrf.mxu0
      %v868 = vadd.f32 0.0, %v867
      %v869 = vpop.f32.mrf.mxu0
      %v870 = vadd.f32 0.0, %v869
      %871 = vmatmul.bf16.gmra.mxu0 %v450
      %v872 = vpop.f32.mrf.mxu0
      %v873 = vadd.f32 0.0, %v872
      %v874 = vpop.f32.mrf.mxu0
      %v875 = vadd.f32 0.0, %v874
      %876 = vdwg.mxu0
      %v877 = vpack.c.bf16 %v798, %v798
      %v878 = vpack.c.bf16 %v800, %v800
      %v879 = vpack.c.bf16 %v803, %v803
      %v880 = vpack.c.bf16 %v805, %v805
      %v881 = vpack.c.bf16 %v808, %v808
      %v882 = vpack.c.bf16 %v810, %v810
      %v883 = vpack.c.bf16 %v813, %v813
      %v884 = vpack.c.bf16 %v815, %v815
      %v885 = vpack.c.bf16 %v818, %v818
      %v886 = vpack.c.bf16 %v820, %v820
      %v887 = vpack.c.bf16 %v823, %v823
      %v888 = vpack.c.bf16 %v825, %v825
      %v889 = vpack.c.bf16 %v828, %v828
      %v890 = vpack.c.bf16 %v830, %v830
      %v891 = vpack.c.bf16 %v833, %v833
      %v892 = vpack.c.bf16 %v835, %v835
      %v893 = vpack.c.bf16 %v838, %v838
      %v894 = vpack.c.bf16 %v840, %v840
      %v895 = vpack.c.bf16 %v843, %v843
      %v896 = vpack.c.bf16 %v845, %v845
      %v897 = vpack.c.bf16 %v848, %v848
      %v898 = vpack.c.bf16 %v850, %v850
      %v899 = vpack.c.bf16 %v853, %v853
      %v900 = vpack.c.bf16 %v855, %v855
      %v901 = vpack.c.bf16 %v858, %v858
      %v902 = vpack.c.bf16 %v860, %v860
      %v903 = vpack.c.bf16 %v863, %v863
      %v904 = vpack.c.bf16 %v865, %v865
      %v905 = vpack.c.bf16 %v868, %v868
      %v906 = vpack.c.bf16 %v870, %v870
      %v907 = vpack.c.bf16 %v873, %v873
      %v908 = vpack.c.bf16 %v875, %v875
      %vm909 = vcmask 125952
      %910 = vst.msk [vmem:[%s283] sm:$0xf] %vm909, %v877
      %911 = vst.msk [vmem:[%s283 + $0x4] sm:$0xf] %vm909, %v878
      %912 = vst.msk [vmem:[%s283 + $0x8] sm:$0xf] %vm909, %v879
      %913 = vst.msk [vmem:[%s283 + $0xc] sm:$0xf] %vm909, %v880
      %914 = vst.msk [vmem:[%s283 + $0x10] sm:$0xf] %vm909, %v881
      %915 = vst.msk [vmem:[%s283 + $0x14] sm:$0xf] %vm909, %v882
      %916 = vst.msk [vmem:[%s283 + $0x18] sm:$0xf] %vm909, %v883
      %917 = vst.msk [vmem:[%s283 + $0x1c] sm:$0xf] %vm909, %v884
      %918 = vst.msk [vmem:[%s283 + $0x20] sm:$0xf] %vm909, %v885
      %919 = vst.msk [vmem:[%s283 + $0x24] sm:$0xf] %vm909, %v886
      %920 = vst.msk [vmem:[%s283 + $0x28] sm:$0xf] %vm909, %v887
      %921 = vst.msk [vmem:[%s283 + $0x2c] sm:$0xf] %vm909, %v888
      %922 = vst.msk [vmem:[%s283 + $0x30] sm:$0xf] %vm909, %v889
      %923 = vst.msk [vmem:[%s283 + $0x34] sm:$0xf] %vm909, %v890
      %924 = vst.msk [vmem:[%s283 + $0x38] sm:$0xf] %vm909, %v891
      %925 = vst.msk [vmem:[%s283 + $0x3c] sm:$0xf] %vm909, %v892
      %926 = vst.msk [vmem:[%s283 + $0x40] sm:$0xf] %vm909, %v893
      %927 = vst.msk [vmem:[%s283 + $0x44] sm:$0xf] %vm909, %v894
      %928 = vst.msk [vmem:[%s283 + $0x48] sm:$0xf] %vm909, %v895
      %929 = vst.msk [vmem:[%s283 + $0x4c] sm:$0xf] %vm909, %v896
      %930 = vst.msk [vmem:[%s283 + $0x50] sm:$0xf] %vm909, %v897
      %931 = vst.msk [vmem:[%s283 + $0x54] sm:$0xf] %vm909, %v898
      %932 = vst.msk [vmem:[%s283 + $0x58] sm:$0xf] %vm909, %v899
      %933 = vst.msk [vmem:[%s283 + $0x5c] sm:$0xf] %vm909, %v900
      %934 = vst.msk [vmem:[%s283 + $0x60] sm:$0xf] %vm909, %v901
      %935 = vst.msk [vmem:[%s283 + $0x64] sm:$0xf] %vm909, %v902
      %936 = vst.msk [vmem:[%s283 + $0x68] sm:$0xf] %vm909, %v903
      %937 = vst.msk [vmem:[%s283 + $0x6c] sm:$0xf] %vm909, %v904
      %938 = vst.msk [vmem:[%s283 + $0x70] sm:$0xf] %vm909, %v905
      %939 = vst.msk [vmem:[%s283 + $0x74] sm:$0xf] %vm909, %v906
      %940 = vst.msk [vmem:[%s283 + $0x78] sm:$0xf] %vm909, %v907
      %941 = vst.msk [vmem:[%s283 + $0x7c] sm:$0xf] %vm909, %v908
      %vm942 = vcmask 130048
      %v943 = vsel %vm942, %v798, 0.0
      %v944 = vsel %vm942, %v800, 0.0
      %v945 = vadd.f32 %v943, %v944
      %v946 = vsel %vm942, %v803, 0.0
      %v947 = vadd.f32 %v945, %v946
      %v948 = vsel %vm942, %v805, 0.0
      %v949 = vadd.f32 %v947, %v948
      %v950 = vsel %vm942, %v808, 0.0
      %v951 = vadd.f32 %v949, %v950
      %v952 = vsel %vm942, %v810, 0.0
      %v953 = vadd.f32 %v951, %v952
      %v954 = vsel %vm942, %v813, 0.0
      %v955 = vadd.f32 %v953, %v954
      %v956 = vsel %vm942, %v815, 0.0
      %v957 = vadd.f32 %v955, %v956
      %v958 = vsel %vm942, %v818, 0.0
      %v959 = vadd.f32 %v957, %v958
      %v960 = vsel %vm942, %v820, 0.0
      %v961 = vadd.f32 %v959, %v960
      %v962 = vsel %vm942, %v823, 0.0
      %v963 = vadd.f32 %v961, %v962
      %v964 = vsel %vm942, %v825, 0.0
      %v965 = vadd.f32 %v963, %v964
      %v966 = vsel %vm942, %v828, 0.0
      %v967 = vadd.f32 %v965, %v966
      %v968 = vsel %vm942, %v830, 0.0
      %v969 = vadd.f32 %v967, %v968
      %v970 = vsel %vm942, %v833, 0.0
      %v971 = vadd.f32 %v969, %v970
      %v972 = vsel %vm942, %v835, 0.0
      %v973 = vadd.f32 %v971, %v972
      %v974 = vsel %vm942, %v838, 0.0
      %v975 = vadd.f32 %v973, %v974
      %v976 = vsel %vm942, %v840, 0.0
      %v977 = vadd.f32 %v975, %v976
      %v978 = vsel %vm942, %v843, 0.0
      %v979 = vadd.f32 %v977, %v978
      %v980 = vsel %vm942, %v845, 0.0
      %v981 = vadd.f32 %v979, %v980
      %v982 = vsel %vm942, %v848, 0.0
      %v983 = vadd.f32 %v981, %v982
      %v984 = vsel %vm942, %v850, 0.0
      %v985 = vadd.f32 %v983, %v984
      %v986 = vsel %vm942, %v853, 0.0
      %v987 = vadd.f32 %v985, %v986
      %v988 = vsel %vm942, %v855, 0.0
      %v989 = vadd.f32 %v987, %v988
      %v990 = vsel %vm942, %v858, 0.0
      %v991 = vadd.f32 %v989, %v990
      %v992 = vsel %vm942, %v860, 0.0
      %v993 = vadd.f32 %v991, %v992
      %v994 = vsel %vm942, %v863, 0.0
      %v995 = vadd.f32 %v993, %v994
      %v996 = vsel %vm942, %v865, 0.0
      %v997 = vadd.f32 %v995, %v996
      %v998 = vsel %vm942, %v868, 0.0
      %v999 = vadd.f32 %v997, %v998
      %v1000 = vsel %vm942, %v870, 0.0
      %v1001 = vadd.f32 %v999, %v1000
      %v1002 = vsel %vm942, %v873, 0.0
      %v1003 = vadd.f32 %v1001, %v1002
      %v1004 = vsel %vm942, %v875, 0.0
      %v1005 = vadd.f32 %v1003, %v1004
      %v1006 = vrot.slane %v1005, 4
      %v1007 = vadd.f32 %v1005, %v1006
      %v1008 = vrot.slane %v1007, 2
      %v1009 = vadd.f32 %v1007, %v1008
      %v1010 = vrot.slane %v1009, 1
      %v1011 = vadd.f32 %v1009, %v1010
      %v1012 = vmul.f32 %v798, %v798
      %v1013 = vmul.f32 %v800, %v800
      %v1014 = vmul.f32 %v803, %v803
      %v1015 = vmul.f32 %v805, %v805
      %v1016 = vmul.f32 %v808, %v808
      %v1017 = vmul.f32 %v810, %v810
      %v1018 = vmul.f32 %v813, %v813
      %v1019 = vmul.f32 %v815, %v815
      %v1020 = vmul.f32 %v818, %v818
      %v1021 = vmul.f32 %v820, %v820
      %v1022 = vmul.f32 %v823, %v823
      %v1023 = vmul.f32 %v825, %v825
      %v1024 = vmul.f32 %v828, %v828
      %v1025 = vmul.f32 %v830, %v830
      %v1026 = vmul.f32 %v833, %v833
      %v1027 = vmul.f32 %v835, %v835
      %v1028 = vmul.f32 %v838, %v838
      %v1029 = vmul.f32 %v840, %v840
      %v1030 = vmul.f32 %v843, %v843
      %v1031 = vmul.f32 %v845, %v845
      %v1032 = vmul.f32 %v848, %v848
      %v1033 = vmul.f32 %v850, %v850
      %v1034 = vmul.f32 %v853, %v853
      %v1035 = vmul.f32 %v855, %v855
      %v1036 = vmul.f32 %v858, %v858
      %v1037 = vmul.f32 %v860, %v860
      %v1038 = vmul.f32 %v863, %v863
      %v1039 = vmul.f32 %v865, %v865
      %v1040 = vmul.f32 %v868, %v868
      %v1041 = vmul.f32 %v870, %v870
      %v1042 = vmul.f32 %v873, %v873
      %v1043 = vmul.f32 %v875, %v875
      %v1044 = vsel %vm942, %v1012, 0.0
      %v1045 = vsel %vm942, %v1013, 0.0
      %v1046 = vadd.f32 %v1044, %v1045
      %v1047 = vsel %vm942, %v1014, 0.0
      %v1048 = vadd.f32 %v1046, %v1047
      %v1049 = vsel %vm942, %v1015, 0.0
      %v1050 = vadd.f32 %v1048, %v1049
      %v1051 = vsel %vm942, %v1016, 0.0
      %v1052 = vadd.f32 %v1050, %v1051
      %v1053 = vsel %vm942, %v1017, 0.0
      %v1054 = vadd.f32 %v1052, %v1053
      %v1055 = vsel %vm942, %v1018, 0.0
      %v1056 = vadd.f32 %v1054, %v1055
      %v1057 = vsel %vm942, %v1019, 0.0
      %v1058 = vadd.f32 %v1056, %v1057
      %v1059 = vsel %vm942, %v1020, 0.0
      %v1060 = vadd.f32 %v1058, %v1059
      %v1061 = vsel %vm942, %v1021, 0.0
      %v1062 = vadd.f32 %v1060, %v1061
      %v1063 = vsel %vm942, %v1022, 0.0
      %v1064 = vadd.f32 %v1062, %v1063
      %v1065 = vsel %vm942, %v1023, 0.0
      %v1066 = vadd.f32 %v1064, %v1065
      %v1067 = vsel %vm942, %v1024, 0.0
      %v1068 = vadd.f32 %v1066, %v1067
      %v1069 = vsel %vm942, %v1025, 0.0
      %v1070 = vadd.f32 %v1068, %v1069
      %v1071 = vsel %vm942, %v1026, 0.0
      %v1072 = vadd.f32 %v1070, %v1071
      %v1073 = vsel %vm942, %v1027, 0.0
      %v1074 = vadd.f32 %v1072, %v1073
      %v1075 = vsel %vm942, %v1028, 0.0
      %v1076 = vadd.f32 %v1074, %v1075
      %v1077 = vsel %vm942, %v1029, 0.0
      %v1078 = vadd.f32 %v1076, %v1077
      %v1079 = vsel %vm942, %v1030, 0.0
      %v1080 = vadd.f32 %v1078, %v1079
      %v1081 = vsel %vm942, %v1031, 0.0
      %v1082 = vadd.f32 %v1080, %v1081
      %v1083 = vsel %vm942, %v1032, 0.0
      %v1084 = vadd.f32 %v1082, %v1083
      %v1085 = vsel %vm942, %v1033, 0.0
      %v1086 = vadd.f32 %v1084, %v1085
      %v1087 = vsel %vm942, %v1034, 0.0
      %v1088 = vadd.f32 %v1086, %v1087
      %v1089 = vsel %vm942, %v1035, 0.0
      %v1090 = vadd.f32 %v1088, %v1089
      %v1091 = vsel %vm942, %v1036, 0.0
      %v1092 = vadd.f32 %v1090, %v1091
      %v1093 = vsel %vm942, %v1037, 0.0
      %v1094 = vadd.f32 %v1092, %v1093
      %v1095 = vsel %vm942, %v1038, 0.0
      %v1096 = vadd.f32 %v1094, %v1095
      %v1097 = vsel %vm942, %v1039, 0.0
      %v1098 = vadd.f32 %v1096, %v1097
      %v1099 = vsel %vm942, %v1040, 0.0
      %v1100 = vadd.f32 %v1098, %v1099
      %v1101 = vsel %vm942, %v1041, 0.0
      %v1102 = vadd.f32 %v1100, %v1101
      %v1103 = vsel %vm942, %v1042, 0.0
      %v1104 = vadd.f32 %v1102, %v1103
      %v1105 = vsel %vm942, %v1043, 0.0
      %v1106 = vadd.f32 %v1104, %v1105
      %v1107 = vrot.slane %v1106, 4
      %v1108 = vadd.f32 %v1106, %v1107
      %v1109 = vrot.slane %v1108, 2
      %v1110 = vadd.f32 %v1108, %v1109
      %v1111 = vrot.slane %v1110, 1
      %v1112 = vadd.f32 %v1110, %v1111
      %v1113 = vsel %vm780, %v1011, %v1112
      %vm1114 = vcmask 123904
      %1115 = vst.msk [vmem:[%s288] sm:$0x3] %vm1114, %v1113
      %s1116 = smul.u32 32, %s18
      %p1117 = scmp.lt.s32.totalorder %s1116, 63
      %s1118 = scalar_select %p1117, %s1116, 63
      %s1119 = smul.addr %s1118, 4
      %s1120 = scalar_lea.vmem %s3, %s1119
      %p1121 = scmp.lt.s32.totalorder %s18, 1
      %s1122 = scalar_select %p1121, %s18, 1
      %s1123 = smul.addr %s1122, 2
      %s1124 = scalar_lea.vmem %s4, %s1123
      %s1125 = smul.u32 32, %s18
      %p1126 = scmp.lt.s32.totalorder %s1125, 63
      %s1127 = scalar_select %p1126, %s1125, 63
      %s1128 = smul.addr %s1127, 4
      %s1129 = scalar_lea.vmem %s5, %s1128
      %p1130 = scmp.lt.s32.totalorder %s18, 1
      %s1131 = scalar_select %p1130, %s18, 1
      %s1132 = smul.addr %s1131, 2
      %s1133 = scalar_lea.vmem %s6, %s1132
      // Predicated region
      $region33: #{bottleneck_forward.4} parent=31 // pred_check
        %p1134 = pneg %p104
      $region34: #{bottleneck_forward.4} parent=31 // pred_check_branch
        %1136 = sbr.rel (%p1134) target = $region36
      $region35: #{bottleneck_forward.4} parent=31 // pred_region
        %s1137 = smul.u32 32, %s18
      $region36: #{bottleneck_forward.4} parent=31 // pred_fallthru
        _
      // Predicated region
      $region37: #{bottleneck_forward.4} parent=31 // pred_check
        %p1138 = pneg %p130
      $region38: #{bottleneck_forward.4} parent=31 // pred_check_branch
        %1140 = sbr.rel (%p1138) target = $region40
      $region39: #{bottleneck_forward.4} parent=31 // pred_region
        _
      $region40: #{bottleneck_forward.4} parent=31 // pred_fallthru
        _
      // Predicated region
      $region41: #{bottleneck_forward.4} parent=31 // pred_check
        %p1141 = pneg %p156
      $region42: #{bottleneck_forward.4} parent=31 // pred_check_branch
        %1143 = sbr.rel (%p1141) target = $region44
      $region43: #{bottleneck_forward.4} parent=31 // pred_region
        %s1144 = smul.u32 32, %s18
      $region44: #{bottleneck_forward.4} parent=31 // pred_fallthru
        _
      // Predicated region
      $region45: #{bottleneck_forward.4} parent=31 // pred_check
        %p1145 = pneg %p182
      $region46: #{bottleneck_forward.4} parent=31 // pred_check_branch
        %1147 = sbr.rel (%p1145) target = $region48
      $region47: #{bottleneck_forward.4} parent=31 // pred_region
        _
      $region48: #{bottleneck_forward.4} parent=31 // pred_fallthru
        _
    $region32: #{bottleneck_forward.4} parent=5 // pred_fallthru
      _
    %p1148 = scmp.le.s32.totalorder 2, %s13
    // Predicated region
    $region49: #{bottleneck_forward.4} parent=5 // pred_check
      %p1149 = pneg %p1148
    $region50: #{bottleneck_forward.4} parent=5 // pred_check_branch
      %1151 = sbr.rel (%p1149) target = $region52
    $region51: #{bottleneck_forward.4} parent=5 // pred_region
      %s1152 = ssub.s32 %s13, 2
      // Predicated region
      $region53: #{bottleneck_forward.4} parent=51 // pred_check
        %p1153 = pneg %p110
      $region54: #{bottleneck_forward.4} parent=51 // pred_check_branch
        %1155 = sbr.rel (%p1153) target = $region56
      $region55: #{bottleneck_forward.4} parent=51 // pred_region
        %s1156 = smul.u32 32, %s19
        %p1157 = scmp.lt.s32.totalorder %s1156, 63
        %s1158 = scalar_select %p1157, %s1156, 63
        %s1159 = smul.addr %s1158, 4
        %s1160 = scalar_lea.vmem %s3, %s1159
      $region56: #{bottleneck_forward.4} parent=51 // pred_fallthru
        _
      // Predicated region
      $region57: #{bottleneck_forward.4} parent=51 // pred_check
        %p1161 = pneg %p136
      $region58: #{bottleneck_forward.4} parent=51 // pred_check_branch
        %1163 = sbr.rel (%p1161) target = $region60
      $region59: #{bottleneck_forward.4} parent=51 // pred_region
        %p1164 = scmp.lt.s32.totalorder %s19, 1
        %s1165 = scalar_select %p1164, %s19, 1
        %s1166 = smul.addr %s1165, 2
        %s1167 = scalar_lea.vmem %s4, %s1166
      $region60: #{bottleneck_forward.4} parent=51 // pred_fallthru
        _
      // Predicated region
      $region61: #{bottleneck_forward.4} parent=51 // pred_check
        %p1168 = pneg %p162
      $region62: #{bottleneck_forward.4} parent=51 // pred_check_branch
        %1170 = sbr.rel (%p1168) target = $region64
      $region63: #{bottleneck_forward.4} parent=51 // pred_region
        %s1171 = smul.u32 32, %s19
        %p1172 = scmp.lt.s32.totalorder %s1171, 63
        %s1173 = scalar_select %p1172, %s1171, 63
        %s1174 = smul.addr %s1173, 4
        %s1175 = scalar_lea.vmem %s5, %s1174
      $region64: #{bottleneck_forward.4} parent=51 // pred_fallthru
        _
      // Predicated region
      $region65: #{bottleneck_forward.4} parent=51 // pred_check
        %p1176 = pneg %p188
      $region66: #{bottleneck_forward.4} parent=51 // pred_check_branch
        %1178 = sbr.rel (%p1176) target = $region68
      $region67: #{bottleneck_forward.4} parent=51 // pred_region
        %p1179 = scmp.lt.s32.totalorder %s19, 1
        %s1180 = scalar_select %p1179, %s19, 1
        %s1181 = smul.addr %s1180, 2
        %s1182 = scalar_lea.vmem %s6, %s1181
      $region68: #{bottleneck_forward.4} parent=51 // pred_fallthru
        _
    $region52: #{bottleneck_forward.4} parent=5 // pred_fallthru
      _
  $region6: #{bottleneck_forward.4} parent=0 // loop_footer
    %s17 = sadd.s32 1, %s13
  $region7: #{bottleneck_forward.4} parent=0 // loop_footer_branch
    %12 = sbr.rel target = $region3
  $region8: #{bottleneck_forward.4} parent=0 // loop_exit
    _

// kernel: bottleneck_forward.7
$region0: #{bottleneck_forward.7}
  #allocation0 [shape = 'u32[]', space=smem, size = 0x4, offset = 0x4, fixed_abs, tag = 'smem constant byte address 0x4 - core index']
  #allocation1 [shape = 'u32[72,128]{1,0:T(1,128)}', space=vmem, size = 0x9000, scoped, tag = 'internal scratch']
  %s0 = inlined_call_operand.vmem [shape: bf16[512,16], index: 0, kind: input, shape index: {}]
  %s1 = inlined_call_operand.vmem [shape: f32[2,16], index: 1, kind: input, shape index: {}]
  %s2 = inlined_call_operand.vmem [shape: bf16[512,16], index: 2, kind: input, shape index: {}]
  %s3 = inlined_call_operand.vmem [shape: f32[2,16], index: 3, kind: input, shape index: {}]
  %s4 = inlined_call_operand.vmem [shape: f32[512,16], index: 4, kind: output, shape index: {}]
  %s5 = sld [smem:[#allocation0]]
  $region49: #{bottleneck_forward.7} parent=0
    _
  %s7 = ssub.s32 1, %s5
  %s8 = scalar_select 0, %s7, %s5
  loop: start=0, step=1, limit=4
  $region2: #{bottleneck_forward.7} parent=0 // loop_pre_header
    _
  $region3: #{bottleneck_forward.7} parent=0 // loop_header
    %s10 = sphi 0, %s14
    %p11 = scmp.ge.s32.totalorder %s10, 4
    %s20 = sphi 0, %s22
    %s23 = sphi 0, %s20
    %s24 = sphi 0, %s23
    %s40 = sphi 0, %s24
    %s44 = sphi 0, %s44
    %s46 = sphi 0, %s44
    %s47 = sphi 0, %s46
    %s61 = sphi 0, %s47
    %s67 = sphi 0, %s69
    %s70 = sphi 0, %s67
    %s71 = sphi 0, %s70
    %s87 = sphi 0, %s71
    %s91 = sphi 0, %s91
    %s93 = sphi 0, %s91
    %s94 = sphi 0, %s93
    %s108 = sphi 0, %s94
    %s114 = sphi 0, %s116
    %s117 = sphi 0, %s114
    %s118 = sphi 0, %s117
    %s134 = sphi 0, %s118
  $region4: #{bottleneck_forward.7} parent=0 // loop_header_branch
    %13 = sbr.rel (%p11) target = $region8
  $region5: #{bottleneck_forward.7} parent=0 // loop_body
    %s15 = ssub.s32 %s10, 1
    %s16 = ssub.s32 %s10, 2
    %s17 = sadd.s32 %s10, 1
    %s18 = ssub.s32 %s10, %s17
    %p19 = scmp.eq.s32.totalorder %s18, 0
    %s21 = sadd.s32 %s20, 1
    %s22 = scalar_select %p19, %s20, %s21
    %p25 = pneg %p19
    %p26 = scmp.eq.s32.totalorder %s10, 1
    %p27 = por %p25, %p26
    %p28 = scmp.ne.s32.totalorder %s20, %s23
    %p29 = scmp.eq.s32.totalorder %s10, 0
    %p30 = por %p28, %p29
    %p31 = scmp.ne.s32.totalorder %s20, %s23
    %p32 = scmp.eq.s32.totalorder %s15, 1
    %p33 = por %p31, %p32
    %p34 = scmp.ne.s32.totalorder %s23, %s24
    %p35 = scmp.eq.s32.totalorder %s15, 0
    %p36 = por %p34, %p35
    %p37 = scmp.ne.s32.totalorder %s23, %s24
    %p38 = scmp.eq.s32.totalorder %s16, 1
    %p39 = por %p37, %p38
    %p41 = scmp.ne.s32.totalorder %s24, %s40
    %p42 = scmp.eq.s32.totalorder %s16, 0
    %p43 = por %p41, %p42
    %s45 = sadd.s32 %s44, 1
    %p48 = scmp.eq.s32.totalorder %s10, 1
    %p49 = scmp.ne.s32.totalorder %s44, %s46
    %p50 = scmp.eq.s32.totalorder %s10, 0
    %p51 = por %p49, %p50
    %p52 = scmp.ne.s32.totalorder %s44, %s46
    %p53 = scmp.eq.s32.totalorder %s15, 1
    %p54 = por %p52, %p53
    %p55 = scmp.ne.s32.totalorder %s46, %s47
    %p56 = scmp.eq.s32.totalorder %s15, 0
    %p57 = por %p55, %p56
    %p58 = scmp.ne.s32.totalorder %s46, %s47
    %p59 = scmp.eq.s32.totalorder %s16, 1
    %p60 = por %p58, %p59
    %p62 = scmp.ne.s32.totalorder %s47, %s61
    %p63 = scmp.eq.s32.totalorder %s16, 0
    %p64 = por %p62, %p63
    %s65 = ssub.s32 %s10, %s17
    %p66 = scmp.eq.s32.totalorder %s65, 0
    %s68 = sadd.s32 %s67, 1
    %s69 = scalar_select %p66, %s67, %s68
    %p72 = pneg %p66
    %p73 = scmp.eq.s32.totalorder %s10, 1
    %p74 = por %p72, %p73
    %p75 = scmp.ne.s32.totalorder %s67, %s70
    %p76 = scmp.eq.s32.totalorder %s10, 0
    %p77 = por %p75, %p76
    %p78 = scmp.ne.s32.totalorder %s67, %s70
    %p79 = scmp.eq.s32.totalorder %s15, 1
    %p80 = por %p78, %p79
    %p81 = scmp.ne.s32.totalorder %s70, %s71
    %p82 = scmp.eq.s32.totalorder %s15, 0
    %p83 = por %p81, %p82
    %p84 = scmp.ne.s32.totalorder %s70, %s71
    %p85 = scmp.eq.s32.totalorder %s16, 1
    %p86 = por %p84, %p85
    %p88 = scmp.ne.s32.totalorder %s71, %s87
    %p89 = scmp.eq.s32.totalorder %s16, 0
    %p90 = por %p88, %p89
    %s92 = sadd.s32 %s91, 1
    %p95 = scmp.eq.s32.totalorder %s10, 1
    %p96 = scmp.ne.s32.totalorder %s91, %s93
    %p97 = scmp.eq.s32.totalorder %s10, 0
    %p98 = por %p96, %p97
    %p99 = scmp.ne.s32.totalorder %s91, %s93
    %p100 = scmp.eq.s32.totalorder %s15, 1
    %p101 = por %p99, %p100
    %p102 = scmp.ne.s32.totalorder %s93, %s94
    %p103 = scmp.eq.s32.totalorder %s15, 0
    %p104 = por %p102, %p103
    %p105 = scmp.ne.s32.totalorder %s93, %s94
    %p106 = scmp.eq.s32.totalorder %s16, 1
    %p107 = por %p105, %p106
    %p109 = scmp.ne.s32.totalorder %s94, %s108
    %p110 = scmp.eq.s32.totalorder %s16, 0
    %p111 = por %p109, %p110
    %s112 = ssub.s32 %s10, %s17
    %p113 = scmp.eq.s32.totalorder %s112, 0
    %s115 = sadd.s32 %s114, 1
    %s116 = scalar_select %p113, %s114, %s115
    %p119 = pneg %p113
    %p120 = scmp.eq.s32.totalorder %s10, 1
    %p121 = por %p119, %p120
    %p122 = scmp.ne.s32.totalorder %s114, %s117
    %p123 = scmp.eq.s32.totalorder %s10, 0
    %p124 = por %p122, %p123
    %p125 = scmp.ne.s32.totalorder %s114, %s117
    %p126 = scmp.eq.s32.totalorder %s15, 1
    %p127 = por %p125, %p126
    %p128 = scmp.ne.s32.totalorder %s117, %s118
    %p129 = scmp.eq.s32.totalorder %s15, 0
    %p130 = por %p128, %p129
    %p131 = scmp.ne.s32.totalorder %s117, %s118
    %p132 = scmp.eq.s32.totalorder %s16, 1
    %p133 = por %p131, %p132
    %p135 = scmp.ne.s32.totalorder %s118, %s134
    %p136 = scmp.eq.s32.totalorder %s16, 0
    %p137 = por %p135, %p136
    %p138 = scmp.le.s32.totalorder 1, %s10
    %p139 = scmp.lt.s32.totalorder %s10, 3
    %p140 = pnand %p138, %p139
    %p141 = pneg %p140
    // Predicated region
    $region9: #{bottleneck_forward.7} parent=5 // pred_check
      _
    $region10: #{bottleneck_forward.7} parent=5 // pred_check_branch
      %143 = sbr.rel (%p140) target = $region12
    $region11: #{bottleneck_forward.7} parent=5 // pred_region
      %s144 = ssub.s32 %s10, 1
      // Predicated region
      $region13: #{bottleneck_forward.7} parent=11 // pred_check
        %p145 = pneg %p57
      $region14: #{bottleneck_forward.7} parent=11 // pred_check_branch
        %147 = sbr.rel (%p145) target = $region16
      $region15: #{bottleneck_forward.7} parent=11 // pred_region
        _
      $region16: #{bottleneck_forward.7} parent=11 // pred_fallthru
        _
      // Predicated region
      $region17: #{bottleneck_forward.7} parent=11 // pred_check
        %p148 = pneg %p104
      $region18: #{bottleneck_forward.7} parent=11 // pred_check_branch
        %150 = sbr.rel (%p148) target = $region20
      $region19: #{bottleneck_forward.7} parent=11 // pred_region
        _
      $region20: #{bottleneck_forward.7} parent=11 // pred_fallthru
        _
    $region12: #{bottleneck_forward.7} parent=5 // pred_fallthru
      _
    %p151 = scmp.lt.s32.totalorder %s10, 2
    // Predicated region
    $region21: #{bottleneck_forward.7} parent=5 // pred_check
      %p152 = pneg %p151
    $region22: #{bottleneck_forward.7} parent=5 // pred_check_branch
      %154 = sbr.rel (%p152) target = $region24
    $region23: #{bottleneck_forward.7} parent=5 // pred_region
      // Predicated region
      $region25: #{bottleneck_forward.7} parent=23 // pred_check
        %p155 = pneg %p30
      $region26: #{bottleneck_forward.7} parent=23 // pred_check_branch
        %157 = sbr.rel (%p155) target = $region28
      $region27: #{bottleneck_forward.7} parent=23 // pred_region
        %s158 = smul.u32 32, %s10
        %p159 = scmp.lt.s32.totalorder %s158, 63
        %s160 = scalar_select %p159, %s158, 63
        %s161 = smul.addr %s160, 4
        %s162 = scalar_lea.vmem %s0, %s161
        %s163 = smul.u32 32, %s10
      $region28: #{bottleneck_forward.7} parent=23 // pred_fallthru
        _
      // Predicated region
      $region29: #{bottleneck_forward.7} parent=23 // pred_check
        %p164 = pneg %p77
      $region30: #{bottleneck_forward.7} parent=23 // pred_check_branch
        %166 = sbr.rel (%p164) target = $region32
      $region31: #{bottleneck_forward.7} parent=23 // pred_region
        %s167 = smul.u32 32, %s10
        %p168 = scmp.lt.s32.totalorder %s167, 63
        %s169 = scalar_select %p168, %s167, 63
        %s170 = smul.addr %s169, 4
        %s171 = scalar_lea.vmem %s2, %s170
        %s172 = smul.u32 32, %s10
      $region32: #{bottleneck_forward.7} parent=23 // pred_fallthru
        _
    $region24: #{bottleneck_forward.7} parent=5 // pred_fallthru
      _
    %p173 = scmp.le.s32.totalorder 1, %s10
    %p174 = scmp.lt.s32.totalorder %s10, 3
    %p175 = pnand %p173, %p174
    %p176 = pneg %p175
    // Predicated region
    $region33: #{bottleneck_forward.7} parent=5 // pred_check
      _
    $region34: #{bottleneck_forward.7} parent=5 // pred_check_branch
      %178 = sbr.rel (%p175) target = $region36
    $region35: #{bottleneck_forward.7} parent=5 // pred_region
      %s179 = ssub.s32 %s10, 1
      %s180 = smul.u32 32, %s15
      %p181 = scmp.lt.s32.totalorder %s180, 63
      %s182 = scalar_select %p181, %s180, 63
      %s183 = smul.addr %s182, 4
      %s184 = scalar_lea.vmem %s0, %s183
      %p185 = pneg %p36
      %p186 = pneg %p33
      %p187 = pneg %p57
      %p188 = pneg %p54
      %s189 = smul.u32 32, %s15
      %p190 = scmp.lt.s32.totalorder %s189, 63
      %s191 = scalar_select %p190, %s189, 63
      %s192 = smul.addr %s191, 4
      %s193 = scalar_lea.vmem %s2, %s192
      %p194 = pneg %p83
      %p195 = pneg %p80
      %p196 = pneg %p104
      %p197 = pneg %p101
      %p198 = pneg %p130
      %p199 = pneg %p127
      %s200 = smul.u32 32, %s15
      %p201 = scmp.lt.s32.totalorder %s200, 63
      %s202 = scalar_select %p201, %s200, 63
      %s203 = smul.addr %s202, 8
      %s204 = scalar_lea.vmem %s4, %s203
      %s205 = smul.u32 32, %s15
      %p206 = scmp.lt.s32.totalorder %s205, 63
      %s207 = scalar_select %p206, %s205, 63
      %s208 = smul.addr %s207, 4
      %s209 = scalar_lea.vmem %s0, %s208
      %s210 = smul.u32 32, %s15
      %s211 = smul.u32 32, %s15
      %p212 = scmp.lt.s32.totalorder %s211, 63
      %s213 = scalar_select %p212, %s211, 63
      %s214 = smul.addr %s213, 4
      %s215 = scalar_lea.vmem %s2, %s214
      %s216 = smul.u32 32, %s15
      %s217 = smul.u32 32, %s15
      %p218 = scmp.lt.s32.totalorder %s217, 63
      %s219 = scalar_select %p218, %s217, 63
      %s220 = smul.addr %s219, 8
      %s221 = scalar_lea.vmem %s4, %s220
      %s222 = smul.u32 32, %s15
      %v223 = vld [vmem:[%s1] sm:$0x3]
      %v224 = vld [vmem:[%s209] sm:$0xf]
      %v225 = vld [vmem:[%s209 + $0x4] sm:$0xf]
      %v226 = vld [vmem:[%s209 + $0x8] sm:$0xf]
      %v227 = vld [vmem:[%s209 + $0xc] sm:$0xf]
      %v228 = vld [vmem:[%s209 + $0x10] sm:$0xf]
      %v229 = vld [vmem:[%s209 + $0x14] sm:$0xf]
      %v230 = vld [vmem:[%s209 + $0x18] sm:$0xf]
      %v231 = vld [vmem:[%s209 + $0x1c] sm:$0xf]
      %v232 = vld [vmem:[%s209 + $0x20] sm:$0xf]
      %v233 = vld [vmem:[%s209 + $0x24] sm:$0xf]
      %v234 = vld [vmem:[%s209 + $0x28] sm:$0xf]
      %v235 = vld [vmem:[%s209 + $0x2c] sm:$0xf]
      %v236 = vld [vmem:[%s209 + $0x30] sm:$0xf]
      %v237 = vld [vmem:[%s209 + $0x34] sm:$0xf]
      %v238 = vld [vmem:[%s209 + $0x38] sm:$0xf]
      %v239 = vld [vmem:[%s209 + $0x3c] sm:$0xf]
      %v240 = vld [vmem:[%s209 + $0x40] sm:$0xf]
      %v241 = vld [vmem:[%s209 + $0x44] sm:$0xf]
      %v242 = vld [vmem:[%s209 + $0x48] sm:$0xf]
      %v243 = vld [vmem:[%s209 + $0x4c] sm:$0xf]
      %v244 = vld [vmem:[%s209 + $0x50] sm:$0xf]
      %v245 = vld [vmem:[%s209 + $0x54] sm:$0xf]
      %v246 = vld [vmem:[%s209 + $0x58] sm:$0xf]
      %v247 = vld [vmem:[%s209 + $0x5c] sm:$0xf]
      %v248 = vld [vmem:[%s209 + $0x60] sm:$0xf]
      %v249 = vld [vmem:[%s209 + $0x64] sm:$0xf]
      %v250 = vld [vmem:[%s209 + $0x68] sm:$0xf]
      %v251 = vld [vmem:[%s209 + $0x6c] sm:$0xf]
      %v252 = vld [vmem:[%s209 + $0x70] sm:$0xf]
      %v253 = vld [vmem:[%s209 + $0x74] sm:$0xf]
      %v254 = vld [vmem:[%s209 + $0x78] sm:$0xf]
      %v255 = vld [vmem:[%s209 + $0x7c] sm:$0xf]
      %v256 = vunpack.c.l.bf16 %v224
      %v257 = vunpack.c.l.bf16 %v225
      %v258 = vunpack.c.l.bf16 %v226
      %v259 = vunpack.c.l.bf16 %v227
      %v260 = vunpack.c.l.bf16 %v228
      %v261 = vunpack.c.l.bf16 %v229
      %v262 = vunpack.c.l.bf16 %v230
      %v263 = vunpack.c.l.bf16 %v231
      %v264 = vunpack.c.l.bf16 %v232
      %v265 = vunpack.c.l.bf16 %v233
      %v266 = vunpack.c.l.bf16 %v234
      %v267 = vunpack.c.l.bf16 %v235
      %v268 = vunpack.c.l.bf16 %v236
      %v269 = vunpack.c.l.bf16 %v237
      %v270 = vunpack.c.l.bf16 %v238
      %v271 = vunpack.c.l.bf16 %v239
      %v272 = vunpack.c.l.bf16 %v240
      %v273 = vunpack.c.l.bf16 %v241
      %v274 = vunpack.c.l.bf16 %v242
      %v275 = vunpack.c.l.bf16 %v243
      %v276 = vunpack.c.l.bf16 %v244
      %v277 = vunpack.c.l.bf16 %v245
      %v278 = vunpack.c.l.bf16 %v246
      %v279 = vunpack.c.l.bf16 %v247
      %v280 = vunpack.c.l.bf16 %v248
      %v281 = vunpack.c.l.bf16 %v249
      %v282 = vunpack.c.l.bf16 %v250
      %v283 = vunpack.c.l.bf16 %v251
      %v284 = vunpack.c.l.bf16 %v252
      %v285 = vunpack.c.l.bf16 %v253
      %v286 = vunpack.c.l.bf16 %v254
      %v287 = vunpack.c.l.bf16 %v255
      %v288 = vperm.slane %v223, 0
      %v289 = vmul.f32 %v256, %v288
      %v290 = vmul.f32 %v257, %v288
      %v291 = vmul.f32 %v258, %v288
      %v292 = vmul.f32 %v259, %v288
      %v293 = vmul.f32 %v260, %v288
      %v294 = vmul.f32 %v261, %v288
      %v295 = vmul.f32 %v262, %v288
      %v296 = vmul.f32 %v263, %v288
      %v297 = vmul.f32 %v264, %v288
      %v298 = vmul.f32 %v265, %v288
      %v299 = vmul.f32 %v266, %v288
      %v300 = vmul.f32 %v267, %v288
      %v301 = vmul.f32 %v268, %v288
      %v302 = vmul.f32 %v269, %v288
      %v303 = vmul.f32 %v270, %v288
      %v304 = vmul.f32 %v271, %v288
      %v305 = vmul.f32 %v272, %v288
      %v306 = vmul.f32 %v273, %v288
      %v307 = vmul.f32 %v274, %v288
      %v308 = vmul.f32 %v275, %v288
      %v309 = vmul.f32 %v276, %v288
      %v310 = vmul.f32 %v277, %v288
      %v311 = vmul.f32 %v278, %v288
      %v312 = vmul.f32 %v279, %v288
      %v313 = vmul.f32 %v280, %v288
      %v314 = vmul.f32 %v281, %v288
      %v315 = vmul.f32 %v282, %v288
      %v316 = vmul.f32 %v283, %v288
      %v317 = vmul.f32 %v284, %v288
      %v318 = vmul.f32 %v285, %v288
      %v319 = vmul.f32 %v286, %v288
      %v320 = vmul.f32 %v287, %v288
      %v321 = vperm.slane %v223, 1
      %v322 = vadd.f32 %v289, %v321
      %v323 = vadd.f32 %v290, %v321
      %v324 = vadd.f32 %v291, %v321
      %v325 = vadd.f32 %v292, %v321
      %v326 = vadd.f32 %v293, %v321
      %v327 = vadd.f32 %v294, %v321
      %v328 = vadd.f32 %v295, %v321
      %v329 = vadd.f32 %v296, %v321
      %v330 = vadd.f32 %v297, %v321
      %v331 = vadd.f32 %v298, %v321
      %v332 = vadd.f32 %v299, %v321
      %v333 = vadd.f32 %v300, %v321
      %v334 = vadd.f32 %v301, %v321
      %v335 = vadd.f32 %v302, %v321
      %v336 = vadd.f32 %v303, %v321
      %v337 = vadd.f32 %v304, %v321
      %v338 = vadd.f32 %v305, %v321
      %v339 = vadd.f32 %v306, %v321
      %v340 = vadd.f32 %v307, %v321
      %v341 = vadd.f32 %v308, %v321
      %v342 = vadd.f32 %v309, %v321
      %v343 = vadd.f32 %v310, %v321
      %v344 = vadd.f32 %v311, %v321
      %v345 = vadd.f32 %v312, %v321
      %v346 = vadd.f32 %v313, %v321
      %v347 = vadd.f32 %v314, %v321
      %v348 = vadd.f32 %v315, %v321
      %v349 = vadd.f32 %v316, %v321
      %v350 = vadd.f32 %v317, %v321
      %v351 = vadd.f32 %v318, %v321
      %v352 = vadd.f32 %v319, %v321
      %v353 = vadd.f32 %v320, %v321
      %v354 = vld [vmem:[%s215] sm:$0xf]
      %v355 = vld [vmem:[%s215 + $0x4] sm:$0xf]
      %v356 = vld [vmem:[%s215 + $0x8] sm:$0xf]
      %v357 = vld [vmem:[%s215 + $0xc] sm:$0xf]
      %v358 = vld [vmem:[%s215 + $0x10] sm:$0xf]
      %v359 = vld [vmem:[%s215 + $0x14] sm:$0xf]
      %v360 = vld [vmem:[%s215 + $0x18] sm:$0xf]
      %v361 = vld [vmem:[%s215 + $0x1c] sm:$0xf]
      %v362 = vld [vmem:[%s215 + $0x20] sm:$0xf]
      %v363 = vld [vmem:[%s215 + $0x24] sm:$0xf]
      %v364 = vld [vmem:[%s215 + $0x28] sm:$0xf]
      %v365 = vld [vmem:[%s215 + $0x2c] sm:$0xf]
      %v366 = vld [vmem:[%s215 + $0x30] sm:$0xf]
      %v367 = vld [vmem:[%s215 + $0x34] sm:$0xf]
      %v368 = vld [vmem:[%s215 + $0x38] sm:$0xf]
      %v369 = vld [vmem:[%s215 + $0x3c] sm:$0xf]
      %v370 = vld [vmem:[%s215 + $0x40] sm:$0xf]
      %v371 = vld [vmem:[%s215 + $0x44] sm:$0xf]
      %v372 = vld [vmem:[%s215 + $0x48] sm:$0xf]
      %v373 = vld [vmem:[%s215 + $0x4c] sm:$0xf]
      %v374 = vld [vmem:[%s215 + $0x50] sm:$0xf]
      %v375 = vld [vmem:[%s215 + $0x54] sm:$0xf]
      %v376 = vld [vmem:[%s215 + $0x58] sm:$0xf]
      %v377 = vld [vmem:[%s215 + $0x5c] sm:$0xf]
      %v378 = vld [vmem:[%s215 + $0x60] sm:$0xf]
      %v379 = vld [vmem:[%s215 + $0x64] sm:$0xf]
      %v380 = vld [vmem:[%s215 + $0x68] sm:$0xf]
      %v381 = vld [vmem:[%s215 + $0x6c] sm:$0xf]
      %v382 = vld [vmem:[%s215 + $0x70] sm:$0xf]
      %v383 = vld [vmem:[%s215 + $0x74] sm:$0xf]
      %v384 = vld [vmem:[%s215 + $0x78] sm:$0xf]
      %v385 = vld [vmem:[%s215 + $0x7c] sm:$0xf]
      %v386 = vunpack.c.l.bf16 %v354
      %v387 = vunpack.c.l.bf16 %v355
      %v388 = vunpack.c.l.bf16 %v356
      %v389 = vunpack.c.l.bf16 %v357
      %v390 = vunpack.c.l.bf16 %v358
      %v391 = vunpack.c.l.bf16 %v359
      %v392 = vunpack.c.l.bf16 %v360
      %v393 = vunpack.c.l.bf16 %v361
      %v394 = vunpack.c.l.bf16 %v362
      %v395 = vunpack.c.l.bf16 %v363
      %v396 = vunpack.c.l.bf16 %v364
      %v397 = vunpack.c.l.bf16 %v365
      %v398 = vunpack.c.l.bf16 %v366
      %v399 = vunpack.c.l.bf16 %v367
      %v400 = vunpack.c.l.bf16 %v368
      %v401 = vunpack.c.l.bf16 %v369
      %v402 = vunpack.c.l.bf16 %v370
      %v403 = vunpack.c.l.bf16 %v371
      %v404 = vunpack.c.l.bf16 %v372
      %v405 = vunpack.c.l.bf16 %v373
      %v406 = vunpack.c.l.bf16 %v374
      %v407 = vunpack.c.l.bf16 %v375
      %v408 = vunpack.c.l.bf16 %v376
      %v409 = vunpack.c.l.bf16 %v377
      %v410 = vunpack.c.l.bf16 %v378
      %v411 = vunpack.c.l.bf16 %v379
      %v412 = vunpack.c.l.bf16 %v380
      %v413 = vunpack.c.l.bf16 %v381
      %v414 = vunpack.c.l.bf16 %v382
      %v415 = vunpack.c.l.bf16 %v383
      %v416 = vunpack.c.l.bf16 %v384
      %v417 = vunpack.c.l.bf16 %v385
      %v418 = vld [vmem:[%s3] sm:$0x3]
      %v419 = vperm.slane %v418, 0
      %v420 = vmul.f32 %v386, %v419
      %v421 = vmul.f32 %v387, %v419
      %v422 = vmul.f32 %v388, %v419
      %v423 = vmul.f32 %v389, %v419
      %v424 = vmul.f32 %v390, %v419
      %v425 = vmul.f32 %v391, %v419
      %v426 = vmul.f32 %v392, %v419
      %v427 = vmul.f32 %v393, %v419
      %v428 = vmul.f32 %v394, %v419
      %v429 = vmul.f32 %v395, %v419
      %v430 = vmul.f32 %v396, %v419
      %v431 = vmul.f32 %v397, %v419
      %v432 = vmul.f32 %v398, %v419
      %v433 = vmul.f32 %v399, %v419
      %v434 = vmul.f32 %v400, %v419
      %v435 = vmul.f32 %v401, %v419
      %v436 = vmul.f32 %v402, %v419
      %v437 = vmul.f32 %v403, %v419
      %v438 = vmul.f32 %v404, %v419
      %v439 = vmul.f32 %v405, %v419
      %v440 = vmul.f32 %v406, %v419
      %v441 = vmul.f32 %v407, %v419
      %v442 = vmul.f32 %v408, %v419
      %v443 = vmul.f32 %v409, %v419
      %v444 = vmul.f32 %v410, %v419
      %v445 = vmul.f32 %v411, %v419
      %v446 = vmul.f32 %v412, %v419
      %v447 = vmul.f32 %v413, %v419
      %v448 = vmul.f32 %v414, %v419
      %v449 = vmul.f32 %v415, %v419
      %v450 = vmul.f32 %v416, %v419
      %v451 = vmul.f32 %v417, %v419
      %v452 = vperm.slane %v418, 1
      %v453 = vadd.f32 %v420, %v452
      %v454 = vadd.f32 %v421, %v452
      %v455 = vadd.f32 %v422, %v452
      %v456 = vadd.f32 %v423, %v452
      %v457 = vadd.f32 %v424, %v452
      %v458 = vadd.f32 %v425, %v452
      %v459 = vadd.f32 %v426, %v452
      %v460 = vadd.f32 %v427, %v452
      %v461 = vadd.f32 %v428, %v452
      %v462 = vadd.f32 %v429, %v452
      %v463 = vadd.f32 %v430, %v452
      %v464 = vadd.f32 %v431, %v452
      %v465 = vadd.f32 %v432, %v452
      %v466 = vadd.f32 %v433, %v452
      %v467 = vadd.f32 %v434, %v452
      %v468 = vadd.f32 %v435, %v452
      %v469 = vadd.f32 %v436, %v452
      %v470 = vadd.f32 %v437, %v452
      %v471 = vadd.f32 %v438, %v452
      %v472 = vadd.f32 %v439, %v452
      %v473 = vadd.f32 %v440, %v452
      %v474 = vadd.f32 %v441, %v452
      %v475 = vadd.f32 %v442, %v452
      %v476 = vadd.f32 %v443, %v452
      %v477 = vadd.f32 %v444, %v452
      %v478 = vadd.f32 %v445, %v452
      %v479 = vadd.f32 %v446, %v452
      %v480 = vadd.f32 %v447, %v452
      %v481 = vadd.f32 %v448, %v452
      %v482 = vadd.f32 %v449, %v452
      %v483 = vadd.f32 %v450, %v452
      %v484 = vadd.f32 %v451, %v452
      %v485 = vadd.f32 %v322, %v453
      %v486 = vadd.f32 %v323, %v454
      %v487 = vadd.f32 %v324, %v455
      %v488 = vadd.f32 %v325, %v456
      %v489 = vadd.f32 %v326, %v457
      %v490 = vadd.f32 %v327, %v458
      %v491 = vadd.f32 %v328, %v459
      %v492 = vadd.f32 %v329, %v460
      %v493 = vadd.f32 %v330, %v461
      %v494 = vadd.f32 %v331, %v462
      %v495 = vadd.f32 %v332, %v463
      %v496 = vadd.f32 %v333, %v464
      %v497 = vadd.f32 %v334, %v465
      %v498 = vadd.f32 %v335, %v466
      %v499 = vadd.f32 %v336, %v467
      %v500 = vadd.f32 %v337, %v468
      %v501 = vadd.f32 %v338, %v469
      %v502 = vadd.f32 %v339, %v470
      %v503 = vadd.f32 %v340, %v471
      %v504 = vadd.f32 %v341, %v472
      %v505 = vadd.f32 %v342, %v473
      %v506 = vadd.f32 %v343, %v474
      %v507 = vadd.f32 %v344, %v475
      %v508 = vadd.f32 %v345, %v476
      %v509 = vadd.f32 %v346, %v477
      %v510 = vadd.f32 %v347, %v478
      %v511 = vadd.f32 %v348, %v479
      %v512 = vadd.f32 %v349, %v480
      %v513 = vadd.f32 %v350, %v481
      %v514 = vadd.f32 %v351, %v482
      %v515 = vadd.f32 %v352, %v483
      %v516 = vadd.f32 %v353, %v484
      %v517 = vmax.f32 %v485, 0.0
      %v518 = vmax.f32 %v486, 0.0
      %v519 = vmax.f32 %v487, 0.0
      %v520 = vmax.f32 %v488, 0.0
      %v521 = vmax.f32 %v489, 0.0
      %v522 = vmax.f32 %v490, 0.0
      %v523 = vmax.f32 %v491, 0.0
      %v524 = vmax.f32 %v492, 0.0
      %v525 = vmax.f32 %v493, 0.0
      %v526 = vmax.f32 %v494, 0.0
      %v527 = vmax.f32 %v495, 0.0
      %v528 = vmax.f32 %v496, 0.0
      %v529 = vmax.f32 %v497, 0.0
      %v530 = vmax.f32 %v498, 0.0
      %v531 = vmax.f32 %v499, 0.0
      %v532 = vmax.f32 %v500, 0.0
      %v533 = vmax.f32 %v501, 0.0
      %v534 = vmax.f32 %v502, 0.0
      %v535 = vmax.f32 %v503, 0.0
      %v536 = vmax.f32 %v504, 0.0
      %v537 = vmax.f32 %v505, 0.0
      %v538 = vmax.f32 %v506, 0.0
      %v539 = vmax.f32 %v507, 0.0
      %v540 = vmax.f32 %v508, 0.0
      %v541 = vmax.f32 %v509, 0.0
      %v542 = vmax.f32 %v510, 0.0
      %v543 = vmax.f32 %v511, 0.0
      %v544 = vmax.f32 %v512, 0.0
      %v545 = vmax.f32 %v513, 0.0
      %v546 = vmax.f32 %v514, 0.0
      %v547 = vmax.f32 %v515, 0.0
      %v548 = vmax.f32 %v516, 0.0
      %vm549 = vcmask 130048
      %550 = vst.msk [vmem:[%s221] sm:$0xff] %vm549, %v517
      %551 = vst.msk [vmem:[%s221 + $0x8] sm:$0xff] %vm549, %v518
      %552 = vst.msk [vmem:[%s221 + $0x10] sm:$0xff] %vm549, %v519
      %553 = vst.msk [vmem:[%s221 + $0x18] sm:$0xff] %vm549, %v520
      %554 = vst.msk [vmem:[%s221 + $0x20] sm:$0xff] %vm549, %v521
      %555 = vst.msk [vmem:[%s221 + $0x28] sm:$0xff] %vm549, %v522
      %556 = vst.msk [vmem:[%s221 + $0x30] sm:$0xff] %vm549, %v523
      %557 = vst.msk [vmem:[%s221 + $0x38] sm:$0xff] %vm549, %v524
      %558 = vst.msk [vmem:[%s221 + $0x40] sm:$0xff] %vm549, %v525
      %559 = vst.msk [vmem:[%s221 + $0x48] sm:$0xff] %vm549, %v526
      %560 = vst.msk [vmem:[%s221 + $0x50] sm:$0xff] %vm549, %v527
      %561 = vst.msk [vmem:[%s221 + $0x58] sm:$0xff] %vm549, %v528
      %562 = vst.msk [vmem:[%s221 + $0x60] sm:$0xff] %vm549, %v529
      %563 = vst.msk [vmem:[%s221 + $0x68] sm:$0xff] %vm549, %v530
      %564 = vst.msk [vmem:[%s221 + $0x70] sm:$0xff] %vm549, %v531
      %565 = vst.msk [vmem:[%s221 + $0x78] sm:$0xff] %vm549, %v532
      %566 = vst.msk [vmem:[%s221 + $0x80] sm:$0xff] %vm549, %v533
      %567 = vst.msk [vmem:[%s221 + $0x88] sm:$0xff] %vm549, %v534
      %568 = vst.msk [vmem:[%s221 + $0x90] sm:$0xff] %vm549, %v535
      %569 = vst.msk [vmem:[%s221 + $0x98] sm:$0xff] %vm549, %v536
      %570 = vst.msk [vmem:[%s221 + $0xa0] sm:$0xff] %vm549, %v537
      %571 = vst.msk [vmem:[%s221 + $0xa8] sm:$0xff] %vm549, %v538
      %572 = vst.msk [vmem:[%s221 + $0xb0] sm:$0xff] %vm549, %v539
      %573 = vst.msk [vmem:[%s221 + $0xb8] sm:$0xff] %vm549, %v540
      %574 = vst.msk [vmem:[%s221 + $0xc0] sm:$0xff] %vm549, %v541
      %575 = vst.msk [vmem:[%s221 + $0xc8] sm:$0xff] %vm549, %v542
      %576 = vst.msk [vmem:[%s221 + $0xd0] sm:$0xff] %vm549, %v543
      %577 = vst.msk [vmem:[%s221 + $0xd8] sm:$0xff] %vm549, %v544
      %578 = vst.msk [vmem:[%s221 + $0xe0] sm:$0xff] %vm549, %v545
      %579 = vst.msk [vmem:[%s221 + $0xe8] sm:$0xff] %vm549, %v546
      %580 = vst.msk [vmem:[%s221 + $0xf0] sm:$0xff] %vm549, %v547
      %581 = vst.msk [vmem:[%s221 + $0xf8] sm:$0xff] %vm549, %v548
      %s582 = smul.u32 32, %s15
      %p583 = scmp.lt.s32.totalorder %s582, 63
      %s584 = scalar_select %p583, %s582, 63
      %s585 = smul.addr %s584, 8
      %s586 = scalar_lea.vmem %s4, %s585
      // Predicated region
      $region37: #{bottleneck_forward.7} parent=35 // pred_check
        %p587 = pneg %p127
      $region38: #{bottleneck_forward.7} parent=35 // pred_check_branch
        %589 = sbr.rel (%p587) target = $region40
      $region39: #{bottleneck_forward.7} parent=35 // pred_region
        %s590 = smul.u32 32, %s15
      $region40: #{bottleneck_forward.7} parent=35 // pred_fallthru
        _
    $region36: #{bottleneck_forward.7} parent=5 // pred_fallthru
      _
    %p591 = scmp.le.s32.totalorder 2, %s10
    // Predicated region
    $region41: #{bottleneck_forward.7} parent=5 // pred_check
      %p592 = pneg %p591
    $region42: #{bottleneck_forward.7} parent=5 // pred_check_branch
      %594 = sbr.rel (%p592) target = $region44
    $region43: #{bottleneck_forward.7} parent=5 // pred_region
      %s595 = ssub.s32 %s10, 2
      // Predicated region
      $region45: #{bottleneck_forward.7} parent=43 // pred_check
        %p596 = pneg %p133
      $region46: #{bottleneck_forward.7} parent=43 // pred_check_branch
        %598 = sbr.rel (%p596) target = $region48
      $region47: #{bottleneck_forward.7} parent=43 // pred_region
        %s599 = smul.u32 32, %s16
        %p600 = scmp.lt.s32.totalorder %s599, 63
        %s601 = scalar_select %p600, %s599, 63
        %s602 = smul.addr %s601, 8
        %s603 = scalar_lea.vmem %s4, %s602
      $region48: #{bottleneck_forward.7} parent=43 // pred_fallthru
        _
    $region44: #{bottleneck_forward.7} parent=5 // pred_fallthru
      _
  $region6: #{bottleneck_forward.7} parent=0 // loop_footer
    %s14 = sadd.s32 1, %s10
  $region7: #{bottleneck_forward.7} parent=0 // loop_footer_branch
    %9 = sbr.rel target = $region3
  $region8: #{bottleneck_forward.7} parent=0 // loop_exit
    _

// kernel: bottleneck_forward.5
$region0: #{bottleneck_forward.5}
  #allocation0 [shape = 'u32[]', space=smem, size = 0x4, offset = 0x4, fixed_abs, tag = 'smem constant byte address 0x4 - core index']
  #allocation1 [shape = 'u32[72,128]{1,0:T(1,128)}', space=vmem, size = 0x9000, scoped, tag = 'internal scratch']
  #allocation2 [shape = 'f32[18,18,4]{2,1,0:T(8,128)}', space=vmem, size = 0x36000, scoped, tag = 'scratch operand']
  %s0 = inlined_call_operand.vmem [shape: bf16[2,16,16,4], index: 0, kind: input, shape index: {}]
  %s1 = inlined_call_operand.vmem [shape: f32[2,4], index: 1, kind: input, shape index: {}]
  %s2 = inlined_call_operand.vmem [shape: bf16[9,4,4], index: 2, kind: input, shape index: {}]
  %s3 = inlined_call_operand.vmem [shape: bf16[2,16,16,4], index: 3, kind: output, shape index: {0}]
  %s4 = inlined_call_operand.vmem [shape: f32[2,2,4], index: 4, kind: output, shape index: {1}]
  %5 = xla_tuple %s3, %s4
  %s6 = sld [smem:[#allocation0]]
  $region53: #{bottleneck_forward.5} parent=0
    _
  %s8 = ssub.s32 1, %s6
  %s9 = scalar_select 0, %s8, %s6
  loop: start=0, step=1, limit=4
  $region2: #{bottleneck_forward.5} parent=0 // loop_pre_header
    _
  $region3: #{bottleneck_forward.5} parent=0 // loop_header
    %s11 = sphi 0, %s15
    %p12 = scmp.ge.s32.totalorder %s11, 4
    %s21 = sphi 0, %s23
    %s24 = sphi 0, %s21
    %s25 = sphi 0, %s24
    %s41 = sphi 0, %s25
    %s45 = sphi 0, %s45
    %s47 = sphi 0, %s45
    %s48 = sphi 0, %s47
    %s62 = sphi 0, %s48
    %s66 = sphi 0, %s66
    %s68 = sphi 0, %s66
    %s69 = sphi 0, %s68
    %s83 = sphi 0, %s69
    %s89 = sphi 0, %s91
    %s92 = sphi 0, %s89
    %s93 = sphi 0, %s92
    %s109 = sphi 0, %s93
    %s115 = sphi 0, %s117
    %s118 = sphi 0, %s115
    %s119 = sphi 0, %s118
    %s135 = sphi 0, %s119
  $region4: #{bottleneck_forward.5} parent=0 // loop_header_branch
    %14 = sbr.rel (%p12) target = $region8
  $region5: #{bottleneck_forward.5} parent=0 // loop_body
    %s16 = ssub.s32 %s11, 1
    %s17 = ssub.s32 %s11, 2
    %s18 = sadd.s32 %s11, 1
    %s19 = ssub.s32 %s11, %s18
    %p20 = scmp.eq.s32.totalorder %s19, 0
    %s22 = sadd.s32 %s21, 1
    %s23 = scalar_select %p20, %s21, %s22
    %p26 = pneg %p20
    %p27 = scmp.eq.s32.totalorder %s11, 1
    %p28 = por %p26, %p27
    %p29 = scmp.ne.s32.totalorder %s21, %s24
    %p30 = scmp.eq.s32.totalorder %s11, 0
    %p31 = por %p29, %p30
    %p32 = scmp.ne.s32.totalorder %s21, %s24
    %p33 = scmp.eq.s32.totalorder %s16, 1
    %p34 = por %p32, %p33
    %p35 = scmp.ne.s32.totalorder %s24, %s25
    %p36 = scmp.eq.s32.totalorder %s16, 0
    %p37 = por %p35, %p36
    %p38 = scmp.ne.s32.totalorder %s24, %s25
    %p39 = scmp.eq.s32.totalorder %s17, 1
    %p40 = por %p38, %p39
    %p42 = scmp.ne.s32.totalorder %s25, %s41
    %p43 = scmp.eq.s32.totalorder %s17, 0
    %p44 = por %p42, %p43
    %s46 = sadd.s32 %s45, 1
    %p49 = scmp.eq.s32.totalorder %s11, 1
    %p50 = scmp.ne.s32.totalorder %s45, %s47
    %p51 = scmp.eq.s32.totalorder %s11, 0
    %p52 = por %p50, %p51
    %p53 = scmp.ne.s32.totalorder %s45, %s47
    %p54 = scmp.eq.s32.totalorder %s16, 1
    %p55 = por %p53, %p54
    %p56 = scmp.ne.s32.totalorder %s47, %s48
    %p57 = scmp.eq.s32.totalorder %s16, 0
    %p58 = por %p56, %p57
    %p59 = scmp.ne.s32.totalorder %s47, %s48
    %p60 = scmp.eq.s32.totalorder %s17, 1
    %p61 = por %p59, %p60
    %p63 = scmp.ne.s32.totalorder %s48, %s62
    %p64 = scmp.eq.s32.totalorder %s17, 0
    %p65 = por %p63, %p64
    %s67 = sadd.s32 %s66, 1
    %p70 = scmp.eq.s32.totalorder %s11, 1
    %p71 = scmp.ne.s32.totalorder %s66, %s68
    %p72 = scmp.eq.s32.totalorder %s11, 0
    %p73 = por %p71, %p72
    %p74 = scmp.ne.s32.totalorder %s66, %s68
    %p75 = scmp.eq.s32.totalorder %s16, 1
    %p76 = por %p74, %p75
    %p77 = scmp.ne.s32.totalorder %s68, %s69
    %p78 = scmp.eq.s32.totalorder %s16, 0
    %p79 = por %p77, %p78
    %p80 = scmp.ne.s32.totalorder %s68, %s69
    %p81 = scmp.eq.s32.totalorder %s17, 1
    %p82 = por %p80, %p81
    %p84 = scmp.ne.s32.totalorder %s69, %s83
    %p85 = scmp.eq.s32.totalorder %s17, 0
    %p86 = por %p84, %p85
    %s87 = ssub.s32 %s11, %s18
    %p88 = scmp.eq.s32.totalorder %s87, 0
    %s90 = sadd.s32 %s89, 1
    %s91 = scalar_select %p88, %s89, %s90
    %p94 = pneg %p88
    %p95 = scmp.eq.s32.totalorder %s11, 1
    %p96 = por %p94, %p95
    %p97 = scmp.ne.s32.totalorder %s89, %s92
    %p98 = scmp.eq.s32.totalorder %s11, 0
    %p99 = por %p97, %p98
    %p100 = scmp.ne.s32.totalorder %s89, %s92
    %p101 = scmp.eq.s32.totalorder %s16, 1
    %p102 = por %p100, %p101
    %p103 = scmp.ne.s32.totalorder %s92, %s93
    %p104 = scmp.eq.s32.totalorder %s16, 0
    %p105 = por %p103, %p104
    %p106 = scmp.ne.s32.totalorder %s92, %s93
    %p107 = scmp.eq.s32.totalorder %s17, 1
    %p108 = por %p106, %p107
    %p110 = scmp.ne.s32.totalorder %s93, %s109
    %p111 = scmp.eq.s32.totalorder %s17, 0
    %p112 = por %p110, %p111
    %s113 = ssub.s32 %s11, %s18
    %p114 = scmp.eq.s32.totalorder %s113, 0
    %s116 = sadd.s32 %s115, 1
    %s117 = scalar_select %p114, %s115, %s116
    %p120 = pneg %p114
    %p121 = scmp.eq.s32.totalorder %s11, 1
    %p122 = por %p120, %p121
    %p123 = scmp.ne.s32.totalorder %s115, %s118
    %p124 = scmp.eq.s32.totalorder %s11, 0
    %p125 = por %p123, %p124
    %p126 = scmp.ne.s32.totalorder %s115, %s118
    %p127 = scmp.eq.s32.totalorder %s16, 1
    %p128 = por %p126, %p127
    %p129 = scmp.ne.s32.totalorder %s118, %s119
    %p130 = scmp.eq.s32.totalorder %s16, 0
    %p131 = por %p129, %p130
    %p132 = scmp.ne.s32.totalorder %s118, %s119
    %p133 = scmp.eq.s32.totalorder %s17, 1
    %p134 = por %p132, %p133
    %p136 = scmp.ne.s32.totalorder %s119, %s135
    %p137 = scmp.eq.s32.totalorder %s17, 0
    %p138 = por %p136, %p137
    %p139 = scmp.le.s32.totalorder 1, %s11
    %p140 = scmp.lt.s32.totalorder %s11, 3
    %p141 = pnand %p139, %p140
    %p142 = pneg %p141
    // Predicated region
    $region9: #{bottleneck_forward.5} parent=5 // pred_check
      _
    $region10: #{bottleneck_forward.5} parent=5 // pred_check_branch
      %144 = sbr.rel (%p141) target = $region12
    $region11: #{bottleneck_forward.5} parent=5 // pred_region
      %s145 = ssub.s32 %s11, 1
      // Predicated region
      $region13: #{bottleneck_forward.5} parent=11 // pred_check
        %p146 = pneg %p58
      $region14: #{bottleneck_forward.5} parent=11 // pred_check_branch
        %148 = sbr.rel (%p146) target = $region16
      $region15: #{bottleneck_forward.5} parent=11 // pred_region
        _
      $region16: #{bottleneck_forward.5} parent=11 // pred_fallthru
        _
      // Predicated region
      $region17: #{bottleneck_forward.5} parent=11 // pred_check
        %p149 = pneg %p79
      $region18: #{bottleneck_forward.5} parent=11 // pred_check_branch
        %151 = sbr.rel (%p149) target = $region20
      $region19: #{bottleneck_forward.5} parent=11 // pred_region
        _
      $region20: #{bottleneck_forward.5} parent=11 // pred_fallthru
        _
    $region12: #{bottleneck_forward.5} parent=5 // pred_fallthru
      _
    %p152 = scmp.lt.s32.totalorder %s11, 2
    // Predicated region
    $region21: #{bottleneck_forward.5} parent=5 // pred_check
      %p153 = pneg %p152
    $region22: #{bottleneck_forward.5} parent=5 // pred_check_branch
      %155 = sbr.rel (%p153) target = $region24
    $region23: #{bottleneck_forward.5} parent=5 // pred_region
      // Predicated region
      $region25: #{bottleneck_forward.5} parent=23 // pred_check
        %p156 = pneg %p31
      $region26: #{bottleneck_forward.5} parent=23 // pred_check_branch
        %158 = sbr.rel (%p156) target = $region28
      $region27: #{bottleneck_forward.5} parent=23 // pred_region
        %p159 = scmp.lt.s32.totalorder %s11, 1
        %s160 = scalar_select %p159, %s11, 1
        %s161 = smul.addr %s160, 32
        %s162 = smul.addr %s161, 4
        %s163 = scalar_lea.vmem %s0, %s162
      $region28: #{bottleneck_forward.5} parent=23 // pred_fallthru
        _
    $region24: #{bottleneck_forward.5} parent=5 // pred_fallthru
      _
    %p164 = scmp.le.s32.totalorder 1, %s11
    %p165 = scmp.lt.s32.totalorder %s11, 3
    %p166 = pnand %p164, %p165
    %p167 = pneg %p166
    // Predicated region
    $region29: #{bottleneck_forward.5} parent=5 // pred_check
      _
    $region30: #{bottleneck_forward.5} parent=5 // pred_check_branch
      %169 = sbr.rel (%p166) target = $region32
    $region31: #{bottleneck_forward.5} parent=5 // pred_region
      %s170 = ssub.s32 %s11, 1
      %p171 = scmp.lt.s32.totalorder %s16, 1
      %s172 = scalar_select %p171, %s16, 1
      %s173 = smul.addr %s172, 32
      %s174 = smul.addr %s173, 4
      %s175 = scalar_lea.vmem %s0, %s174
      %p176 = pneg %p37
      %p177 = pneg %p34
      %p178 = pneg %p58
      %p179 = pneg %p55
      %p180 = pneg %p79
      %p181 = pneg %p76
      %p182 = pneg %p105
      %p183 = pneg %p102
      %p184 = scmp.lt.s32.totalorder %s16, 1
      %s185 = scalar_select %p184, %s16, 1
      %s186 = smul.addr %s185, 32
      %s187 = smul.addr %s186, 4
      %s188 = scalar_lea.vmem %s3, %s187
      %p189 = pneg %p131
      %p190 = pneg %p128
      %p191 = scmp.lt.s32.totalorder %s16, 1
      %s192 = scalar_select %p191, %s16, 1
      %s193 = smul.addr %s192, 2
      %s194 = scalar_lea.vmem %s4, %s193
      %p195 = scmp.lt.s32.totalorder %s16, 1
      %s196 = scalar_select %p195, %s16, 1
      %s197 = smul.addr %s196, 32
      %s198 = smul.addr %s197, 4
      %s199 = scalar_lea.vmem %s0, %s198
      %p200 = scmp.lt.s32.totalorder %s16, 1
      %s201 = scalar_select %p200, %s16, 1
      %s202 = smul.addr %s201, 32
      %s203 = smul.addr %s202, 4
      %s204 = scalar_lea.vmem %s3, %s203
      %p205 = scmp.lt.s32.totalorder %s16, 1
      %s206 = scalar_select %p205, %s16, 1
      %s207 = smul.addr %s206, 2
      %s208 = scalar_lea.vmem %s4, %s207
      %v210 = vld [vmem:[%s1] sm:$0x3]
      %v211 = vld [vmem:[%s199] sm:$0xf]
      %v212 = vld [vmem:[%s199 + $0x4] sm:$0xf]
      %v213 = vld [vmem:[%s199 + $0x8] sm:$0xf]
      %v214 = vld [vmem:[%s199 + $0xc] sm:$0xf]
      %v215 = vld [vmem:[%s199 + $0x10] sm:$0xf]
      %v216 = vld [vmem:[%s199 + $0x14] sm:$0xf]
      %v217 = vld [vmem:[%s199 + $0x18] sm:$0xf]
      %v218 = vld [vmem:[%s199 + $0x1c] sm:$0xf]
      %v219 = vld [vmem:[%s199 + $0x20] sm:$0xf]
      %v220 = vld [vmem:[%s199 + $0x24] sm:$0xf]
      %v221 = vld [vmem:[%s199 + $0x28] sm:$0xf]
      %v222 = vld [vmem:[%s199 + $0x2c] sm:$0xf]
      %v223 = vld [vmem:[%s199 + $0x30] sm:$0xf]
      %v224 = vld [vmem:[%s199 + $0x34] sm:$0xf]
      %v225 = vld [vmem:[%s199 + $0x38] sm:$0xf]
      %v226 = vld [vmem:[%s199 + $0x3c] sm:$0xf]
      %v227 = vld [vmem:[%s199 + $0x40] sm:$0xf]
      %v228 = vld [vmem:[%s199 + $0x44] sm:$0xf]
      %v229 = vld [vmem:[%s199 + $0x48] sm:$0xf]
      %v230 = vld [vmem:[%s199 + $0x4c] sm:$0xf]
      %v231 = vld [vmem:[%s199 + $0x50] sm:$0xf]
      %v232 = vld [vmem:[%s199 + $0x54] sm:$0xf]
      %v233 = vld [vmem:[%s199 + $0x58] sm:$0xf]
      %v234 = vld [vmem:[%s199 + $0x5c] sm:$0xf]
      %v235 = vld [vmem:[%s199 + $0x60] sm:$0xf]
      %v236 = vld [vmem:[%s199 + $0x64] sm:$0xf]
      %v237 = vld [vmem:[%s199 + $0x68] sm:$0xf]
      %v238 = vld [vmem:[%s199 + $0x6c] sm:$0xf]
      %v239 = vld [vmem:[%s199 + $0x70] sm:$0xf]
      %v240 = vld [vmem:[%s199 + $0x74] sm:$0xf]
      %v241 = vld [vmem:[%s199 + $0x78] sm:$0xf]
      %v242 = vld [vmem:[%s199 + $0x7c] sm:$0xf]
      %v243 = vunpack.c.l.bf16 %v211
      %v244 = vunpack.c.l.bf16 %v212
      %v245 = vunpack.c.l.bf16 %v213
      %v246 = vunpack.c.l.bf16 %v214
      %v247 = vunpack.c.l.bf16 %v215
      %v248 = vunpack.c.l.bf16 %v216
      %v249 = vunpack.c.l.bf16 %v217
      %v250 = vunpack.c.l.bf16 %v218
      %v251 = vunpack.c.l.bf16 %v219
      %v252 = vunpack.c.l.bf16 %v220
      %v253 = vunpack.c.l.bf16 %v221
      %v254 = vunpack.c.l.bf16 %v222
      %v255 = vunpack.c.l.bf16 %v223
      %v256 = vunpack.c.l.bf16 %v224
      %v257 = vunpack.c.l.bf16 %v225
      %v258 = vunpack.c.l.bf16 %v226
      %v259 = vunpack.c.l.bf16 %v227
      %v260 = vunpack.c.l.bf16 %v228
      %v261 = vunpack.c.l.bf16 %v229
      %v262 = vunpack.c.l.bf16 %v230
      %v263 = vunpack.c.l.bf16 %v231
      %v264 = vunpack.c.l.bf16 %v232
      %v265 = vunpack.c.l.bf16 %v233
      %v266 = vunpack.c.l.bf16 %v234
      %v267 = vunpack.c.l.bf16 %v235
      %v268 = vunpack.c.l.bf16 %v236
      %v269 = vunpack.c.l.bf16 %v237
      %v270 = vunpack.c.l.bf16 %v238
      %v271 = vunpack.c.l.bf16 %v239
      %v272 = vunpack.c.l.bf16 %v240
      %v273 = vunpack.c.l.bf16 %v241
      %v274 = vunpack.c.l.bf16 %v242
      %v275 = vperm.slane %v210, 0
      %v276 = vmul.f32 %v243, %v275
      %v277 = vmul.f32 %v244, %v275
      %v278 = vmul.f32 %v245, %v275
      %v279 = vmul.f32 %v246, %v275
      %v280 = vmul.f32 %v247, %v275
      %v281 = vmul.f32 %v248, %v275
      %v282 = vmul.f32 %v249, %v275
      %v283 = vmul.f32 %v250, %v275
      %v284 = vmul.f32 %v251, %v275
      %v285 = vmul.f32 %v252, %v275
      %v286 = vmul.f32 %v253, %v275
      %v287 = vmul.f32 %v254, %v275
      %v288 = vmul.f32 %v255, %v275
      %v289 = vmul.f32 %v256, %v275
      %v290 = vmul.f32 %v257, %v275
      %v291 = vmul.f32 %v258, %v275
      %v292 = vmul.f32 %v259, %v275
      %v293 = vmul.f32 %v260, %v275
      %v294 = vmul.f32 %v261, %v275
      %v295 = vmul.f32 %v262, %v275
      %v296 = vmul.f32 %v263, %v275
      %v297 = vmul.f32 %v264, %v275
      %v298 = vmul.f32 %v265, %v275
      %v299 = vmul.f32 %v266, %v275
      %v300 = vmul.f32 %v267, %v275
      %v301 = vmul.f32 %v268, %v275
      %v302 = vmul.f32 %v269, %v275
      %v303 = vmul.f32 %v270, %v275
      %v304 = vmul.f32 %v271, %v275
      %v305 = vmul.f32 %v272, %v275
      %v306 = vmul.f32 %v273, %v275
      %v307 = vmul.f32 %v274, %v275
      %v308 = vperm.slane %v210, 1
      %v309 = vadd.f32 %v276, %v308
      %v310 = vadd.f32 %v277, %v308
      %v311 = vadd.f32 %v278, %v308
      %v312 = vadd.f32 %v279, %v308
      %v313 = vadd.f32 %v280, %v308
      %v314 = vadd.f32 %v281, %v308
      %v315 = vadd.f32 %v282, %v308
      %v316 = vadd.f32 %v283, %v308
      %v317 = vadd.f32 %v284, %v308
      %v318 = vadd.f32 %v285, %v308
      %v319 = vadd.f32 %v286, %v308
      %v320 = vadd.f32 %v287, %v308
      %v321 = vadd.f32 %v288, %v308
      %v322 = vadd.f32 %v289, %v308
      %v323 = vadd.f32 %v290, %v308
      %v324 = vadd.f32 %v291, %v308
      %v325 = vadd.f32 %v292, %v308
      %v326 = vadd.f32 %v293, %v308
      %v327 = vadd.f32 %v294, %v308
      %v328 = vadd.f32 %v295, %v308
      %v329 = vadd.f32 %v296, %v308
      %v330 = vadd.f32 %v297, %v308
      %v331 = vadd.f32 %v298, %v308
      %v332 = vadd.f32 %v299, %v308
      %v333 = vadd.f32 %v300, %v308
      %v334 = vadd.f32 %v301, %v308
      %v335 = vadd.f32 %v302, %v308
      %v336 = vadd.f32 %v303, %v308
      %v337 = vadd.f32 %v304, %v308
      %v338 = vadd.f32 %v305, %v308
      %v339 = vadd.f32 %v306, %v308
      %v340 = vadd.f32 %v307, %v308
      %v341 = vmax.f32 %v309, 0.0
      %v342 = vmax.f32 %v310, 0.0
      %v343 = vmax.f32 %v311, 0.0
      %v344 = vmax.f32 %v312, 0.0
      %v345 = vmax.f32 %v313, 0.0
      %v346 = vmax.f32 %v314, 0.0
      %v347 = vmax.f32 %v315, 0.0
      %v348 = vmax.f32 %v316, 0.0
      %v349 = vmax.f32 %v317, 0.0
      %v350 = vmax.f32 %v318, 0.0
      %v351 = vmax.f32 %v319, 0.0
      %v352 = vmax.f32 %v320, 0.0
      %v353 = vmax.f32 %v321, 0.0
      %v354 = vmax.f32 %v322, 0.0
      %v355 = vmax.f32 %v323, 0.0
      %v356 = vmax.f32 %v324, 0.0
      %v357 = vmax.f32 %v325, 0.0
      %v358 = vmax.f32 %v326, 0.0
      %v359 = vmax.f32 %v327, 0.0
      %v360 = vmax.f32 %v328, 0.0
      %v361 = vmax.f32 %v329, 0.0
      %v362 = vmax.f32 %v330, 0.0
      %v363 = vmax.f32 %v331, 0.0
      %v364 = vmax.f32 %v332, 0.0
      %v365 = vmax.f32 %v333, 0.0
      %v366 = vmax.f32 %v334, 0.0
      %v367 = vmax.f32 %v335, 0.0
      %v368 = vmax.f32 %v336, 0.0
      %v369 = vmax.f32 %v337, 0.0
      %v370 = vmax.f32 %v338, 0.0
      %v371 = vmax.f32 %v339, 0.0
      %v372 = vmax.f32 %v340, 0.0
      %vm373 = vcmask 31744
      %374 = vst.msk [vmem:[#allocation2] sm:$0xff] %vm373, 0.0
      %375 = vst.msk [vmem:[#allocation2 + $0x8] sm:$0xff] %vm373, 0.0
      %vm376 = vcmask 25600
      %377 = vst.msk [vmem:[#allocation2 + $0x10] sm:$0x3] %vm376, 0.0
      %s378 = scalar_lea.vmem [#allocation2], 408
      %379 = vst.msk [vmem:[%s378] sm:$0xff] %vm373, 0.0
      %380 = vst.msk [vmem:[%s378 + $0x8] sm:$0xff] %vm373, 0.0
      %381 = vst.msk [vmem:[%s378 + $0x10] sm:$0x3] %vm376, 0.0
      %s382 = scalar_lea.vmem [#allocation2], 24
      %vm383 = vcmask 24576
      %384 = vst.msk [vmem:[%s382] sm:$0x1] %vm383, 0.0
      %385 = vst.msk [vmem:[%s382 + $0x18] sm:$0x1] %vm383, 0.0
      %386 = vst.msk [vmem:[%s382 + $0x30] sm:$0x1] %vm383, 0.0
      %387 = vst.msk [vmem:[%s382 + $0x48] sm:$0x1] %vm383, 0.0
      %388 = vst.msk [vmem:[%s382 + $0x60] sm:$0x1] %vm383, 0.0
      %389 = vst.msk [vmem:[%s382 + $0x78] sm:$0x1] %vm383, 0.0
      %390 = vst.msk [vmem:[%s382 + $0x90] sm:$0x1] %vm383, 0.0
      %391 = vst.msk [vmem:[%s382 + $0xa8] sm:$0x1] %vm383, 0.0
      %392 = vst.msk [vmem:[%s382 + $0xc0] sm:$0x1] %vm383, 0.0
      %393 = vst.msk [vmem:[%s382 + $0xd8] sm:$0x1] %vm383, 0.0
      %394 = vst.msk [vmem:[%s382 + $0xf0] sm:$0x1] %vm383, 0.0
      %395 = vst.msk [vmem:[%s382 + $0x108] sm:$0x1] %vm383, 0.0
      %396 = vst.msk [vmem:[%s382 + $0x120] sm:$0x1] %vm383, 0.0
      %397 = vst.msk [vmem:[%s382 + $0x138] sm:$0x1] %vm383, 0.0
      %398 = vst.msk [vmem:[%s382 + $0x150] sm:$0x1] %vm383, 0.0
      %399 = vst.msk [vmem:[%s382 + $0x168] sm:$0x1] %vm383, 0.0
      %400 = vst.msk [vmem:[%s382 + $0x11] sm:$0x1] %vm383, 0.0
      %401 = vst.msk [vmem:[%s382 + $0x29] sm:$0x1] %vm383, 0.0
      %402 = vst.msk [vmem:[%s382 + $0x41] sm:$0x1] %vm383, 0.0
      %403 = vst.msk [vmem:[%s382 + $0x59] sm:$0x1] %vm383, 0.0
      %404 = vst.msk [vmem:[%s382 + $0x71] sm:$0x1] %vm383, 0.0
      %405 = vst.msk [vmem:[%s382 + $0x89] sm:$0x1] %vm383, 0.0
      %406 = vst.msk [vmem:[%s382 + $0xa1] sm:$0x1] %vm383, 0.0
      %407 = vst.msk [vmem:[%s382 + $0xb9] sm:$0x1] %vm383, 0.0
      %408 = vst.msk [vmem:[%s382 + $0xd1] sm:$0x1] %vm383, 0.0
      %409 = vst.msk [vmem:[%s382 + $0xe9] sm:$0x1] %vm383, 0.0
      %410 = vst.msk [vmem:[%s382 + $0x101] sm:$0x1] %vm383, 0.0
      %411 = vst.msk [vmem:[%s382 + $0x119] sm:$0x1] %vm383, 0.0
      %412 = vst.msk [vmem:[%s382 + $0x131] sm:$0x1] %vm383, 0.0
      %413 = vst.msk [vmem:[%s382 + $0x149] sm:$0x1] %vm383, 0.0
      %414 = vst.msk [vmem:[%s382 + $0x161] sm:$0x1] %vm383, 0.0
      %415 = vst.msk [vmem:[%s382 + $0x179] sm:$0x1] %vm383, 0.0
      %416 = vst.msk [vmem:[%s382 + $0x1] sm:$0xff] %vm373, %v341
      %417 = vst.msk [vmem:[%s382 + $0x9] sm:$0xff] %vm373, %v342
      %418 = vst.msk [vmem:[%s382 + $0x19] sm:$0xff] %vm373, %v343
      %419 = vst.msk [vmem:[%s382 + $0x21] sm:$0xff] %vm373, %v344
      %420 = vst.msk [vmem:[%s382 + $0x31] sm:$0xff] %vm373, %v345
      %421 = vst.msk [vmem:[%s382 + $0x39] sm:$0xff] %vm373, %v346
      %422 = vst.msk [vmem:[%s382 + $0x49] sm:$0xff] %vm373, %v347
      %423 = vst.msk [vmem:[%s382 + $0x51] sm:$0xff] %vm373, %v348
      %424 = vst.msk [vmem:[%s382 + $0x61] sm:$0xff] %vm373, %v349
      %425 = vst.msk [vmem:[%s382 + $0x69] sm:$0xff] %vm373, %v350
      %426 = vst.msk [vmem:[%s382 + $0x79] sm:$0xff] %vm373, %v351
      %427 = vst.msk [vmem:[%s382 + $0x81] sm:$0xff] %vm373, %v352
      %428 = vst.msk [vmem:[%s382 + $0x91] sm:$0xff] %vm373, %v353
      %429 = vst.msk [vmem:[%s382 + $0x99] sm:$0xff] %vm373, %v354
      %430 = vst.msk [vmem:[%s382 + $0xa9] sm:$0xff] %vm373, %v355
      %431 = vst.msk [vmem:[%s382 + $0xb1] sm:$0xff] %vm373, %v356
      %432 = vst.msk [vmem:[%s382 + $0xc1] sm:$0xff] %vm373, %v357
      %433 = vst.msk [vmem:[%s382 + $0xc9] sm:$0xff] %vm373, %v358
      %434 = vst.msk [vmem:[%s382 + $0xd9] sm:$0xff] %vm373, %v359
      %435 = vst.msk [vmem:[%s382 + $0xe1] sm:$0xff] %vm373, %v360
      %436 = vst.msk [vmem:[%s382 + $0xf1] sm:$0xff] %vm373, %v361
      %437 = vst.msk [vmem:[%s382 + $0xf9] sm:$0xff] %vm373, %v362
      %438 = vst.msk [vmem:[%s382 + $0x109] sm:$0xff] %vm373, %v363
      %439 = vst.msk [vmem:[%s382 + $0x111] sm:$0xff] %vm373, %v364
      %440 = vst.msk [vmem:[%s382 + $0x121] sm:$0xff] %vm373, %v365
      %441 = vst.msk [vmem:[%s382 + $0x129] sm:$0xff] %vm373, %v366
      %442 = vst.msk [vmem:[%s382 + $0x139] sm:$0xff] %vm373, %v367
      %443 = vst.msk [vmem:[%s382 + $0x141] sm:$0xff] %vm373, %v368
      %444 = vst.msk [vmem:[%s382 + $0x151] sm:$0xff] %vm373, %v369
      %445 = vst.msk [vmem:[%s382 + $0x159] sm:$0xff] %vm373, %v370
      %446 = vst.msk [vmem:[%s382 + $0x169] sm:$0xff] %vm373, %v371
      %447 = vst.msk [vmem:[%s382 + $0x171] sm:$0xff] %vm373, %v372
      %v448 = vld [vmem:[#allocation2] sm:$0xff]
      %v449 = vld [vmem:[#allocation2 + $0x8] sm:$0xff]
      %v450 = vld [vmem:[#allocation2 + $0x18] sm:$0xff]
      %v451 = vld [vmem:[#allocation2 + $0x20] sm:$0xff]
      %v452 = vld [vmem:[#allocation2 + $0x30] sm:$0xff]
      %v453 = vld [vmem:[#allocation2 + $0x38] sm:$0xff]
      %v454 = vld [vmem:[#allocation2 + $0x48] sm:$0xff]
      %v455 = vld [vmem:[#allocation2 + $0x50] sm:$0xff]
      %v456 = vld [vmem:[#allocation2 + $0x60] sm:$0xff]
      %v457 = vld [vmem:[#allocation2 + $0x68] sm:$0xff]
      %v458 = vld [vmem:[#allocation2 + $0x78] sm:$0xff]
      %v459 = vld [vmem:[#allocation2 + $0x80] sm:$0xff]
      %v460 = vld [vmem:[#allocation2 + $0x90] sm:$0xff]
      %v461 = vld [vmem:[#allocation2 + $0x98] sm:$0xff]
      %v462 = vld [vmem:[#allocation2 + $0xa8] sm:$0xff]
      %v463 = vld [vmem:[#allocation2 + $0xb0] sm:$0xff]
      %v464 = vld [vmem:[#allocation2 + $0xc0] sm:$0xff]
      %v465 = vld [vmem:[#allocation2 + $0xc8] sm:$0xff]
      %v466 = vld [vmem:[#allocation2 + $0xd8] sm:$0xff]
      %v467 = vld [vmem:[#allocation2 + $0xe0] sm:$0xff]
      %v468 = vld [vmem:[#allocation2 + $0xf0] sm:$0xff]
      %v469 = vld [vmem:[#allocation2 + $0xf8] sm:$0xff]
      %v470 = vld [vmem:[#allocation2 + $0x108] sm:$0xff]
      %v471 = vld [vmem:[#allocation2 + $0x110] sm:$0xff]
      %v472 = vld [vmem:[#allocation2 + $0x120] sm:$0xff]
      %v473 = vld [vmem:[#allocation2 + $0x128] sm:$0xff]
      %v474 = vld [vmem:[#allocation2 + $0x138] sm:$0xff]
      %v475 = vld [vmem:[#allocation2 + $0x140] sm:$0xff]
      %v476 = vld [vmem:[#allocation2 + $0x150] sm:$0xff]
      %v477 = vld [vmem:[#allocation2 + $0x158] sm:$0xff]
      %v478 = vld [vmem:[#allocation2 + $0x168] sm:$0xff]
      %v479 = vld [vmem:[#allocation2 + $0x170] sm:$0xff]
      %v480 = vpack.c.bf16 %v449, %v448
      %v481 = vpack.c.bf16 %v451, %v450
      %v482 = vpack.c.bf16 %v453, %v452
      %v483 = vpack.c.bf16 %v455, %v454
      %v484 = vpack.c.bf16 %v457, %v456
      %v485 = vpack.c.bf16 %v459, %v458
      %v486 = vpack.c.bf16 %v461, %v460
      %v487 = vpack.c.bf16 %v463, %v462
      %v488 = vpack.c.bf16 %v465, %v464
      %v489 = vpack.c.bf16 %v467, %v466
      %v490 = vpack.c.bf16 %v469, %v468
      %v491 = vpack.c.bf16 %v471, %v470
      %v492 = vpack.c.bf16 %v473, %v472
      %v493 = vpack.c.bf16 %v475, %v474
      %v494 = vpack.c.bf16 %v477, %v476
      %v495 = vpack.c.bf16 %v479, %v478
      %v496 = vld [vmem:[%s2] sm:$0x3]
      %v497 = vld [vmem:[#allocation2 + $0x1] sm:$0xff]
      %v498 = vld [vmem:[#allocation2 + $0x9] sm:$0xff]
      %v499 = vld [vmem:[#allocation2 + $0x19] sm:$0xff]
      %v500 = vld [vmem:[#allocation2 + $0x21] sm:$0xff]
      %v501 = vld [vmem:[#allocation2 + $0x31] sm:$0xff]
      %v502 = vld [vmem:[#allocation2 + $0x39] sm:$0xff]
      %v503 = vld [vmem:[#allocation2 + $0x49] sm:$0xff]
      %v504 = vld [vmem:[#allocation2 + $0x51] sm:$0xff]
      %v505 = vld [vmem:[#allocation2 + $0x61] sm:$0xff]
      %v506 = vld [vmem:[#allocation2 + $0x69] sm:$0xff]
      %v507 = vld [vmem:[#allocation2 + $0x79] sm:$0xff]
      %v508 = vld [vmem:[#allocation2 + $0x81] sm:$0xff]
      %v509 = vld [vmem:[#allocation2 + $0x91] sm:$0xff]
      %v510 = vld [vmem:[#allocation2 + $0x99] sm:$0xff]
      %v511 = vld [vmem:[#allocation2 + $0xa9] sm:$0xff]
      %v512 = vld [vmem:[#allocation2 + $0xb1] sm:$0xff]
      %v513 = vld [vmem:[#allocation2 + $0xc1] sm:$0xff]
      %v514 = vld [vmem:[#allocation2 + $0xc9] sm:$0xff]
      %v515 = vld [vmem:[#allocation2 + $0xd9] sm:$0xff]
      %v516 = vld [vmem:[#allocation2 + $0xe1] sm:$0xff]
      %v517 = vld [vmem:[#allocation2 + $0xf1] sm:$0xff]
      %v518 = vld [vmem:[#allocation2 + $0xf9] sm:$0xff]
      %v519 = vld [vmem:[#allocation2 + $0x109] sm:$0xff]
      %v520 = vld [vmem:[#allocation2 + $0x111] sm:$0xff]
      %v521 = vld [vmem:[#allocation2 + $0x121] sm:$0xff]
      %v522 = vld [vmem:[#allocation2 + $0x129] sm:$0xff]
      %v523 = vld [vmem:[#allocation2 + $0x139] sm:$0xff]
      %v524 = vld [vmem:[#allocation2 + $0x141] sm:$0xff]
      %v525 = vld [vmem:[#allocation2 + $0x151] sm:$0xff]
      %v526 = vld [vmem:[#allocation2 + $0x159] sm:$0xff]
      %v527 = vld [vmem:[#allocation2 + $0x169] sm:$0xff]
      %v528 = vld [vmem:[#allocation2 + $0x171] sm:$0xff]
      %v529 = vpack.c.bf16 %v498, %v497
      %v530 = vpack.c.bf16 %v500, %v499
      %v531 = vpack.c.bf16 %v502, %v501
      %v532 = vpack.c.bf16 %v504, %v503
      %v533 = vpack.c.bf16 %v506, %v505
      %v534 = vpack.c.bf16 %v508, %v507
      %v535 = vpack.c.bf16 %v510, %v509
      %v536 = vpack.c.bf16 %v512, %v511
      %v537 = vpack.c.bf16 %v514, %v513
      %v538 = vpack.c.bf16 %v516, %v515
      %v539 = vpack.c.bf16 %v518, %v517
      %v540 = vpack.c.bf16 %v520, %v519
      %v541 = vpack.c.bf16 %v522, %v521
      %v542 = vpack.c.bf16 %v524, %v523
      %v543 = vpack.c.bf16 %v526, %v525
      %v544 = vpack.c.bf16 %v528, %v527
      %s545 = scalar_lea.vmem %s2, 2
      %v546 = vld [vmem:[%s545] sm:$0x3]
      %v548 = vsel %vm373, %v529, 0
      %v551 = vsel %vm373, %v530, 0
      %v554 = vsel %vm373, %v531, 0
      %v557 = vsel %vm373, %v532, 0
      %v560 = vsel %vm373, %v533, 0
      %v563 = vsel %vm373, %v534, 0
      %v566 = vsel %vm373, %v535, 0
      %v569 = vsel %vm373, %v536, 0
      %v572 = vsel %vm373, %v537, 0
      %v575 = vsel %vm373, %v538, 0
      %v578 = vsel %vm373, %v539, 0
      %v581 = vsel %vm373, %v540, 0
      %v584 = vsel %vm373, %v541, 0
      %v587 = vsel %vm373, %v542, 0
      %v590 = vsel %vm373, %v543, 0
      %v593 = vsel %vm373, %v544, 0
      %vm595 = vcmask 1041408
      %v597 = vsel %vm595, %v546, 0
      %599 = vmatpush.bf16.msra.mxu0 0
      %600 = vmatpush.bf16.msra.mxu0 0
      %601 = vmatpush.bf16.msra.mxu0 0
      %602 = vmatpush.bf16.msra.mxu0 0
      %603 = vmatpush.bf16.msra.mxu0 0
      %604 = vmatpush.bf16.msra.mxu0 0
      %605 = vmatpush.bf16.msra.mxu0 0
      %606 = vmatpush.bf16.msra.mxu0 %v597
      %607 = vmatmul.bf16.gmra.mxu0 %v548
      %v608 = vpop.f32.mrf.mxu0
      %v609 = vadd.f32 0.0, %v608
      %v610 = vpop.f32.mrf.mxu0
      %v611 = vadd.f32 0.0, %v610
      %612 = vmatmul.bf16.gmra.mxu0 %v551
      %v613 = vpop.f32.mrf.mxu0
      %v614 = vadd.f32 0.0, %v613
      %v615 = vpop.f32.mrf.mxu0
      %v616 = vadd.f32 0.0, %v615
      %617 = vmatmul.bf16.gmra.mxu0 %v554
      %v618 = vpop.f32.mrf.mxu0
      %v619 = vadd.f32 0.0, %v618
      %v620 = vpop.f32.mrf.mxu0
      %v621 = vadd.f32 0.0, %v620
      %622 = vmatmul.bf16.gmra.mxu0 %v557
      %v623 = vpop.f32.mrf.mxu0
      %v624 = vadd.f32 0.0, %v623
      %v625 = vpop.f32.mrf.mxu0
      %v626 = vadd.f32 0.0, %v625
      %627 = vmatmul.bf16.gmra.mxu0 %v560
      %v628 = vpop.f32.mrf.mxu0
      %v629 = vadd.f32 0.0, %v628
      %v630 = vpop.f32.mrf.mxu0
      %v631 = vadd.f32 0.0, %v630
      %632 = vmatmul.bf16.gmra.mxu0 %v563
      %v633 = vpop.f32.mrf.mxu0
      %v634 = vadd.f32 0.0, %v633
      %v635 = vpop.f32.mrf.mxu0
      %v636 = vadd.f32 0.0, %v635
      %637 = vmatmul.bf16.gmra.mxu0 %v566
      %v638 = vpop.f32.mrf.mxu0
      %v639 = vadd.f32 0.0, %v638
      %v640 = vpop.f32.mrf.mxu0
      %v641 = vadd.f32 0.0, %v640
      %642 = vmatmul.bf16.gmra.mxu0 %v569
      %v643 = vpop.f32.mrf.mxu0
      %v644 = vadd.f32 0.0, %v643
      %v645 = vpop.f32.mrf.mxu0
      %v646 = vadd.f32 0.0, %v645
      %647 = vmatmul.bf16.gmra.mxu0 %v572
      %v648 = vpop.f32.mrf.mxu0
      %v649 = vadd.f32 0.0, %v648
      %v650 = vpop.f32.mrf.mxu0
      %v651 = vadd.f32 0.0, %v650
      %652 = vmatmul.bf16.gmra.mxu0 %v575
      %v653 = vpop.f32.mrf.mxu0
      %v654 = vadd.f32 0.0, %v653
      %v655 = vpop.f32.mrf.mxu0
      %v656 = vadd.f32 0.0, %v655
      %657 = vmatmul.bf16.gmra.mxu0 %v578
      %v658 = vpop.f32.mrf.mxu0
      %v659 = vadd.f32 0.0, %v658
      %v660 = vpop.f32.mrf.mxu0
      %v661 = vadd.f32 0.0, %v660
      %662 = vmatmul.bf16.gmra.mxu0 %v581
      %v663 = vpop.f32.mrf.mxu0
      %v664 = vadd.f32 0.0, %v663
      %v665 = vpop.f32.mrf.mxu0
      %v666 = vadd.f32 0.0, %v665
      %667 = vmatmul.bf16.gmra.mxu0 %v584
      %v668 = vpop.f32.mrf.mxu0
      %v669 = vadd.f32 0.0, %v668
      %v670 = vpop.f32.mrf.mxu0
      %v671 = vadd.f32 0.0, %v670
      %672 = vmatmul.bf16.gmra.mxu0 %v587
      %v673 = vpop.f32.mrf.mxu0
      %v674 = vadd.f32 0.0, %v673
      %v675 = vpop.f32.mrf.mxu0
      %v676 = vadd.f32 0.0, %v675
      %677 = vmatmul.bf16.gmra.mxu0 %v590
      %v678 = vpop.f32.mrf.mxu0
      %v679 = vadd.f32 0.0, %v678
      %v680 = vpop.f32.mrf.mxu0
      %v681 = vadd.f32 0.0, %v680
      %682 = vmatmul.bf16.gmra.mxu0 %v593
      %v683 = vpop.f32.mrf.mxu0
      %v684 = vadd.f32 0.0, %v683
      %v685 = vpop.f32.mrf.mxu0
      %v686 = vadd.f32 0.0, %v685
      %687 = vdwg.mxu0
      %v689 = vsel %vm373, %v480, 0
      %v692 = vsel %vm373, %v481, 0
      %v695 = vsel %vm373, %v482, 0
      %v698 = vsel %vm373, %v483, 0
      %v701 = vsel %vm373, %v484, 0
      %v704 = vsel %vm373, %v485, 0
      %v707 = vsel %vm373, %v486, 0
      %v710 = vsel %vm373, %v487, 0
      %v713 = vsel %vm373, %v488, 0
      %v716 = vsel %vm373, %v489, 0
      %v719 = vsel %vm373, %v490, 0
      %v722 = vsel %vm373, %v491, 0
      %v725 = vsel %vm373, %v492, 0
      %v728 = vsel %vm373, %v493, 0
      %v731 = vsel %vm373, %v494, 0
      %v734 = vsel %vm373, %v495, 0
      %v737 = vsel %vm595, %v496, 0
      %739 = vmatpush.bf16.msra.mxu0 0
      %740 = vmatpush.bf16.msra.mxu0 0
      %741 = vmatpush.bf16.msra.mxu0 0
      %742 = vmatpush.bf16.msra.mxu0 0
      %743 = vmatpush.bf16.msra.mxu0 0
      %744 = vmatpush.bf16.msra.mxu0 0
      %745 = vmatpush.bf16.msra.mxu0 0
      %746 = vmatpush.bf16.msra.mxu0 %v737
      %747 = vmatmul.bf16.gmra.mxu0 %v689
      %v748 = vpop.f32.mrf.mxu0
      %v749 = vadd.f32 %v609, %v748
      %v750 = vpop.f32.mrf.mxu0
      %v751 = vadd.f32 %v611, %v750
      %752 = vmatmul.bf16.gmra.mxu0 %v692
      %v753 = vpop.f32.mrf.mxu0
      %v754 = vadd.f32 %v614, %v753
      %v755 = vpop.f32.mrf.mxu0
      %v756 = vadd.f32 %v616, %v755
      %757 = vmatmul.bf16.gmra.mxu0 %v695
      %v758 = vpop.f32.mrf.mxu0
      %v759 = vadd.f32 %v619, %v758
      %v760 = vpop.f32.mrf.mxu0
      %v761 = vadd.f32 %v621, %v760
      %762 = vmatmul.bf16.gmra.mxu0 %v698
      %v763 = vpop.f32.mrf.mxu0
      %v764 = vadd.f32 %v624, %v763
      %v765 = vpop.f32.mrf.mxu0
      %v766 = vadd.f32 %v626, %v765
      %767 = vmatmul.bf16.gmra.mxu0 %v701
      %v768 = vpop.f32.mrf.mxu0
      %v769 = vadd.f32 %v629, %v768
      %v770 = vpop.f32.mrf.mxu0
      %v771 = vadd.f32 %v631, %v770
      %772 = vmatmul.bf16.gmra.mxu0 %v704
      %v773 = vpop.f32.mrf.mxu0
      %v774 = vadd.f32 %v634, %v773
      %v775 = vpop.f32.mrf.mxu0
      %v776 = vadd.f32 %v636, %v775
      %777 = vmatmul.bf16.gmra.mxu0 %v707
      %v778 = vpop.f32.mrf.mxu0
      %v779 = vadd.f32 %v639, %v778
      %v780 = vpop.f32.mrf.mxu0
      %v781 = vadd.f32 %v641, %v780
      %782 = vmatmul.bf16.gmra.mxu0 %v710
      %v783 = vpop.f32.mrf.mxu0
      %v784 = vadd.f32 %v644, %v783
      %v785 = vpop.f32.mrf.mxu0
      %v786 = vadd.f32 %v646, %v785
      %787 = vmatmul.bf16.gmra.mxu0 %v713
      %v788 = vpop.f32.mrf.mxu0
      %v789 = vadd.f32 %v649, %v788
      %v790 = vpop.f32.mrf.mxu0
      %v791 = vadd.f32 %v651, %v790
      %792 = vmatmul.bf16.gmra.mxu0 %v716
      %v793 = vpop.f32.mrf.mxu0
      %v794 = vadd.f32 %v654, %v793
      %v795 = vpop.f32.mrf.mxu0
      %v796 = vadd.f32 %v656, %v795
      %797 = vmatmul.bf16.gmra.mxu0 %v719
      %v798 = vpop.f32.mrf.mxu0
      %v799 = vadd.f32 %v659, %v798
      %v800 = vpop.f32.mrf.mxu0
      %v801 = vadd.f32 %v661, %v800
      %802 = vmatmul.bf16.gmra.mxu0 %v722
      %v803 = vpop.f32.mrf.mxu0
      %v804 = vadd.f32 %v664, %v803
      %v805 = vpop.f32.mrf.mxu0
      %v806 = vadd.f32 %v666, %v805
      %807 = vmatmul.bf16.gmra.mxu0 %v725
      %v808 = vpop.f32.mrf.mxu0
      %v809 = vadd.f32 %v669, %v808
      %v810 = vpop.f32.mrf.mxu0
      %v811 = vadd.f32 %v671, %v810
      %812 = vmatmul.bf16.gmra.mxu0 %v728
      %v813 = vpop.f32.mrf.mxu0
      %v814 = vadd.f32 %v674, %v813
      %v815 = vpop.f32.mrf.mxu0
      %v816 = vadd.f32 %v676, %v815
      %817 = vmatmul.bf16.gmra.mxu0 %v731
      %v818 = vpop.f32.mrf.mxu0
      %v819 = vadd.f32 %v679, %v818
      %v820 = vpop.f32.mrf.mxu0
      %v821 = vadd.f32 %v681, %v820
      %822 = vmatmul.bf16.gmra.mxu0 %v734
      %v823 = vpop.f32.mrf.mxu0
      %v824 = vadd.f32 %v684, %v823
      %v825 = vpop.f32.mrf.mxu0
      %v826 = vadd.f32 %v686, %v825
      %827 = vdwg.mxu0
      %v828 = vld [vmem:[#allocation2 + $0x2] sm:$0xff]
      %v829 = vld [vmem:[#allocation2 + $0xa] sm:$0xff]
      %v830 = vld [vmem:[#allocation2 + $0x1a] sm:$0xff]
      %v831 = vld [vmem:[#allocation2 + $0x22] sm:$0xff]
      %v832 = vld [vmem:[#allocation2 + $0x32] sm:$0xff]
      %v833 = vld [vmem:[#allocation2 + $0x3a] sm:$0xff]
      %v834 = vld [vmem:[#allocation2 + $0x4a] sm:$0xff]
      %v835 = vld [vmem:[#allocation2 + $0x52] sm:$0xff]
      %v836 = vld [vmem:[#allocation2 + $0x62] sm:$0xff]
      %v837 = vld [vmem:[#allocation2 + $0x6a] sm:$0xff]
      %v838 = vld [vmem:[#allocation2 + $0x7a] sm:$0xff]
      %v839 = vld [vmem:[#allocation2 + $0x82] sm:$0xff]
      %v840 = vld [vmem:[#allocation2 + $0x92] sm:$0xff]
      %v841 = vld [vmem:[#allocation2 + $0x9a] sm:$0xff]
      %v842 = vld [vmem:[#allocation2 + $0xaa] sm:$0xff]
      %v843 = vld [vmem:[#allocation2 + $0xb2] sm:$0xff]
      %v844 = vld [vmem:[#allocation2 + $0xc2] sm:$0xff]
      %v845 = vld [vmem:[#allocation2 + $0xca] sm:$0xff]
      %v846 = vld [vmem:[#allocation2 + $0xda] sm:$0xff]
      %v847 = vld [vmem:[#allocation2 + $0xe2] sm:$0xff]
      %v848 = vld [vmem:[#allocation2 + $0xf2] sm:$0xff]
      %v849 = vld [vmem:[#allocation2 + $0xfa] sm:$0xff]
      %v850 = vld [vmem:[#allocation2 + $0x10a] sm:$0xff]
      %v851 = vld [vmem:[#allocation2 + $0x112] sm:$0xff]
      %v852 = vld [vmem:[#allocation2 + $0x122] sm:$0xff]
      %v853 = vld [vmem:[#allocation2 + $0x12a] sm:$0xff]
      %v854 = vld [vmem:[#allocation2 + $0x13a] sm:$0xff]
      %v855 = vld [vmem:[#allocation2 + $0x142] sm:$0xff]
      %v856 = vld [vmem:[#allocation2 + $0x152] sm:$0xff]
      %v857 = vld [vmem:[#allocation2 + $0x15a] sm:$0xff]
      %v858 = vld [vmem:[#allocation2 + $0x16a] sm:$0xff]
      %v859 = vld [vmem:[#allocation2 + $0x172] sm:$0xff]
      %v860 = vpack.c.bf16 %v829, %v828
      %v861 = vpack.c.bf16 %v831, %v830
      %v862 = vpack.c.bf16 %v833, %v832
      %v863 = vpack.c.bf16 %v835, %v834
      %v864 = vpack.c.bf16 %v837, %v836
      %v865 = vpack.c.bf16 %v839, %v838
      %v866 = vpack.c.bf16 %v841, %v840
      %v867 = vpack.c.bf16 %v843, %v842
      %v868 = vpack.c.bf16 %v845, %v844
      %v869 = vpack.c.bf16 %v847, %v846
      %v870 = vpack.c.bf16 %v849, %v848
      %v871 = vpack.c.bf16 %v851, %v850
      %v872 = vpack.c.bf16 %v853, %v852
      %v873 = vpack.c.bf16 %v855, %v854
      %v874 = vpack.c.bf16 %v857, %v856
      %v875 = vpack.c.bf16 %v859, %v858
      %s876 = scalar_lea.vmem %s2, 4
      %v877 = vld [vmem:[%s876] sm:$0x3]
      %v879 = vsel %vm373, %v860, 0
      %v882 = vsel %vm373, %v861, 0
      %v885 = vsel %vm373, %v862, 0
      %v888 = vsel %vm373, %v863, 0
      %v891 = vsel %vm373, %v864, 0
      %v894 = vsel %vm373, %v865, 0
      %v897 = vsel %vm373, %v866, 0
      %v900 = vsel %vm373, %v867, 0
      %v903 = vsel %vm373, %v868, 0
      %v906 = vsel %vm373, %v869, 0
      %v909 = vsel %vm373, %v870, 0
      %v912 = vsel %vm373, %v871, 0
      %v915 = vsel %vm373, %v872, 0
      %v918 = vsel %vm373, %v873, 0
      %v921 = vsel %vm373, %v874, 0
      %v924 = vsel %vm373, %v875, 0
      %v927 = vsel %vm595, %v877, 0
      %929 = vmatpush.bf16.msra.mxu0 0
      %930 = vmatpush.bf16.msra.mxu0 0
      %931 = vmatpush.bf16.msra.mxu0 0
      %932 = vmatpush.bf16.msra.mxu0 0
      %933 = vmatpush.bf16.msra.mxu0 0
      %934 = vmatpush.bf16.msra.mxu0 0
      %935 = vmatpush.bf16.msra.mxu0 0
      %936 = vmatpush.bf16.msra.mxu0 %v927
      %937 = vmatmul.bf16.gmra.mxu0 %v879
      %v938 = vpop.f32.mrf.mxu0
      %v939 = vadd.f32 0.0, %v938
      %v940 = vpop.f32.mrf.mxu0
      %v941 = vadd.f32 0.0, %v940
      %942 = vmatmul.bf16.gmra.mxu0 %v882
      %v943 = vpop.f32.mrf.mxu0
      %v944 = vadd.f32 0.0, %v943
      %v945 = vpop.f32.mrf.mxu0
      %v946 = vadd.f32 0.0, %v945
      %947 = vmatmul.bf16.gmra.mxu0 %v885
      %v948 = vpop.f32.mrf.mxu0
      %v949 = vadd.f32 0.0, %v948
      %v950 = vpop.f32.mrf.mxu0
      %v951 = vadd.f32 0.0, %v950
      %952 = vmatmul.bf16.gmra.mxu0 %v888
      %v953 = vpop.f32.mrf.mxu0
      %v954 = vadd.f32 0.0, %v953
      %v955 = vpop.f32.mrf.mxu0
      %v956 = vadd.f32 0.0, %v955
      %957 = vmatmul.bf16.gmra.mxu0 %v891
      %v958 = vpop.f32.mrf.mxu0
      %v959 = vadd.f32 0.0, %v958
      %v960 = vpop.f32.mrf.mxu0
      %v961 = vadd.f32 0.0, %v960
      %962 = vmatmul.bf16.gmra.mxu0 %v894
      %v963 = vpop.f32.mrf.mxu0
      %v964 = vadd.f32 0.0, %v963
      %v965 = vpop.f32.mrf.mxu0
      %v966 = vadd.f32 0.0, %v965
      %967 = vmatmul.bf16.gmra.mxu0 %v897
      %v968 = vpop.f32.mrf.mxu0
      %v969 = vadd.f32 0.0, %v968
      %v970 = vpop.f32.mrf.mxu0
      %v971 = vadd.f32 0.0, %v970
      %972 = vmatmul.bf16.gmra.mxu0 %v900
      %v973 = vpop.f32.mrf.mxu0
      %v974 = vadd.f32 0.0, %v973
      %v975 = vpop.f32.mrf.mxu0
      %v976 = vadd.f32 0.0, %v975
      %977 = vmatmul.bf16.gmra.mxu0 %v903
      %v978 = vpop.f32.mrf.mxu0
      %v979 = vadd.f32 0.0, %v978
      %v980 = vpop.f32.mrf.mxu0
      %v981 = vadd.f32 0.0, %v980
      %982 = vmatmul.bf16.gmra.mxu0 %v906
      %v983 = vpop.f32.mrf.mxu0
      %v984 = vadd.f32 0.0, %v983
      %v985 = vpop.f32.mrf.mxu0
      %v986 = vadd.f32 0.0, %v985
      %987 = vmatmul.bf16.gmra.mxu0 %v909
      %v988 = vpop.f32.mrf.mxu0
      %v989 = vadd.f32 0.0, %v988
      %v990 = vpop.f32.mrf.mxu0
      %v991 = vadd.f32 0.0, %v990
      %992 = vmatmul.bf16.gmra.mxu0 %v912
      %v993 = vpop.f32.mrf.mxu0
      %v994 = vadd.f32 0.0, %v993
      %v995 = vpop.f32.mrf.mxu0
      %v996 = vadd.f32 0.0, %v995
      %997 = vmatmul.bf16.gmra.mxu0 %v915
      %v998 = vpop.f32.mrf.mxu0
      %v999 = vadd.f32 0.0, %v998
      %v1000 = vpop.f32.mrf.mxu0
      %v1001 = vadd.f32 0.0, %v1000
      %1002 = vmatmul.bf16.gmra.mxu0 %v918
      %v1003 = vpop.f32.mrf.mxu0
      %v1004 = vadd.f32 0.0, %v1003
      %v1005 = vpop.f32.mrf.mxu0
      %v1006 = vadd.f32 0.0, %v1005
      %1007 = vmatmul.bf16.gmra.mxu0 %v921
      %v1008 = vpop.f32.mrf.mxu0
      %v1009 = vadd.f32 0.0, %v1008
      %v1010 = vpop.f32.mrf.mxu0
      %v1011 = vadd.f32 0.0, %v1010
      %1012 = vmatmul.bf16.gmra.mxu0 %v924
      %v1013 = vpop.f32.mrf.mxu0
      %v1014 = vadd.f32 0.0, %v1013
      %v1015 = vpop.f32.mrf.mxu0
      %v1016 = vadd.f32 0.0, %v1015
      %1017 = vdwg.mxu0
      %v1018 = vadd.f32 %v749, %v939
      %v1019 = vadd.f32 %v751, %v941
      %v1020 = vadd.f32 %v754, %v944
      %v1021 = vadd.f32 %v756, %v946
      %v1022 = vadd.f32 %v759, %v949
      %v1023 = vadd.f32 %v761, %v951
      %v1024 = vadd.f32 %v764, %v954
      %v1025 = vadd.f32 %v766, %v956
      %v1026 = vadd.f32 %v769, %v959
      %v1027 = vadd.f32 %v771, %v961
      %v1028 = vadd.f32 %v774, %v964
      %v1029 = vadd.f32 %v776, %v966
      %v1030 = vadd.f32 %v779, %v969
      %v1031 = vadd.f32 %v781, %v971
      %v1032 = vadd.f32 %v784, %v974
      %v1033 = vadd.f32 %v786, %v976
      %v1034 = vadd.f32 %v789, %v979
      %v1035 = vadd.f32 %v791, %v981
      %v1036 = vadd.f32 %v794, %v984
      %v1037 = vadd.f32 %v796, %v986
      %v1038 = vadd.f32 %v799, %v989
      %v1039 = vadd.f32 %v801, %v991
      %v1040 = vadd.f32 %v804, %v994
      %v1041 = vadd.f32 %v806, %v996
      %v1042 = vadd.f32 %v809, %v999
      %v1043 = vadd.f32 %v811, %v1001
      %v1044 = vadd.f32 %v814, %v1004
      %v1045 = vadd.f32 %v816, %v1006
      %v1046 = vadd.f32 %v819, %v1009
      %v1047 = vadd.f32 %v821, %v1011
      %v1048 = vadd.f32 %v824, %v1014
      %v1049 = vadd.f32 %v826, %v1016
      %v1050 = vld [vmem:[%s382] sm:$0xff]
      %v1051 = vld [vmem:[%s382 + $0x8] sm:$0xff]
      %v1052 = vld [vmem:[%s382 + $0x18] sm:$0xff]
      %v1053 = vld [vmem:[%s382 + $0x20] sm:$0xff]
      %v1054 = vld [vmem:[%s382 + $0x30] sm:$0xff]
      %v1055 = vld [vmem:[%s382 + $0x38] sm:$0xff]
      %v1056 = vld [vmem:[%s382 + $0x48] sm:$0xff]
      %v1057 = vld [vmem:[%s382 + $0x50] sm:$0xff]
      %v1058 = vld [vmem:[%s382 + $0x60] sm:$0xff]
      %v1059 = vld [vmem:[%s382 + $0x68] sm:$0xff]
      %v1060 = vld [vmem:[%s382 + $0x78] sm:$0xff]
      %v1061 = vld [vmem:[%s382 + $0x80] sm:$0xff]
      %v1062 = vld [vmem:[%s382 + $0x90] sm:$0xff]
      %v1063 = vld [vmem:[%s382 + $0x98] sm:$0xff]
      %v1064 = vld [vmem:[%s382 + $0xa8] sm:$0xff]
      %v1065 = vld [vmem:[%s382 + $0xb0] sm:$0xff]
      %v1066 = vld [vmem:[%s382 + $0xc0] sm:$0xff]
      %v1067 = vld [vmem:[%s382 + $0xc8] sm:$0xff]
      %v1068 = vld [vmem:[%s382 + $0xd8] sm:$0xff]
      %v1069 = vld [vmem:[%s382 + $0xe0] sm:$0xff]
      %v1070 = vld [vmem:[%s382 + $0xf0] sm:$0xff]
      %v1071 = vld [vmem:[%s382 + $0xf8] sm:$0xff]
      %v1072 = vld [vmem:[%s382 + $0x108] sm:$0xff]
      %v1073 = vld [vmem:[%s382 + $0x110] sm:$0xff]
      %v1074 = vld [vmem:[%s382 + $0x120] sm:$0xff]
      %v1075 = vld [vmem:[%s382 + $0x128] sm:$0xff]
      %v1076 = vld [vmem:[%s382 + $0x138] sm:$0xff]
      %v1077 = vld [vmem:[%s382 + $0x140] sm:$0xff]
      %v1078 = vld [vmem:[%s382 + $0x150] sm:$0xff]
      %v1079 = vld [vmem:[%s382 + $0x158] sm:$0xff]
      %v1080 = vld [vmem:[%s382 + $0x168] sm:$0xff]
      %v1081 = vld [vmem:[%s382 + $0x170] sm:$0xff]
      %v1082 = vpack.c.bf16 %v1051, %v1050
      %v1083 = vpack.c.bf16 %v1053, %v1052
      %v1084 = vpack.c.bf16 %v1055, %v1054
      %v1085 = vpack.c.bf16 %v1057, %v1056
      %v1086 = vpack.c.bf16 %v1059, %v1058
      %v1087 = vpack.c.bf16 %v1061, %v1060
      %v1088 = vpack.c.bf16 %v1063, %v1062
      %v1089 = vpack.c.bf16 %v1065, %v1064
      %v1090 = vpack.c.bf16 %v1067, %v1066
      %v1091 = vpack.c.bf16 %v1069, %v1068
      %v1092 = vpack.c.bf16 %v1071, %v1070
      %v1093 = vpack.c.bf16 %v1073, %v1072
      %v1094 = vpack.c.bf16 %v1075, %v1074
      %v1095 = vpack.c.bf16 %v1077, %v1076
      %v1096 = vpack.c.bf16 %v1079, %v1078
      %v1097 = vpack.c.bf16 %v1081, %v1080
      %s1098 = scalar_lea.vmem %s2, 6
      %v1099 = vld [vmem:[%s1098] sm:$0x3]
      %v1101 = vsel %vm373, %v1082, 0
      %v1104 = vsel %vm373, %v1083, 0
      %v1107 = vsel %vm373, %v1084, 0
      %v1110 = vsel %vm373, %v1085, 0
      %v1113 = vsel %vm373, %v1086, 0
      %v1116 = vsel %vm373, %v1087, 0
      %v1119 = vsel %vm373, %v1088, 0
      %v1122 = vsel %vm373, %v1089, 0
      %v1125 = vsel %vm373, %v1090, 0
      %v1128 = vsel %vm373, %v1091, 0
      %v1131 = vsel %vm373, %v1092, 0
      %v1134 = vsel %vm373, %v1093, 0
      %v1137 = vsel %vm373, %v1094, 0
      %v1140 = vsel %vm373, %v1095, 0
      %v1143 = vsel %vm373, %v1096, 0
      %v1146 = vsel %vm373, %v1097, 0
      %v1149 = vsel %vm595, %v1099, 0
      %1151 = vmatpush.bf16.msra.mxu0 0
      %1152 = vmatpush.bf16.msra.mxu0 0
      %1153 = vmatpush.bf16.msra.mxu0 0
      %1154 = vmatpush.bf16.msra.mxu0 0
      %1155 = vmatpush.bf16.msra.mxu0 0
      %1156 = vmatpush.bf16.msra.mxu0 0
      %1157 = vmatpush.bf16.msra.mxu0 0
      %1158 = vmatpush.bf16.msra.mxu0 %v1149
      %1159 = vmatmul.bf16.gmra.mxu0 %v1101
      %v1160 = vpop.f32.mrf.mxu0
      %v1161 = vadd.f32 0.0, %v1160
      %v1162 = vpop.f32.mrf.mxu0
      %v1163 = vadd.f32 0.0, %v1162
      %1164 = vmatmul.bf16.gmra.mxu0 %v1104
      %v1165 = vpop.f32.mrf.mxu0
      %v1166 = vadd.f32 0.0, %v1165
      %v1167 = vpop.f32.mrf.mxu0
      %v1168 = vadd.f32 0.0, %v1167
      %1169 = vmatmul.bf16.gmra.mxu0 %v1107
      %v1170 = vpop.f32.mrf.mxu0
      %v1171 = vadd.f32 0.0, %v1170
      %v1172 = vpop.f32.mrf.mxu0
      %v1173 = vadd.f32 0.0, %v1172
      %1174 = vmatmul.bf16.gmra.mxu0 %v1110
      %v1175 = vpop.f32.mrf.mxu0
      %v1176 = vadd.f32 0.0, %v1175
      %v1177 = vpop.f32.mrf.mxu0
      %v1178 = vadd.f32 0.0, %v1177
      %1179 = vmatmul.bf16.gmra.mxu0 %v1113
      %v1180 = vpop.f32.mrf.mxu0
      %v1181 = vadd.f32 0.0, %v1180
      %v1182 = vpop.f32.mrf.mxu0
      %v1183 = vadd.f32 0.0, %v1182
      %1184 = vmatmul.bf16.gmra.mxu0 %v1116
      %v1185 = vpop.f32.mrf.mxu0
      %v1186 = vadd.f32 0.0, %v1185
      %v1187 = vpop.f32.mrf.mxu0
      %v1188 = vadd.f32 0.0, %v1187
      %1189 = vmatmul.bf16.gmra.mxu0 %v1119
      %v1190 = vpop.f32.mrf.mxu0
      %v1191 = vadd.f32 0.0, %v1190
      %v1192 = vpop.f32.mrf.mxu0
      %v1193 = vadd.f32 0.0, %v1192
      %1194 = vmatmul.bf16.gmra.mxu0 %v1122
      %v1195 = vpop.f32.mrf.mxu0
      %v1196 = vadd.f32 0.0, %v1195
      %v1197 = vpop.f32.mrf.mxu0
      %v1198 = vadd.f32 0.0, %v1197
      %1199 = vmatmul.bf16.gmra.mxu0 %v1125
      %v1200 = vpop.f32.mrf.mxu0
      %v1201 = vadd.f32 0.0, %v1200
      %v1202 = vpop.f32.mrf.mxu0
      %v1203 = vadd.f32 0.0, %v1202
      %1204 = vmatmul.bf16.gmra.mxu0 %v1128
      %v1205 = vpop.f32.mrf.mxu0
      %v1206 = vadd.f32 0.0, %v1205
      %v1207 = vpop.f32.mrf.mxu0
      %v1208 = vadd.f32 0.0, %v1207
      %1209 = vmatmul.bf16.gmra.mxu0 %v1131
      %v1210 = vpop.f32.mrf.mxu0
      %v1211 = vadd.f32 0.0, %v1210
      %v1212 = vpop.f32.mrf.mxu0
      %v1213 = vadd.f32 0.0, %v1212
      %1214 = vmatmul.bf16.gmra.mxu0 %v1134
      %v1215 = vpop.f32.mrf.mxu0
      %v1216 = vadd.f32 0.0, %v1215
      %v1217 = vpop.f32.mrf.mxu0
      %v1218 = vadd.f32 0.0, %v1217
      %1219 = vmatmul.bf16.gmra.mxu0 %v1137
      %v1220 = vpop.f32.mrf.mxu0
      %v1221 = vadd.f32 0.0, %v1220
      %v1222 = vpop.f32.mrf.mxu0
      %v1223 = vadd.f32 0.0, %v1222
      %1224 = vmatmul.bf16.gmra.mxu0 %v1140
      %v1225 = vpop.f32.mrf.mxu0
      %v1226 = vadd.f32 0.0, %v1225
      %v1227 = vpop.f32.mrf.mxu0
      %v1228 = vadd.f32 0.0, %v1227
      %1229 = vmatmul.bf16.gmra.mxu0 %v1143
      %v1230 = vpop.f32.mrf.mxu0
      %v1231 = vadd.f32 0.0, %v1230
      %v1232 = vpop.f32.mrf.mxu0
      %v1233 = vadd.f32 0.0, %v1232
      %1234 = vmatmul.bf16.gmra.mxu0 %v1146
      %v1235 = vpop.f32.mrf.mxu0
      %v1236 = vadd.f32 0.0, %v1235
      %v1237 = vpop.f32.mrf.mxu0
      %v1238 = vadd.f32 0.0, %v1237
      %1239 = vdwg.mxu0
      %v1240 = vadd.f32 %v1018, %v1161
      %v1241 = vadd.f32 %v1019, %v1163
      %v1242 = vadd.f32 %v1020, %v1166
      %v1243 = vadd.f32 %v1021, %v1168
      %v1244 = vadd.f32 %v1022, %v1171
      %v1245 = vadd.f32 %v1023, %v1173
      %v1246 = vadd.f32 %v1024, %v1176
      %v1247 = vadd.f32 %v1025, %v1178
      %v1248 = vadd.f32 %v1026, %v1181
      %v1249 = vadd.f32 %v1027, %v1183
      %v1250 = vadd.f32 %v1028, %v1186
      %v1251 = vadd.f32 %v1029, %v1188
      %v1252 = vadd.f32 %v1030, %v1191
      %v1253 = vadd.f32 %v1031, %v1193
      %v1254 = vadd.f32 %v1032, %v1196
      %v1255 = vadd.f32 %v1033, %v1198
      %v1256 = vadd.f32 %v1034, %v1201
      %v1257 = vadd.f32 %v1035, %v1203
      %v1258 = vadd.f32 %v1036, %v1206
      %v1259 = vadd.f32 %v1037, %v1208
      %v1260 = vadd.f32 %v1038, %v1211
      %v1261 = vadd.f32 %v1039, %v1213
      %v1262 = vadd.f32 %v1040, %v1216
      %v1263 = vadd.f32 %v1041, %v1218
      %v1264 = vadd.f32 %v1042, %v1221
      %v1265 = vadd.f32 %v1043, %v1223
      %v1266 = vadd.f32 %v1044, %v1226
      %v1267 = vadd.f32 %v1045, %v1228
      %v1268 = vadd.f32 %v1046, %v1231
      %v1269 = vadd.f32 %v1047, %v1233
      %v1270 = vadd.f32 %v1048, %v1236
      %v1271 = vadd.f32 %v1049, %v1238
      %v1272 = vld [vmem:[%s382 + $0x1] sm:$0xff]
      %v1273 = vld [vmem:[%s382 + $0x9] sm:$0xff]
      %v1274 = vld [vmem:[%s382 + $0x19] sm:$0xff]
      %v1275 = vld [vmem:[%s382 + $0x21] sm:$0xff]
      %v1276 = vld [vmem:[%s382 + $0x31] sm:$0xff]
      %v1277 = vld [vmem:[%s382 + $0x39] sm:$0xff]
      %v1278 = vld [vmem:[%s382 + $0x49] sm:$0xff]
      %v1279 = vld [vmem:[%s382 + $0x51] sm:$0xff]
      %v1280 = vld [vmem:[%s382 + $0x61] sm:$0xff]
      %v1281 = vld [vmem:[%s382 + $0x69] sm:$0xff]
      %v1282 = vld [vmem:[%s382 + $0x79] sm:$0xff]
      %v1283 = vld [vmem:[%s382 + $0x81] sm:$0xff]
      %v1284 = vld [vmem:[%s382 + $0x91] sm:$0xff]
      %v1285 = vld [vmem:[%s382 + $0x99] sm:$0xff]
      %v1286 = vld [vmem:[%s382 + $0xa9] sm:$0xff]
      %v1287 = vld [vmem:[%s382 + $0xb1] sm:$0xff]
      %v1288 = vld [vmem:[%s382 + $0xc1] sm:$0xff]
      %v1289 = vld [vmem:[%s382 + $0xc9] sm:$0xff]
      %v1290 = vld [vmem:[%s382 + $0xd9] sm:$0xff]
      %v1291 = vld [vmem:[%s382 + $0xe1] sm:$0xff]
      %v1292 = vld [vmem:[%s382 + $0xf1] sm:$0xff]
      %v1293 = vld [vmem:[%s382 + $0xf9] sm:$0xff]
      %v1294 = vld [vmem:[%s382 + $0x109] sm:$0xff]
      %v1295 = vld [vmem:[%s382 + $0x111] sm:$0xff]
      %v1296 = vld [vmem:[%s382 + $0x121] sm:$0xff]
      %v1297 = vld [vmem:[%s382 + $0x129] sm:$0xff]
      %v1298 = vld [vmem:[%s382 + $0x139] sm:$0xff]
      %v1299 = vld [vmem:[%s382 + $0x141] sm:$0xff]
      %v1300 = vld [vmem:[%s382 + $0x151] sm:$0xff]
      %v1301 = vld [vmem:[%s382 + $0x159] sm:$0xff]
      %v1302 = vld [vmem:[%s382 + $0x169] sm:$0xff]
      %v1303 = vld [vmem:[%s382 + $0x171] sm:$0xff]
      %v1304 = vpack.c.bf16 %v1273, %v1272
      %v1305 = vpack.c.bf16 %v1275, %v1274
      %v1306 = vpack.c.bf16 %v1277, %v1276
      %v1307 = vpack.c.bf16 %v1279, %v1278
      %v1308 = vpack.c.bf16 %v1281, %v1280
      %v1309 = vpack.c.bf16 %v1283, %v1282
      %v1310 = vpack.c.bf16 %v1285, %v1284
      %v1311 = vpack.c.bf16 %v1287, %v1286
      %v1312 = vpack.c.bf16 %v1289, %v1288
      %v1313 = vpack.c.bf16 %v1291, %v1290
      %v1314 = vpack.c.bf16 %v1293, %v1292
      %v1315 = vpack.c.bf16 %v1295, %v1294
      %v1316 = vpack.c.bf16 %v1297, %v1296
      %v1317 = vpack.c.bf16 %v1299, %v1298
      %v1318 = vpack.c.bf16 %v1301, %v1300
      %v1319 = vpack.c.bf16 %v1303, %v1302
      %s1320 = scalar_lea.vmem %s2, 8
      %v1321 = vld [vmem:[%s1320] sm:$0x3]
      %v1323 = vsel %vm373, %v1304, 0
      %v1326 = vsel %vm373, %v1305, 0
      %v1329 = vsel %vm373, %v1306, 0
      %v1332 = vsel %vm373, %v1307, 0
      %v1335 = vsel %vm373, %v1308, 0
      %v1338 = vsel %vm373, %v1309, 0
      %v1341 = vsel %vm373, %v1310, 0
      %v1344 = vsel %vm373, %v1311, 0
      %v1347 = vsel %vm373, %v1312, 0
      %v1350 = vsel %vm373, %v1313, 0
      %v1353 = vsel %vm373, %v1314, 0
      %v1356 = vsel %vm373, %v1315, 0
      %v1359 = vsel %vm373, %v1316, 0
      %v1362 = vsel %vm373, %v1317, 0
      %v1365 = vsel %vm373, %v1318, 0
      %v1368 = vsel %vm373, %v1319, 0
      %v1371 = vsel %vm595, %v1321, 0
      %1373 = vmatpush.bf16.msra.mxu0 0
      %1374 = vmatpush.bf16.msra.mxu0 0
      %1375 = vmatpush.bf16.msra.mxu0 0
      %1376 = vmatpush.bf16.msra.mxu0 0
      %1377 = vmatpush.bf16.msra.mxu0 0
      %1378 = vmatpush.bf16.msra.mxu0 0
      %1379 = vmatpush.bf16.msra.mxu0 0
      %1380 = vmatpush.bf16.msra.mxu0 %v1371
      %1381 = vmatmul.bf16.gmra.mxu0 %v1323
      %v1382 = vpop.f32.mrf.mxu0
      %v1383 = vadd.f32 0.0, %v1382
      %v1384 = vpop.f32.mrf.mxu0
      %v1385 = vadd.f32 0.0, %v1384
      %1386 = vmatmul.bf16.gmra.mxu0 %v1326
      %v1387 = vpop.f32.mrf.mxu0
      %v1388 = vadd.f32 0.0, %v1387
      %v1389 = vpop.f32.mrf.mxu0
      %v1390 = vadd.f32 0.0, %v1389
      %1391 = vmatmul.bf16.gmra.mxu0 %v1329
      %v1392 = vpop.f32.mrf.mxu0
      %v1393 = vadd.f32 0.0, %v1392
      %v1394 = vpop.f32.mrf.mxu0
      %v1395 = vadd.f32 0.0, %v1394
      %1396 = vmatmul.bf16.gmra.mxu0 %v1332
      %v1397 = vpop.f32.mrf.mxu0
      %v1398 = vadd.f32 0.0, %v1397
      %v1399 = vpop.f32.mrf.mxu0
      %v1400 = vadd.f32 0.0, %v1399
      %1401 = vmatmul.bf16.gmra.mxu0 %v1335
      %v1402 = vpop.f32.mrf.mxu0
      %v1403 = vadd.f32 0.0, %v1402
      %v1404 = vpop.f32.mrf.mxu0
      %v1405 = vadd.f32 0.0, %v1404
      %1406 = vmatmul.bf16.gmra.mxu0 %v1338
      %v1407 = vpop.f32.mrf.mxu0
      %v1408 = vadd.f32 0.0, %v1407
      %v1409 = vpop.f32.mrf.mxu0
      %v1410 = vadd.f32 0.0, %v1409
      %1411 = vmatmul.bf16.gmra.mxu0 %v1341
      %v1412 = vpop.f32.mrf.mxu0
      %v1413 = vadd.f32 0.0, %v1412
      %v1414 = vpop.f32.mrf.mxu0
      %v1415 = vadd.f32 0.0, %v1414
      %1416 = vmatmul.bf16.gmra.mxu0 %v1344
      %v1417 = vpop.f32.mrf.mxu0
      %v1418 = vadd.f32 0.0, %v1417
      %v1419 = vpop.f32.mrf.mxu0
      %v1420 = vadd.f32 0.0, %v1419
      %1421 = vmatmul.bf16.gmra.mxu0 %v1347
      %v1422 = vpop.f32.mrf.mxu0
      %v1423 = vadd.f32 0.0, %v1422
      %v1424 = vpop.f32.mrf.mxu0
      %v1425 = vadd.f32 0.0, %v1424
      %1426 = vmatmul.bf16.gmra.mxu0 %v1350
      %v1427 = vpop.f32.mrf.mxu0
      %v1428 = vadd.f32 0.0, %v1427
      %v1429 = vpop.f32.mrf.mxu0
      %v1430 = vadd.f32 0.0, %v1429
      %1431 = vmatmul.bf16.gmra.mxu0 %v1353
      %v1432 = vpop.f32.mrf.mxu0
      %v1433 = vadd.f32 0.0, %v1432
      %v1434 = vpop.f32.mrf.mxu0
      %v1435 = vadd.f32 0.0, %v1434
      %1436 = vmatmul.bf16.gmra.mxu0 %v1356
      %v1437 = vpop.f32.mrf.mxu0
      %v1438 = vadd.f32 0.0, %v1437
      %v1439 = vpop.f32.mrf.mxu0
      %v1440 = vadd.f32 0.0, %v1439
      %1441 = vmatmul.bf16.gmra.mxu0 %v1359
      %v1442 = vpop.f32.mrf.mxu0
      %v1443 = vadd.f32 0.0, %v1442
      %v1444 = vpop.f32.mrf.mxu0
      %v1445 = vadd.f32 0.0, %v1444
      %1446 = vmatmul.bf16.gmra.mxu0 %v1362
      %v1447 = vpop.f32.mrf.mxu0
      %v1448 = vadd.f32 0.0, %v1447
      %v1449 = vpop.f32.mrf.mxu0
      %v1450 = vadd.f32 0.0, %v1449
      %1451 = vmatmul.bf16.gmra.mxu0 %v1365
      %v1452 = vpop.f32.mrf.mxu0
      %v1453 = vadd.f32 0.0, %v1452
      %v1454 = vpop.f32.mrf.mxu0
      %v1455 = vadd.f32 0.0, %v1454
      %1456 = vmatmul.bf16.gmra.mxu0 %v1368
      %v1457 = vpop.f32.mrf.mxu0
      %v1458 = vadd.f32 0.0, %v1457
      %v1459 = vpop.f32.mrf.mxu0
      %v1460 = vadd.f32 0.0, %v1459
      %1461 = vdwg.mxu0
      %v1462 = vadd.f32 %v1240, %v1383
      %v1463 = vadd.f32 %v1241, %v1385
      %v1464 = vadd.f32 %v1242, %v1388
      %v1465 = vadd.f32 %v1243, %v1390
      %v1466 = vadd.f32 %v1244, %v1393
      %v1467 = vadd.f32 %v1245, %v1395
      %v1468 = vadd.f32 %v1246, %v1398
      %v1469 = vadd.f32 %v1247, %v1400
      %v1470 = vadd.f32 %v1248, %v1403
      %v1471 = vadd.f32 %v1249, %v1405
      %v1472 = vadd.f32 %v1250, %v1408
      %v1473 = vadd.f32 %v1251, %v1410
      %v1474 = vadd.f32 %v1252, %v1413
      %v1475 = vadd.f32 %v1253, %v1415
      %v1476 = vadd.f32 %v1254, %v1418
      %v1477 = vadd.f32 %v1255, %v1420
      %v1478 = vadd.f32 %v1256, %v1423
      %v1479 = vadd.f32 %v1257, %v1425
      %v1480 = vadd.f32 %v1258, %v1428
      %v1481 = vadd.f32 %v1259, %v1430
      %v1482 = vadd.f32 %v1260, %v1433
      %v1483 = vadd.f32 %v1261, %v1435
      %v1484 = vadd.f32 %v1262, %v1438
      %v1485 = vadd.f32 %v1263, %v1440
      %v1486 = vadd.f32 %v1264, %v1443
      %v1487 = vadd.f32 %v1265, %v1445
      %v1488 = vadd.f32 %v1266, %v1448
      %v1489 = vadd.f32 %v1267, %v1450
      %v1490 = vadd.f32 %v1268, %v1453
      %v1491 = vadd.f32 %v1269, %v1455
      %v1492 = vadd.f32 %v1270, %v1458
      %v1493 = vadd.f32 %v1271, %v1460
      %v1494 = vld [vmem:[%s382 + $0x2] sm:$0xff]
      %v1495 = vld [vmem:[%s382 + $0xa] sm:$0xff]
      %v1496 = vld [vmem:[%s382 + $0x1a] sm:$0xff]
      %v1497 = vld [vmem:[%s382 + $0x22] sm:$0xff]
      %v1498 = vld [vmem:[%s382 + $0x32] sm:$0xff]
      %v1499 = vld [vmem:[%s382 + $0x3a] sm:$0xff]
      %v1500 = vld [vmem:[%s382 + $0x4a] sm:$0xff]
      %v1501 = vld [vmem:[%s382 + $0x52] sm:$0xff]
      %v1502 = vld [vmem:[%s382 + $0x62] sm:$0xff]
      %v1503 = vld [vmem:[%s382 + $0x6a] sm:$0xff]
      %v1504 = vld [vmem:[%s382 + $0x7a] sm:$0xff]
      %v1505 = vld [vmem:[%s382 + $0x82] sm:$0xff]
      %v1506 = vld [vmem:[%s382 + $0x92] sm:$0xff]
      %v1507 = vld [vmem:[%s382 + $0x9a] sm:$0xff]
      %v1508 = vld [vmem:[%s382 + $0xaa] sm:$0xff]
      %v1509 = vld [vmem:[%s382 + $0xb2] sm:$0xff]
      %v1510 = vld [vmem:[%s382 + $0xc2] sm:$0xff]
      %v1511 = vld [vmem:[%s382 + $0xca] sm:$0xff]
      %v1512 = vld [vmem:[%s382 + $0xda] sm:$0xff]
      %v1513 = vld [vmem:[%s382 + $0xe2] sm:$0xff]
      %v1514 = vld [vmem:[%s382 + $0xf2] sm:$0xff]
      %v1515 = vld [vmem:[%s382 + $0xfa] sm:$0xff]
      %v1516 = vld [vmem:[%s382 + $0x10a] sm:$0xff]
      %v1517 = vld [vmem:[%s382 + $0x112] sm:$0xff]
      %v1518 = vld [vmem:[%s382 + $0x122] sm:$0xff]
      %v1519 = vld [vmem:[%s382 + $0x12a] sm:$0xff]
      %v1520 = vld [vmem:[%s382 + $0x13a] sm:$0xff]
      %v1521 = vld [vmem:[%s382 + $0x142] sm:$0xff]
      %v1522 = vld [vmem:[%s382 + $0x152] sm:$0xff]
      %v1523 = vld [vmem:[%s382 + $0x15a] sm:$0xff]
      %v1524 = vld [vmem:[%s382 + $0x16a] sm:$0xff]
      %v1525 = vld [vmem:[%s382 + $0x172] sm:$0xff]
      %v1526 = vpack.c.bf16 %v1495, %v1494
      %v1527 = vpack.c.bf16 %v1497, %v1496
      %v1528 = vpack.c.bf16 %v1499, %v1498
      %v1529 = vpack.c.bf16 %v1501, %v1500
      %v1530 = vpack.c.bf16 %v1503, %v1502
      %v1531 = vpack.c.bf16 %v1505, %v1504
      %v1532 = vpack.c.bf16 %v1507, %v1506
      %v1533 = vpack.c.bf16 %v1509, %v1508
      %v1534 = vpack.c.bf16 %v1511, %v1510
      %v1535 = vpack.c.bf16 %v1513, %v1512
      %v1536 = vpack.c.bf16 %v1515, %v1514
      %v1537 = vpack.c.bf16 %v1517, %v1516
      %v1538 = vpack.c.bf16 %v1519, %v1518
      %v1539 = vpack.c.bf16 %v1521, %v1520
      %v1540 = vpack.c.bf16 %v1523, %v1522
      %v1541 = vpack.c.bf16 %v1525, %v1524
      %s1542 = scalar_lea.vmem %s2, 10
      %v1543 = vld [vmem:[%s1542] sm:$0x3]
      %v1545 = vsel %vm373, %v1526, 0
      %v1548 = vsel %vm373, %v1527, 0
      %v1551 = vsel %vm373, %v1528, 0
      %v1554 = vsel %vm373, %v1529, 0
      %v1557 = vsel %vm373, %v1530, 0
      %v1560 = vsel %vm373, %v1531, 0
      %v1563 = vsel %vm373, %v1532, 0
      %v1566 = vsel %vm373, %v1533, 0
      %v1569 = vsel %vm373, %v1534, 0
      %v1572 = vsel %vm373, %v1535, 0
      %v1575 = vsel %vm373, %v1536, 0
      %v1578 = vsel %vm373, %v1537, 0
      %v1581 = vsel %vm373, %v1538, 0
      %v1584 = vsel %vm373, %v1539, 0
      %v1587 = vsel %vm373, %v1540, 0
      %v1590 = vsel %vm373, %v1541, 0
      %v1593 = vsel %vm595, %v1543, 0
      %1595 = vmatpush.bf16.msra.mxu0 0
      %1596 = vmatpush.bf16.msra.mxu0 0
      %1597 = vmatpush.bf16.msra.mxu0 0
      %1598 = vmatpush.bf16.msra.mxu0 0
      %1599 = vmatpush.bf16.msra.mxu0 0
      %1600 = vmatpush.bf16.msra.mxu0 0
      %1601 = vmatpush.bf16.msra.mxu0 0
      %1602 = vmatpush.bf16.msra.mxu0 %v1593
      %1603 = vmatmul.bf16.gmra.mxu0 %v1545
      %v1604 = vpop.f32.mrf.mxu0
      %v1605 = vadd.f32 0.0, %v1604
      %v1606 = vpop.f32.mrf.mxu0
      %v1607 = vadd.f32 0.0, %v1606
      %1608 = vmatmul.bf16.gmra.mxu0 %v1548
      %v1609 = vpop.f32.mrf.mxu0
      %v1610 = vadd.f32 0.0, %v1609
      %v1611 = vpop.f32.mrf.mxu0
      %v1612 = vadd.f32 0.0, %v1611
      %1613 = vmatmul.bf16.gmra.mxu0 %v1551
      %v1614 = vpop.f32.mrf.mxu0
      %v1615 = vadd.f32 0.0, %v1614
      %v1616 = vpop.f32.mrf.mxu0
      %v1617 = vadd.f32 0.0, %v1616
      %1618 = vmatmul.bf16.gmra.mxu0 %v1554
      %v1619 = vpop.f32.mrf.mxu0
      %v1620 = vadd.f32 0.0, %v1619
      %v1621 = vpop.f32.mrf.mxu0
      %v1622 = vadd.f32 0.0, %v1621
      %1623 = vmatmul.bf16.gmra.mxu0 %v1557
      %v1624 = vpop.f32.mrf.mxu0
      %v1625 = vadd.f32 0.0, %v1624
      %v1626 = vpop.f32.mrf.mxu0
      %v1627 = vadd.f32 0.0, %v1626
      %1628 = vmatmul.bf16.gmra.mxu0 %v1560
      %v1629 = vpop.f32.mrf.mxu0
      %v1630 = vadd.f32 0.0, %v1629
      %v1631 = vpop.f32.mrf.mxu0
      %v1632 = vadd.f32 0.0, %v1631
      %1633 = vmatmul.bf16.gmra.mxu0 %v1563
      %v1634 = vpop.f32.mrf.mxu0
      %v1635 = vadd.f32 0.0, %v1634
      %v1636 = vpop.f32.mrf.mxu0
      %v1637 = vadd.f32 0.0, %v1636
      %1638 = vmatmul.bf16.gmra.mxu0 %v1566
      %v1639 = vpop.f32.mrf.mxu0
      %v1640 = vadd.f32 0.0, %v1639
      %v1641 = vpop.f32.mrf.mxu0
      %v1642 = vadd.f32 0.0, %v1641
      %1643 = vmatmul.bf16.gmra.mxu0 %v1569
      %v1644 = vpop.f32.mrf.mxu0
      %v1645 = vadd.f32 0.0, %v1644
      %v1646 = vpop.f32.mrf.mxu0
      %v1647 = vadd.f32 0.0, %v1646
      %1648 = vmatmul.bf16.gmra.mxu0 %v1572
      %v1649 = vpop.f32.mrf.mxu0
      %v1650 = vadd.f32 0.0, %v1649
      %v1651 = vpop.f32.mrf.mxu0
      %v1652 = vadd.f32 0.0, %v1651
      %1653 = vmatmul.bf16.gmra.mxu0 %v1575
      %v1654 = vpop.f32.mrf.mxu0
      %v1655 = vadd.f32 0.0, %v1654
      %v1656 = vpop.f32.mrf.mxu0
      %v1657 = vadd.f32 0.0, %v1656
      %1658 = vmatmul.bf16.gmra.mxu0 %v1578
      %v1659 = vpop.f32.mrf.mxu0
      %v1660 = vadd.f32 0.0, %v1659
      %v1661 = vpop.f32.mrf.mxu0
      %v1662 = vadd.f32 0.0, %v1661
      %1663 = vmatmul.bf16.gmra.mxu0 %v1581
      %v1664 = vpop.f32.mrf.mxu0
      %v1665 = vadd.f32 0.0, %v1664
      %v1666 = vpop.f32.mrf.mxu0
      %v1667 = vadd.f32 0.0, %v1666
      %1668 = vmatmul.bf16.gmra.mxu0 %v1584
      %v1669 = vpop.f32.mrf.mxu0
      %v1670 = vadd.f32 0.0, %v1669
      %v1671 = vpop.f32.mrf.mxu0
      %v1672 = vadd.f32 0.0, %v1671
      %1673 = vmatmul.bf16.gmra.mxu0 %v1587
      %v1674 = vpop.f32.mrf.mxu0
      %v1675 = vadd.f32 0.0, %v1674
      %v1676 = vpop.f32.mrf.mxu0
      %v1677 = vadd.f32 0.0, %v1676
      %1678 = vmatmul.bf16.gmra.mxu0 %v1590
      %v1679 = vpop.f32.mrf.mxu0
      %v1680 = vadd.f32 0.0, %v1679
      %v1681 = vpop.f32.mrf.mxu0
      %v1682 = vadd.f32 0.0, %v1681
      %1683 = vdwg.mxu0
      %v1684 = vadd.f32 %v1462, %v1605
      %v1685 = vadd.f32 %v1463, %v1607
      %v1686 = vadd.f32 %v1464, %v1610
      %v1687 = vadd.f32 %v1465, %v1612
      %v1688 = vadd.f32 %v1466, %v1615
      %v1689 = vadd.f32 %v1467, %v1617
      %v1690 = vadd.f32 %v1468, %v1620
      %v1691 = vadd.f32 %v1469, %v1622
      %v1692 = vadd.f32 %v1470, %v1625
      %v1693 = vadd.f32 %v1471, %v1627
      %v1694 = vadd.f32 %v1472, %v1630
      %v1695 = vadd.f32 %v1473, %v1632
      %v1696 = vadd.f32 %v1474, %v1635
      %v1697 = vadd.f32 %v1475, %v1637
      %v1698 = vadd.f32 %v1476, %v1640
      %v1699 = vadd.f32 %v1477, %v1642
      %v1700 = vadd.f32 %v1478, %v1645
      %v1701 = vadd.f32 %v1479, %v1647
      %v1702 = vadd.f32 %v1480, %v1650
      %v1703 = vadd.f32 %v1481, %v1652
      %v1704 = vadd.f32 %v1482, %v1655
      %v1705 = vadd.f32 %v1483, %v1657
      %v1706 = vadd.f32 %v1484, %v1660
      %v1707 = vadd.f32 %v1485, %v1662
      %v1708 = vadd.f32 %v1486, %v1665
      %v1709 = vadd.f32 %v1487, %v1667
      %v1710 = vadd.f32 %v1488, %v1670
      %v1711 = vadd.f32 %v1489, %v1672
      %v1712 = vadd.f32 %v1490, %v1675
      %v1713 = vadd.f32 %v1491, %v1677
      %v1714 = vadd.f32 %v1492, %v1680
      %v1715 = vadd.f32 %v1493, %v1682
      %s1716 = scalar_lea.vmem [#allocation2], 48
      %v1717 = vld [vmem:[%s1716] sm:$0xff]
      %v1718 = vld [vmem:[%s1716 + $0x8] sm:$0xff]
      %v1719 = vld [vmem:[%s1716 + $0x18] sm:$0xff]
      %v1720 = vld [vmem:[%s1716 + $0x20] sm:$0xff]
      %v1721 = vld [vmem:[%s1716 + $0x30] sm:$0xff]
      %v1722 = vld [vmem:[%s1716 + $0x38] sm:$0xff]
      %v1723 = vld [vmem:[%s1716 + $0x48] sm:$0xff]
      %v1724 = vld [vmem:[%s1716 + $0x50] sm:$0xff]
      %v1725 = vld [vmem:[%s1716 + $0x60] sm:$0xff]
      %v1726 = vld [vmem:[%s1716 + $0x68] sm:$0xff]
      %v1727 = vld [vmem:[%s1716 + $0x78] sm:$0xff]
      %v1728 = vld [vmem:[%s1716 + $0x80] sm:$0xff]
      %v1729 = vld [vmem:[%s1716 + $0x90] sm:$0xff]
      %v1730 = vld [vmem:[%s1716 + $0x98] sm:$0xff]
      %v1731 = vld [vmem:[%s1716 + $0xa8] sm:$0xff]
      %v1732 = vld [vmem:[%s1716 + $0xb0] sm:$0xff]
      %v1733 = vld [vmem:[%s1716 + $0xc0] sm:$0xff]
      %v1734 = vld [vmem:[%s1716 + $0xc8] sm:$0xff]
      %v1735 = vld [vmem:[%s1716 + $0xd8] sm:$0xff]
      %v1736 = vld [vmem:[%s1716 + $0xe0] sm:$0xff]
      %v1737 = vld [vmem:[%s1716 + $0xf0] sm:$0xff]
      %v1738 = vld [vmem:[%s1716 + $0xf8] sm:$0xff]
      %v1739 = vld [vmem:[%s1716 + $0x108] sm:$0xff]
      %v1740 = vld [vmem:[%s1716 + $0x110] sm:$0xff]
      %v1741 = vld [vmem:[%s1716 + $0x120] sm:$0xff]
      %v1742 = vld [vmem:[%s1716 + $0x128] sm:$0xff]
      %v1743 = vld [vmem:[%s1716 + $0x138] sm:$0xff]
      %v1744 = vld [vmem:[%s1716 + $0x140] sm:$0xff]
      %v1745 = vld [vmem:[%s1716 + $0x150] sm:$0xff]
      %v1746 = vld [vmem:[%s1716 + $0x158] sm:$0xff]
      %v1747 = vld [vmem:[%s1716 + $0x168] sm:$0xff]
      %v1748 = vld [vmem:[%s1716 + $0x170] sm:$0xff]
      %v1749 = vpack.c.bf16 %v1718, %v1717
      %v1750 = vpack.c.bf16 %v1720, %v1719
      %v1751 = vpack.c.bf16 %v1722, %v1721
      %v1752 = vpack.c.bf16 %v1724, %v1723
      %v1753 = vpack.c.bf16 %v1726, %v1725
      %v1754 = vpack.c.bf16 %v1728, %v1727
      %v1755 = vpack.c.bf16 %v1730, %v1729
      %v1756 = vpack.c.bf16 %v1732, %v1731
      %v1757 = vpack.c.bf16 %v1734, %v1733
      %v1758 = vpack.c.bf16 %v1736, %v1735
      %v1759 = vpack.c.bf16 %v1738, %v1737
      %v1760 = vpack.c.bf16 %v1740, %v1739
      %v1761 = vpack.c.bf16 %v1742, %v1741
      %v1762 = vpack.c.bf16 %v1744, %v1743
      %v1763 = vpack.c.bf16 %v1746, %v1745
      %v1764 = vpack.c.bf16 %v1748, %v1747
      %s1765 = scalar_lea.vmem %s2, 12
      %v1766 = vld [vmem:[%s1765] sm:$0x3]
      %v1768 = vsel %vm373, %v1749, 0
      %v1771 = vsel %vm373, %v1750, 0
      %v1774 = vsel %vm373, %v1751, 0
      %v1777 = vsel %vm373, %v1752, 0
      %v1780 = vsel %vm373, %v1753, 0
      %v1783 = vsel %vm373, %v1754, 0
      %v1786 = vsel %vm373, %v1755, 0
      %v1789 = vsel %vm373, %v1756, 0
      %v1792 = vsel %vm373, %v1757, 0
      %v1795 = vsel %vm373, %v1758, 0
      %v1798 = vsel %vm373, %v1759, 0
      %v1801 = vsel %vm373, %v1760, 0
      %v1804 = vsel %vm373, %v1761, 0
      %v1807 = vsel %vm373, %v1762, 0
      %v1810 = vsel %vm373, %v1763, 0
      %v1813 = vsel %vm373, %v1764, 0
      %v1816 = vsel %vm595, %v1766, 0
      %1818 = vmatpush.bf16.msra.mxu0 0
      %1819 = vmatpush.bf16.msra.mxu0 0
      %1820 = vmatpush.bf16.msra.mxu0 0
      %1821 = vmatpush.bf16.msra.mxu0 0
      %1822 = vmatpush.bf16.msra.mxu0 0
      %1823 = vmatpush.bf16.msra.mxu0 0
      %1824 = vmatpush.bf16.msra.mxu0 0
      %1825 = vmatpush.bf16.msra.mxu0 %v1816
      %1826 = vmatmul.bf16.gmra.mxu0 %v1768
      %v1827 = vpop.f32.mrf.mxu0
      %v1828 = vadd.f32 0.0, %v1827
      %v1829 = vpop.f32.mrf.mxu0
      %v1830 = vadd.f32 0.0, %v1829
      %1831 = vmatmul.bf16.gmra.mxu0 %v1771
      %v1832 = vpop.f32.mrf.mxu0
      %v1833 = vadd.f32 0.0, %v1832
      %v1834 = vpop.f32.mrf.mxu0
      %v1835 = vadd.f32 0.0, %v1834
      %1836 = vmatmul.bf16.gmra.mxu0 %v1774
      %v1837 = vpop.f32.mrf.mxu0
      %v1838 = vadd.f32 0.0, %v1837
      %v1839 = vpop.f32.mrf.mxu0
      %v1840 = vadd.f32 0.0, %v1839
      %1841 = vmatmul.bf16.gmra.mxu0 %v1777
      %v1842 = vpop.f32.mrf.mxu0
      %v1843 = vadd.f32 0.0, %v1842
      %v1844 = vpop.f32.mrf.mxu0
      %v1845 = vadd.f32 0.0, %v1844
      %1846 = vmatmul.bf16.gmra.mxu0 %v1780
      %v1847 = vpop.f32.mrf.mxu0
      %v1848 = vadd.f32 0.0, %v1847
      %v1849 = vpop.f32.mrf.mxu0
      %v1850 = vadd.f32 0.0, %v1849
      %1851 = vmatmul.bf16.gmra.mxu0 %v1783
      %v1852 = vpop.f32.mrf.mxu0
      %v1853 = vadd.f32 0.0, %v1852
      %v1854 = vpop.f32.mrf.mxu0
      %v1855 = vadd.f32 0.0, %v1854
      %1856 = vmatmul.bf16.gmra.mxu0 %v1786
      %v1857 = vpop.f32.mrf.mxu0
      %v1858 = vadd.f32 0.0, %v1857
      %v1859 = vpop.f32.mrf.mxu0
      %v1860 = vadd.f32 0.0, %v1859
      %1861 = vmatmul.bf16.gmra.mxu0 %v1789
      %v1862 = vpop.f32.mrf.mxu0
      %v1863 = vadd.f32 0.0, %v1862
      %v1864 = vpop.f32.mrf.mxu0
      %v1865 = vadd.f32 0.0, %v1864
      %1866 = vmatmul.bf16.gmra.mxu0 %v1792
      %v1867 = vpop.f32.mrf.mxu0
      %v1868 = vadd.f32 0.0, %v1867
      %v1869 = vpop.f32.mrf.mxu0
      %v1870 = vadd.f32 0.0, %v1869
      %1871 = vmatmul.bf16.gmra.mxu0 %v1795
      %v1872 = vpop.f32.mrf.mxu0
      %v1873 = vadd.f32 0.0, %v1872
      %v1874 = vpop.f32.mrf.mxu0
      %v1875 = vadd.f32 0.0, %v1874
      %1876 = vmatmul.bf16.gmra.mxu0 %v1798
      %v1877 = vpop.f32.mrf.mxu0
      %v1878 = vadd.f32 0.0, %v1877
      %v1879 = vpop.f32.mrf.mxu0
      %v1880 = vadd.f32 0.0, %v1879
      %1881 = vmatmul.bf16.gmra.mxu0 %v1801
      %v1882 = vpop.f32.mrf.mxu0
      %v1883 = vadd.f32 0.0, %v1882
      %v1884 = vpop.f32.mrf.mxu0
      %v1885 = vadd.f32 0.0, %v1884
      %1886 = vmatmul.bf16.gmra.mxu0 %v1804
      %v1887 = vpop.f32.mrf.mxu0
      %v1888 = vadd.f32 0.0, %v1887
      %v1889 = vpop.f32.mrf.mxu0
      %v1890 = vadd.f32 0.0, %v1889
      %1891 = vmatmul.bf16.gmra.mxu0 %v1807
      %v1892 = vpop.f32.mrf.mxu0
      %v1893 = vadd.f32 0.0, %v1892
      %v1894 = vpop.f32.mrf.mxu0
      %v1895 = vadd.f32 0.0, %v1894
      %1896 = vmatmul.bf16.gmra.mxu0 %v1810
      %v1897 = vpop.f32.mrf.mxu0
      %v1898 = vadd.f32 0.0, %v1897
      %v1899 = vpop.f32.mrf.mxu0
      %v1900 = vadd.f32 0.0, %v1899
      %1901 = vmatmul.bf16.gmra.mxu0 %v1813
      %v1902 = vpop.f32.mrf.mxu0
      %v1903 = vadd.f32 0.0, %v1902
      %v1904 = vpop.f32.mrf.mxu0
      %v1905 = vadd.f32 0.0, %v1904
      %1906 = vdwg.mxu0
      %v1907 = vadd.f32 %v1684, %v1828
      %v1908 = vadd.f32 %v1685, %v1830
      %v1909 = vadd.f32 %v1686, %v1833
      %v1910 = vadd.f32 %v1687, %v1835
      %v1911 = vadd.f32 %v1688, %v1838
      %v1912 = vadd.f32 %v1689, %v1840
      %v1913 = vadd.f32 %v1690, %v1843
      %v1914 = vadd.f32 %v1691, %v1845
      %v1915 = vadd.f32 %v1692, %v1848
      %v1916 = vadd.f32 %v1693, %v1850
      %v1917 = vadd.f32 %v1694, %v1853
      %v1918 = vadd.f32 %v1695, %v1855
      %v1919 = vadd.f32 %v1696, %v1858
      %v1920 = vadd.f32 %v1697, %v1860
      %v1921 = vadd.f32 %v1698, %v1863
      %v1922 = vadd.f32 %v1699, %v1865
      %v1923 = vadd.f32 %v1700, %v1868
      %v1924 = vadd.f32 %v1701, %v1870
      %v1925 = vadd.f32 %v1702, %v1873
      %v1926 = vadd.f32 %v1703, %v1875
      %v1927 = vadd.f32 %v1704, %v1878
      %v1928 = vadd.f32 %v1705, %v1880
      %v1929 = vadd.f32 %v1706, %v1883
      %v1930 = vadd.f32 %v1707, %v1885
      %v1931 = vadd.f32 %v1708, %v1888
      %v1932 = vadd.f32 %v1709, %v1890
      %v1933 = vadd.f32 %v1710, %v1893
      %v1934 = vadd.f32 %v1711, %v1895
      %v1935 = vadd.f32 %v1712, %v1898
      %v1936 = vadd.f32 %v1713, %v1900
      %v1937 = vadd.f32 %v1714, %v1903
      %v1938 = vadd.f32 %v1715, %v1905
      %v1939 = vld [vmem:[%s1716 + $0x1] sm:$0xff]
      %v1940 = vld [vmem:[%s1716 + $0x9] sm:$0xff]
      %v1941 = vld [vmem:[%s1716 + $0x19] sm:$0xff]
      %v1942 = vld [vmem:[%s1716 + $0x21] sm:$0xff]
      %v1943 = vld [vmem:[%s1716 + $0x31] sm:$0xff]
      %v1944 = vld [vmem:[%s1716 + $0x39] sm:$0xff]
      %v1945 = vld [vmem:[%s1716 + $0x49] sm:$0xff]
      %v1946 = vld [vmem:[%s1716 + $0x51] sm:$0xff]
      %v1947 = vld [vmem:[%s1716 + $0x61] sm:$0xff]
      %v1948 = vld [vmem:[%s1716 + $0x69] sm:$0xff]
      %v1949 = vld [vmem:[%s1716 + $0x79] sm:$0xff]
      %v1950 = vld [vmem:[%s1716 + $0x81] sm:$0xff]
      %v1951 = vld [vmem:[%s1716 + $0x91] sm:$0xff]
      %v1952 = vld [vmem:[%s1716 + $0x99] sm:$0xff]
      %v1953 = vld [vmem:[%s1716 + $0xa9] sm:$0xff]
      %v1954 = vld [vmem:[%s1716 + $0xb1] sm:$0xff]
      %v1955 = vld [vmem:[%s1716 + $0xc1] sm:$0xff]
      %v1956 = vld [vmem:[%s1716 + $0xc9] sm:$0xff]
      %v1957 = vld [vmem:[%s1716 + $0xd9] sm:$0xff]
      %v1958 = vld [vmem:[%s1716 + $0xe1] sm:$0xff]
      %v1959 = vld [vmem:[%s1716 + $0xf1] sm:$0xff]
      %v1960 = vld [vmem:[%s1716 + $0xf9] sm:$0xff]
      %v1961 = vld [vmem:[%s1716 + $0x109] sm:$0xff]
      %v1962 = vld [vmem:[%s1716 + $0x111] sm:$0xff]
      %v1963 = vld [vmem:[%s1716 + $0x121] sm:$0xff]
      %v1964 = vld [vmem:[%s1716 + $0x129] sm:$0xff]
      %v1965 = vld [vmem:[%s1716 + $0x139] sm:$0xff]
      %v1966 = vld [vmem:[%s1716 + $0x141] sm:$0xff]
      %v1967 = vld [vmem:[%s1716 + $0x151] sm:$0xff]
      %v1968 = vld [vmem:[%s1716 + $0x159] sm:$0xff]
      %v1969 = vld [vmem:[%s1716 + $0x169] sm:$0xff]
      %v1970 = vld [vmem:[%s1716 + $0x171] sm:$0xff]
      %v1971 = vpack.c.bf16 %v1940, %v1939
      %v1972 = vpack.c.bf16 %v1942, %v1941
      %v1973 = vpack.c.bf16 %v1944, %v1943
      %v1974 = vpack.c.bf16 %v1946, %v1945
      %v1975 = vpack.c.bf16 %v1948, %v1947
      %v1976 = vpack.c.bf16 %v1950, %v1949
      %v1977 = vpack.c.bf16 %v1952, %v1951
      %v1978 = vpack.c.bf16 %v1954, %v1953
      %v1979 = vpack.c.bf16 %v1956, %v1955
      %v1980 = vpack.c.bf16 %v1958, %v1957
      %v1981 = vpack.c.bf16 %v1960, %v1959
      %v1982 = vpack.c.bf16 %v1962, %v1961
      %v1983 = vpack.c.bf16 %v1964, %v1963
      %v1984 = vpack.c.bf16 %v1966, %v1965
      %v1985 = vpack.c.bf16 %v1968, %v1967
      %v1986 = vpack.c.bf16 %v1970, %v1969
      %s1987 = scalar_lea.vmem %s2, 14
      %v1988 = vld [vmem:[%s1987] sm:$0x3]
      %v1990 = vsel %vm373, %v1971, 0
      %v1993 = vsel %vm373, %v1972, 0
      %v1996 = vsel %vm373, %v1973, 0
      %v1999 = vsel %vm373, %v1974, 0
      %v2002 = vsel %vm373, %v1975, 0
      %v2005 = vsel %vm373, %v1976, 0
      %v2008 = vsel %vm373, %v1977, 0
      %v2011 = vsel %vm373, %v1978, 0
      %v2014 = vsel %vm373, %v1979, 0
      %v2017 = vsel %vm373, %v1980, 0
      %v2020 = vsel %vm373, %v1981, 0
      %v2023 = vsel %vm373, %v1982, 0
      %v2026 = vsel %vm373, %v1983, 0
      %v2029 = vsel %vm373, %v1984, 0
      %v2032 = vsel %vm373, %v1985, 0
      %v2035 = vsel %vm373, %v1986, 0
      %v2038 = vsel %vm595, %v1988, 0
      %2040 = vmatpush.bf16.msra.mxu0 0
      %2041 = vmatpush.bf16.msra.mxu0 0
      %2042 = vmatpush.bf16.msra.mxu0 0
      %2043 = vmatpush.bf16.msra.mxu0 0
      %2044 = vmatpush.bf16.msra.mxu0 0
      %2045 = vmatpush.bf16.msra.mxu0 0
      %2046 = vmatpush.bf16.msra.mxu0 0
      %2047 = vmatpush.bf16.msra.mxu0 %v2038
      %2048 = vmatmul.bf16.gmra.mxu0 %v1990
      %v2049 = vpop.f32.mrf.mxu0
      %v2050 = vadd.f32 0.0, %v2049
      %v2051 = vpop.f32.mrf.mxu0
      %v2052 = vadd.f32 0.0, %v2051
      %2053 = vmatmul.bf16.gmra.mxu0 %v1993
      %v2054 = vpop.f32.mrf.mxu0
      %v2055 = vadd.f32 0.0, %v2054
      %v2056 = vpop.f32.mrf.mxu0
      %v2057 = vadd.f32 0.0, %v2056
      %2058 = vmatmul.bf16.gmra.mxu0 %v1996
      %v2059 = vpop.f32.mrf.mxu0
      %v2060 = vadd.f32 0.0, %v2059
      %v2061 = vpop.f32.mrf.mxu0
      %v2062 = vadd.f32 0.0, %v2061
      %2063 = vmatmul.bf16.gmra.mxu0 %v1999
      %v2064 = vpop.f32.mrf.mxu0
      %v2065 = vadd.f32 0.0, %v2064
      %v2066 = vpop.f32.mrf.mxu0
      %v2067 = vadd.f32 0.0, %v2066
      %2068 = vmatmul.bf16.gmra.mxu0 %v2002
      %v2069 = vpop.f32.mrf.mxu0
      %v2070 = vadd.f32 0.0, %v2069
      %v2071 = vpop.f32.mrf.mxu0
      %v2072 = vadd.f32 0.0, %v2071
      %2073 = vmatmul.bf16.gmra.mxu0 %v2005
      %v2074 = vpop.f32.mrf.mxu0
      %v2075 = vadd.f32 0.0, %v2074
      %v2076 = vpop.f32.mrf.mxu0
      %v2077 = vadd.f32 0.0, %v2076
      %2078 = vmatmul.bf16.gmra.mxu0 %v2008
      %v2079 = vpop.f32.mrf.mxu0
      %v2080 = vadd.f32 0.0, %v2079
      %v2081 = vpop.f32.mrf.mxu0
      %v2082 = vadd.f32 0.0, %v2081
      %2083 = vmatmul.bf16.gmra.mxu0 %v2011
      %v2084 = vpop.f32.mrf.mxu0
      %v2085 = vadd.f32 0.0, %v2084
      %v2086 = vpop.f32.mrf.mxu0
      %v2087 = vadd.f32 0.0, %v2086
      %2088 = vmatmul.bf16.gmra.mxu0 %v2014
      %v2089 = vpop.f32.mrf.mxu0
      %v2090 = vadd.f32 0.0, %v2089
      %v2091 = vpop.f32.mrf.mxu0
      %v2092 = vadd.f32 0.0, %v2091
      %2093 = vmatmul.bf16.gmra.mxu0 %v2017
      %v2094 = vpop.f32.mrf.mxu0
      %v2095 = vadd.f32 0.0, %v2094
      %v2096 = vpop.f32.mrf.mxu0
      %v2097 = vadd.f32 0.0, %v2096
      %2098 = vmatmul.bf16.gmra.mxu0 %v2020
      %v2099 = vpop.f32.mrf.mxu0
      %v2100 = vadd.f32 0.0, %v2099
      %v2101 = vpop.f32.mrf.mxu0
      %v2102 = vadd.f32 0.0, %v2101
      %2103 = vmatmul.bf16.gmra.mxu0 %v2023
      %v2104 = vpop.f32.mrf.mxu0
      %v2105 = vadd.f32 0.0, %v2104
      %v2106 = vpop.f32.mrf.mxu0
      %v2107 = vadd.f32 0.0, %v2106
      %2108 = vmatmul.bf16.gmra.mxu0 %v2026
      %v2109 = vpop.f32.mrf.mxu0
      %v2110 = vadd.f32 0.0, %v2109
      %v2111 = vpop.f32.mrf.mxu0
      %v2112 = vadd.f32 0.0, %v2111
      %2113 = vmatmul.bf16.gmra.mxu0 %v2029
      %v2114 = vpop.f32.mrf.mxu0
      %v2115 = vadd.f32 0.0, %v2114
      %v2116 = vpop.f32.mrf.mxu0
      %v2117 = vadd.f32 0.0, %v2116
      %2118 = vmatmul.bf16.gmra.mxu0 %v2032
      %v2119 = vpop.f32.mrf.mxu0
      %v2120 = vadd.f32 0.0, %v2119
      %v2121 = vpop.f32.mrf.mxu0
      %v2122 = vadd.f32 0.0, %v2121
      %2123 = vmatmul.bf16.gmra.mxu0 %v2035
      %v2124 = vpop.f32.mrf.mxu0
      %v2125 = vadd.f32 0.0, %v2124
      %v2126 = vpop.f32.mrf.mxu0
      %v2127 = vadd.f32 0.0, %v2126
      %2128 = vdwg.mxu0
      %v2129 = vadd.f32 %v1907, %v2050
      %v2130 = vadd.f32 %v1908, %v2052
      %v2131 = vadd.f32 %v1909, %v2055
      %v2132 = vadd.f32 %v1910, %v2057
      %v2133 = vadd.f32 %v1911, %v2060
      %v2134 = vadd.f32 %v1912, %v2062
      %v2135 = vadd.f32 %v1913, %v2065
      %v2136 = vadd.f32 %v1914, %v2067
      %v2137 = vadd.f32 %v1915, %v2070
      %v2138 = vadd.f32 %v1916, %v2072
      %v2139 = vadd.f32 %v1917, %v2075
      %v2140 = vadd.f32 %v1918, %v2077
      %v2141 = vadd.f32 %v1919, %v2080
      %v2142 = vadd.f32 %v1920, %v2082
      %v2143 = vadd.f32 %v1921, %v2085
      %v2144 = vadd.f32 %v1922, %v2087
      %v2145 = vadd.f32 %v1923, %v2090
      %v2146 = vadd.f32 %v1924, %v2092
      %v2147 = vadd.f32 %v1925, %v2095
      %v2148 = vadd.f32 %v1926, %v2097
      %v2149 = vadd.f32 %v1927, %v2100
      %v2150 = vadd.f32 %v1928, %v2102
      %v2151 = vadd.f32 %v1929, %v2105
      %v2152 = vadd.f32 %v1930, %v2107
      %v2153 = vadd.f32 %v1931, %v2110
      %v2154 = vadd.f32 %v1932, %v2112
      %v2155 = vadd.f32 %v1933, %v2115
      %v2156 = vadd.f32 %v1934, %v2117
      %v2157 = vadd.f32 %v1935, %v2120
      %v2158 = vadd.f32 %v1936, %v2122
      %v2159 = vadd.f32 %v1937, %v2125
      %v2160 = vadd.f32 %v1938, %v2127
      %v2161 = vld [vmem:[%s1716 + $0x2] sm:$0xff]
      %v2162 = vld [vmem:[%s1716 + $0xa] sm:$0xff]
      %v2163 = vld [vmem:[%s1716 + $0x1a] sm:$0xff]
      %v2164 = vld [vmem:[%s1716 + $0x22] sm:$0xff]
      %v2165 = vld [vmem:[%s1716 + $0x32] sm:$0xff]
      %v2166 = vld [vmem:[%s1716 + $0x3a] sm:$0xff]
      %v2167 = vld [vmem:[%s1716 + $0x4a] sm:$0xff]
      %v2168 = vld [vmem:[%s1716 + $0x52] sm:$0xff]
      %v2169 = vld [vmem:[%s1716 + $0x62] sm:$0xff]
      %v2170 = vld [vmem:[%s1716 + $0x6a] sm:$0xff]
      %v2171 = vld [vmem:[%s1716 + $0x7a] sm:$0xff]
      %v2172 = vld [vmem:[%s1716 + $0x82] sm:$0xff]
      %v2173 = vld [vmem:[%s1716 + $0x92] sm:$0xff]
      %v2174 = vld [vmem:[%s1716 + $0x9a] sm:$0xff]
      %v2175 = vld [vmem:[%s1716 + $0xaa] sm:$0xff]
      %v2176 = vld [vmem:[%s1716 + $0xb2] sm:$0xff]
      %v2177 = vld [vmem:[%s1716 + $0xc2] sm:$0xff]
      %v2178 = vld [vmem:[%s1716 + $0xca] sm:$0xff]
      %v2179 = vld [vmem:[%s1716 + $0xda] sm:$0xff]
      %v2180 = vld [vmem:[%s1716 + $0xe2] sm:$0xff]
      %v2181 = vld [vmem:[%s1716 + $0xf2] sm:$0xff]
      %v2182 = vld [vmem:[%s1716 + $0xfa] sm:$0xff]
      %v2183 = vld [vmem:[%s1716 + $0x10a] sm:$0xff]
      %v2184 = vld [vmem:[%s1716 + $0x112] sm:$0xff]
      %v2185 = vld [vmem:[%s1716 + $0x122] sm:$0xff]
      %v2186 = vld [vmem:[%s1716 + $0x12a] sm:$0xff]
      %v2187 = vld [vmem:[%s1716 + $0x13a] sm:$0xff]
      %v2188 = vld [vmem:[%s1716 + $0x142] sm:$0xff]
      %v2189 = vld [vmem:[%s1716 + $0x152] sm:$0xff]
      %v2190 = vld [vmem:[%s1716 + $0x15a] sm:$0xff]
      %v2191 = vld [vmem:[%s1716 + $0x16a] sm:$0xff]
      %v2192 = vld [vmem:[%s1716 + $0x172] sm:$0xff]
      %v2193 = vpack.c.bf16 %v2162, %v2161
      %v2194 = vpack.c.bf16 %v2164, %v2163
      %v2195 = vpack.c.bf16 %v2166, %v2165
      %v2196 = vpack.c.bf16 %v2168, %v2167
      %v2197 = vpack.c.bf16 %v2170, %v2169
      %v2198 = vpack.c.bf16 %v2172, %v2171
      %v2199 = vpack.c.bf16 %v2174, %v2173
      %v2200 = vpack.c.bf16 %v2176, %v2175
      %v2201 = vpack.c.bf16 %v2178, %v2177
      %v2202 = vpack.c.bf16 %v2180, %v2179
      %v2203 = vpack.c.bf16 %v2182, %v2181
      %v2204 = vpack.c.bf16 %v2184, %v2183
      %v2205 = vpack.c.bf16 %v2186, %v2185
      %v2206 = vpack.c.bf16 %v2188, %v2187
      %v2207 = vpack.c.bf16 %v2190, %v2189
      %v2208 = vpack.c.bf16 %v2192, %v2191
      %s2209 = scalar_lea.vmem %s2, 16
      %v2210 = vld [vmem:[%s2209] sm:$0x3]
      %v2212 = vsel %vm373, %v2193, 0
      %v2215 = vsel %vm373, %v2194, 0
      %v2218 = vsel %vm373, %v2195, 0
      %v2221 = vsel %vm373, %v2196, 0
      %v2224 = vsel %vm373, %v2197, 0
      %v2227 = vsel %vm373, %v2198, 0
      %v2230 = vsel %vm373, %v2199, 0
      %v2233 = vsel %vm373, %v2200, 0
      %v2236 = vsel %vm373, %v2201, 0
      %v2239 = vsel %vm373, %v2202, 0
      %v2242 = vsel %vm373, %v2203, 0
      %v2245 = vsel %vm373, %v2204, 0
      %v2248 = vsel %vm373, %v2205, 0
      %v2251 = vsel %vm373, %v2206, 0
      %v2254 = vsel %vm373, %v2207, 0
      %v2257 = vsel %vm373, %v2208, 0
      %v2260 = vsel %vm595, %v2210, 0
      %2262 = vmatpush.bf16.msra.mxu0 0
      %2263 = vmatpush.bf16.msra.mxu0 0
      %2264 = vmatpush.bf16.msra.mxu0 0
      %2265 = vmatpush.bf16.msra.mxu0 0
      %2266 = vmatpush.bf16.msra.mxu0 0
      %2267 = vmatpush.bf16.msra.mxu0 0
      %2268 = vmatpush.bf16.msra.mxu0 0
      %2269 = vmatpush.bf16.msra.mxu0 %v2260
      %2270 = vmatmul.bf16.gmra.mxu0 %v2212
      %v2271 = vpop.f32.mrf.mxu0
      %v2272 = vadd.f32 0.0, %v2271
      %v2273 = vpop.f32.mrf.mxu0
      %v2274 = vadd.f32 0.0, %v2273
      %2275 = vmatmul.bf16.gmra.mxu0 %v2215
      %v2276 = vpop.f32.mrf.mxu0
      %v2277 = vadd.f32 0.0, %v2276
      %v2278 = vpop.f32.mrf.mxu0
      %v2279 = vadd.f32 0.0, %v2278
      %2280 = vmatmul.bf16.gmra.mxu0 %v2218
      %v2281 = vpop.f32.mrf.mxu0
      %v2282 = vadd.f32 0.0, %v2281
      %v2283 = vpop.f32.mrf.mxu0
      %v2284 = vadd.f32 0.0, %v2283
      %2285 = vmatmul.bf16.gmra.mxu0 %v2221
      %v2286 = vpop.f32.mrf.mxu0
      %v2287 = vadd.f32 0.0, %v2286
      %v2288 = vpop.f32.mrf.mxu0
      %v2289 = vadd.f32 0.0, %v2288
      %2290 = vmatmul.bf16.gmra.mxu0 %v2224
      %v2291 = vpop.f32.mrf.mxu0
      %v2292 = vadd.f32 0.0, %v2291
      %v2293 = vpop.f32.mrf.mxu0
      %v2294 = vadd.f32 0.0, %v2293
      %2295 = vmatmul.bf16.gmra.mxu0 %v2227
      %v2296 = vpop.f32.mrf.mxu0
      %v2297 = vadd.f32 0.0, %v2296
      %v2298 = vpop.f32.mrf.mxu0
      %v2299 = vadd.f32 0.0, %v2298
      %2300 = vmatmul.bf16.gmra.mxu0 %v2230
      %v2301 = vpop.f32.mrf.mxu0
      %v2302 = vadd.f32 0.0, %v2301
      %v2303 = vpop.f32.mrf.mxu0
      %v2304 = vadd.f32 0.0, %v2303
      %2305 = vmatmul.bf16.gmra.mxu0 %v2233
      %v2306 = vpop.f32.mrf.mxu0
      %v2307 = vadd.f32 0.0, %v2306
      %v2308 = vpop.f32.mrf.mxu0
      %v2309 = vadd.f32 0.0, %v2308
      %2310 = vmatmul.bf16.gmra.mxu0 %v2236
      %v2311 = vpop.f32.mrf.mxu0
      %v2312 = vadd.f32 0.0, %v2311
      %v2313 = vpop.f32.mrf.mxu0
      %v2314 = vadd.f32 0.0, %v2313
      %2315 = vmatmul.bf16.gmra.mxu0 %v2239
      %v2316 = vpop.f32.mrf.mxu0
      %v2317 = vadd.f32 0.0, %v2316
      %v2318 = vpop.f32.mrf.mxu0
      %v2319 = vadd.f32 0.0, %v2318
      %2320 = vmatmul.bf16.gmra.mxu0 %v2242
      %v2321 = vpop.f32.mrf.mxu0
      %v2322 = vadd.f32 0.0, %v2321
      %v2323 = vpop.f32.mrf.mxu0
      %v2324 = vadd.f32 0.0, %v2323
      %2325 = vmatmul.bf16.gmra.mxu0 %v2245
      %v2326 = vpop.f32.mrf.mxu0
      %v2327 = vadd.f32 0.0, %v2326
      %v2328 = vpop.f32.mrf.mxu0
      %v2329 = vadd.f32 0.0, %v2328
      %2330 = vmatmul.bf16.gmra.mxu0 %v2248
      %v2331 = vpop.f32.mrf.mxu0
      %v2332 = vadd.f32 0.0, %v2331
      %v2333 = vpop.f32.mrf.mxu0
      %v2334 = vadd.f32 0.0, %v2333
      %2335 = vmatmul.bf16.gmra.mxu0 %v2251
      %v2336 = vpop.f32.mrf.mxu0
      %v2337 = vadd.f32 0.0, %v2336
      %v2338 = vpop.f32.mrf.mxu0
      %v2339 = vadd.f32 0.0, %v2338
      %2340 = vmatmul.bf16.gmra.mxu0 %v2254
      %v2341 = vpop.f32.mrf.mxu0
      %v2342 = vadd.f32 0.0, %v2341
      %v2343 = vpop.f32.mrf.mxu0
      %v2344 = vadd.f32 0.0, %v2343
      %2345 = vmatmul.bf16.gmra.mxu0 %v2257
      %v2346 = vpop.f32.mrf.mxu0
      %v2347 = vadd.f32 0.0, %v2346
      %v2348 = vpop.f32.mrf.mxu0
      %v2349 = vadd.f32 0.0, %v2348
      %2350 = vdwg.mxu0
      %v2351 = vadd.f32 %v2129, %v2272
      %v2352 = vadd.f32 %v2130, %v2274
      %v2353 = vadd.f32 %v2131, %v2277
      %v2354 = vadd.f32 %v2132, %v2279
      %v2355 = vadd.f32 %v2133, %v2282
      %v2356 = vadd.f32 %v2134, %v2284
      %v2357 = vadd.f32 %v2135, %v2287
      %v2358 = vadd.f32 %v2136, %v2289
      %v2359 = vadd.f32 %v2137, %v2292
      %v2360 = vadd.f32 %v2138, %v2294
      %v2361 = vadd.f32 %v2139, %v2297
      %v2362 = vadd.f32 %v2140, %v2299
      %v2363 = vadd.f32 %v2141, %v2302
      %v2364 = vadd.f32 %v2142, %v2304
      %v2365 = vadd.f32 %v2143, %v2307
      %v2366 = vadd.f32 %v2144, %v2309
      %v2367 = vadd.f32 %v2145, %v2312
      %v2368 = vadd.f32 %v2146, %v2314
      %v2369 = vadd.f32 %v2147, %v2317
      %v2370 = vadd.f32 %v2148, %v2319
      %v2371 = vadd.f32 %v2149, %v2322
      %v2372 = vadd.f32 %v2150, %v2324
      %v2373 = vadd.f32 %v2151, %v2327
      %v2374 = vadd.f32 %v2152, %v2329
      %v2375 = vadd.f32 %v2153, %v2332
      %v2376 = vadd.f32 %v2154, %v2334
      %v2377 = vadd.f32 %v2155, %v2337
      %v2378 = vadd.f32 %v2156, %v2339
      %v2379 = vadd.f32 %v2157, %v2342
      %v2380 = vadd.f32 %v2158, %v2344
      %v2381 = vadd.f32 %v2159, %v2347
      %v2382 = vadd.f32 %v2160, %v2349
      %v2383 = vpack.c.bf16 %v2351, %v2351
      %v2384 = vpack.c.bf16 %v2352, %v2352
      %v2385 = vpack.c.bf16 %v2353, %v2353
      %v2386 = vpack.c.bf16 %v2354, %v2354
      %v2387 = vpack.c.bf16 %v2355, %v2355
      %v2388 = vpack.c.bf16 %v2356, %v2356
      %v2389 = vpack.c.bf16 %v2357, %v2357
      %v2390 = vpack.c.bf16 %v2358, %v2358
      %v2391 = vpack.c.bf16 %v2359, %v2359
      %v2392 = vpack.c.bf16 %v2360, %v2360
      %v2393 = vpack.c.bf16 %v2361, %v2361
      %v2394 = vpack.c.bf16 %v2362, %v2362
      %v2395 = vpack.c.bf16 %v2363, %v2363
      %v2396 = vpack.c.bf16 %v2364, %v2364
      %v2397 = vpack.c.bf16 %v2365, %v2365
      %v2398 = vpack.c.bf16 %v2366, %v2366
      %v2399 = vpack.c.bf16 %v2367, %v2367
      %v2400 = vpack.c.bf16 %v2368, %v2368
      %v2401 = vpack.c.bf16 %v2369, %v2369
      %v2402 = vpack.c.bf16 %v2370, %v2370
      %v2403 = vpack.c.bf16 %v2371, %v2371
      %v2404 = vpack.c.bf16 %v2372, %v2372
      %v2405 = vpack.c.bf16 %v2373, %v2373
      %v2406 = vpack.c.bf16 %v2374, %v2374
      %v2407 = vpack.c.bf16 %v2375, %v2375
      %v2408 = vpack.c.bf16 %v2376, %v2376
      %v2409 = vpack.c.bf16 %v2377, %v2377
      %v2410 = vpack.c.bf16 %v2378, %v2378
      %v2411 = vpack.c.bf16 %v2379, %v2379
      %v2412 = vpack.c.bf16 %v2380, %v2380
      %v2413 = vpack.c.bf16 %v2381, %v2381
      %v2414 = vpack.c.bf16 %v2382, %v2382
      %vm2415 = vcmask 27648
      %2416 = vst.msk [vmem:[%s204] sm:$0xf] %vm2415, %v2383
      %2417 = vst.msk [vmem:[%s204 + $0x4] sm:$0xf] %vm2415, %v2384
      %2418 = vst.msk [vmem:[%s204 + $0x8] sm:$0xf] %vm2415, %v2385
      %2419 = vst.msk [vmem:[%s204 + $0xc] sm:$0xf] %vm2415, %v2386
      %2420 = vst.msk [vmem:[%s204 + $0x10] sm:$0xf] %vm2415, %v2387
      %2421 = vst.msk [vmem:[%s204 + $0x14] sm:$0xf] %vm2415, %v2388
      %2422 = vst.msk [vmem:[%s204 + $0x18] sm:$0xf] %vm2415, %v2389
      %2423 = vst.msk [vmem:[%s204 + $0x1c] sm:$0xf] %vm2415, %v2390
      %2424 = vst.msk [vmem:[%s204 + $0x20] sm:$0xf] %vm2415, %v2391
      %2425 = vst.msk [vmem:[%s204 + $0x24] sm:$0xf] %vm2415, %v2392
      %2426 = vst.msk [vmem:[%s204 + $0x28] sm:$0xf] %vm2415, %v2393
      %2427 = vst.msk [vmem:[%s204 + $0x2c] sm:$0xf] %vm2415, %v2394
      %2428 = vst.msk [vmem:[%s204 + $0x30] sm:$0xf] %vm2415, %v2395
      %2429 = vst.msk [vmem:[%s204 + $0x34] sm:$0xf] %vm2415, %v2396
      %2430 = vst.msk [vmem:[%s204 + $0x38] sm:$0xf] %vm2415, %v2397
      %2431 = vst.msk [vmem:[%s204 + $0x3c] sm:$0xf] %vm2415, %v2398
      %2432 = vst.msk [vmem:[%s204 + $0x40] sm:$0xf] %vm2415, %v2399
      %2433 = vst.msk [vmem:[%s204 + $0x44] sm:$0xf] %vm2415, %v2400
      %2434 = vst.msk [vmem:[%s204 + $0x48] sm:$0xf] %vm2415, %v2401
      %2435 = vst.msk [vmem:[%s204 + $0x4c] sm:$0xf] %vm2415, %v2402
      %2436 = vst.msk [vmem:[%s204 + $0x50] sm:$0xf] %vm2415, %v2403
      %2437 = vst.msk [vmem:[%s204 + $0x54] sm:$0xf] %vm2415, %v2404
      %2438 = vst.msk [vmem:[%s204 + $0x58] sm:$0xf] %vm2415, %v2405
      %2439 = vst.msk [vmem:[%s204 + $0x5c] sm:$0xf] %vm2415, %v2406
      %2440 = vst.msk [vmem:[%s204 + $0x60] sm:$0xf] %vm2415, %v2407
      %2441 = vst.msk [vmem:[%s204 + $0x64] sm:$0xf] %vm2415, %v2408
      %2442 = vst.msk [vmem:[%s204 + $0x68] sm:$0xf] %vm2415, %v2409
      %2443 = vst.msk [vmem:[%s204 + $0x6c] sm:$0xf] %vm2415, %v2410
      %2444 = vst.msk [vmem:[%s204 + $0x70] sm:$0xf] %vm2415, %v2411
      %2445 = vst.msk [vmem:[%s204 + $0x74] sm:$0xf] %vm2415, %v2412
      %2446 = vst.msk [vmem:[%s204 + $0x78] sm:$0xf] %vm2415, %v2413
      %2447 = vst.msk [vmem:[%s204 + $0x7c] sm:$0xf] %vm2415, %v2414
      %v2448 = vsel %vm373, %v2351, 0.0
      %v2449 = vsel %vm373, %v2352, 0.0
      %v2450 = vadd.f32 %v2448, %v2449
      %v2451 = vsel %vm373, %v2353, 0.0
      %v2452 = vadd.f32 %v2450, %v2451
      %v2453 = vsel %vm373, %v2354, 0.0
      %v2454 = vadd.f32 %v2452, %v2453
      %v2455 = vsel %vm373, %v2355, 0.0
      %v2456 = vadd.f32 %v2454, %v2455
      %v2457 = vsel %vm373, %v2356, 0.0
      %v2458 = vadd.f32 %v2456, %v2457
      %v2459 = vsel %vm373, %v2357, 0.0
      %v2460 = vadd.f32 %v2458, %v2459
      %v2461 = vsel %vm373, %v2358, 0.0
      %v2462 = vadd.f32 %v2460, %v2461
      %v2463 = vsel %vm373, %v2359, 0.0
      %v2464 = vadd.f32 %v2462, %v2463
      %v2465 = vsel %vm373, %v2360, 0.0
      %v2466 = vadd.f32 %v2464, %v2465
      %v2467 = vsel %vm373, %v2361, 0.0
      %v2468 = vadd.f32 %v2466, %v2467
      %v2469 = vsel %vm373, %v2362, 0.0
      %v2470 = vadd.f32 %v2468, %v2469
      %v2471 = vsel %vm373, %v2363, 0.0
      %v2472 = vadd.f32 %v2470, %v2471
      %v2473 = vsel %vm373, %v2364, 0.0
      %v2474 = vadd.f32 %v2472, %v2473
      %v2475 = vsel %vm373, %v2365, 0.0
      %v2476 = vadd.f32 %v2474, %v2475
      %v2477 = vsel %vm373, %v2366, 0.0
      %v2478 = vadd.f32 %v2476, %v2477
      %v2479 = vsel %vm373, %v2367, 0.0
      %v2480 = vadd.f32 %v2478, %v2479
      %v2481 = vsel %vm373, %v2368, 0.0
      %v2482 = vadd.f32 %v2480, %v2481
      %v2483 = vsel %vm373, %v2369, 0.0
      %v2484 = vadd.f32 %v2482, %v2483
      %v2485 = vsel %vm373, %v2370, 0.0
      %v2486 = vadd.f32 %v2484, %v2485
      %v2487 = vsel %vm373, %v2371, 0.0
      %v2488 = vadd.f32 %v2486, %v2487
      %v2489 = vsel %vm373, %v2372, 0.0
      %v2490 = vadd.f32 %v2488, %v2489
      %v2491 = vsel %vm373, %v2373, 0.0
      %v2492 = vadd.f32 %v2490, %v2491
      %v2493 = vsel %vm373, %v2374, 0.0
      %v2494 = vadd.f32 %v2492, %v2493
      %v2495 = vsel %vm373, %v2375, 0.0
      %v2496 = vadd.f32 %v2494, %v2495
      %v2497 = vsel %vm373, %v2376, 0.0
      %v2498 = vadd.f32 %v2496, %v2497
      %v2499 = vsel %vm373, %v2377, 0.0
      %v2500 = vadd.f32 %v2498, %v2499
      %v2501 = vsel %vm373, %v2378, 0.0
      %v2502 = vadd.f32 %v2500, %v2501
      %v2503 = vsel %vm373, %v2379, 0.0
      %v2504 = vadd.f32 %v2502, %v2503
      %v2505 = vsel %vm373, %v2380, 0.0
      %v2506 = vadd.f32 %v2504, %v2505
      %v2507 = vsel %vm373, %v2381, 0.0
      %v2508 = vadd.f32 %v2506, %v2507
      %v2509 = vsel %vm373, %v2382, 0.0
      %v2510 = vadd.f32 %v2508, %v2509
      %v2511 = vrot.slane %v2510, 4
      %v2512 = vadd.f32 %v2510, %v2511
      %v2513 = vrot.slane %v2512, 2
      %v2514 = vadd.f32 %v2512, %v2513
      %v2515 = vrot.slane %v2514, 1
      %v2516 = vadd.f32 %v2514, %v2515
      %v2517 = vmul.f32 %v2351, %v2351
      %v2518 = vmul.f32 %v2352, %v2352
      %v2519 = vmul.f32 %v2353, %v2353
      %v2520 = vmul.f32 %v2354, %v2354
      %v2521 = vmul.f32 %v2355, %v2355
      %v2522 = vmul.f32 %v2356, %v2356
      %v2523 = vmul.f32 %v2357, %v2357
      %v2524 = vmul.f32 %v2358, %v2358
      %v2525 = vmul.f32 %v2359, %v2359
      %v2526 = vmul.f32 %v2360, %v2360
      %v2527 = vmul.f32 %v2361, %v2361
      %v2528 = vmul.f32 %v2362, %v2362
      %v2529 = vmul.f32 %v2363, %v2363
      %v2530 = vmul.f32 %v2364, %v2364
      %v2531 = vmul.f32 %v2365, %v2365
      %v2532 = vmul.f32 %v2366, %v2366
      %v2533 = vmul.f32 %v2367, %v2367
      %v2534 = vmul.f32 %v2368, %v2368
      %v2535 = vmul.f32 %v2369, %v2369
      %v2536 = vmul.f32 %v2370, %v2370
      %v2537 = vmul.f32 %v2371, %v2371
      %v2538 = vmul.f32 %v2372, %v2372
      %v2539 = vmul.f32 %v2373, %v2373
      %v2540 = vmul.f32 %v2374, %v2374
      %v2541 = vmul.f32 %v2375, %v2375
      %v2542 = vmul.f32 %v2376, %v2376
      %v2543 = vmul.f32 %v2377, %v2377
      %v2544 = vmul.f32 %v2378, %v2378
      %v2545 = vmul.f32 %v2379, %v2379
      %v2546 = vmul.f32 %v2380, %v2380
      %v2547 = vmul.f32 %v2381, %v2381
      %v2548 = vmul.f32 %v2382, %v2382
      %v2549 = vsel %vm373, %v2517, 0.0
      %v2550 = vsel %vm373, %v2518, 0.0
      %v2551 = vadd.f32 %v2549, %v2550
      %v2552 = vsel %vm373, %v2519, 0.0
      %v2553 = vadd.f32 %v2551, %v2552
      %v2554 = vsel %vm373, %v2520, 0.0
      %v2555 = vadd.f32 %v2553, %v2554
      %v2556 = vsel %vm373, %v2521, 0.0
      %v2557 = vadd.f32 %v2555, %v2556
      %v2558 = vsel %vm373, %v2522, 0.0
      %v2559 = vadd.f32 %v2557, %v2558
      %v2560 = vsel %vm373, %v2523, 0.0
      %v2561 = vadd.f32 %v2559, %v2560
      %v2562 = vsel %vm373, %v2524, 0.0
      %v2563 = vadd.f32 %v2561, %v2562
      %v2564 = vsel %vm373, %v2525, 0.0
      %v2565 = vadd.f32 %v2563, %v2564
      %v2566 = vsel %vm373, %v2526, 0.0
      %v2567 = vadd.f32 %v2565, %v2566
      %v2568 = vsel %vm373, %v2527, 0.0
      %v2569 = vadd.f32 %v2567, %v2568
      %v2570 = vsel %vm373, %v2528, 0.0
      %v2571 = vadd.f32 %v2569, %v2570
      %v2572 = vsel %vm373, %v2529, 0.0
      %v2573 = vadd.f32 %v2571, %v2572
      %v2574 = vsel %vm373, %v2530, 0.0
      %v2575 = vadd.f32 %v2573, %v2574
      %v2576 = vsel %vm373, %v2531, 0.0
      %v2577 = vadd.f32 %v2575, %v2576
      %v2578 = vsel %vm373, %v2532, 0.0
      %v2579 = vadd.f32 %v2577, %v2578
      %v2580 = vsel %vm373, %v2533, 0.0
      %v2581 = vadd.f32 %v2579, %v2580
      %v2582 = vsel %vm373, %v2534, 0.0
      %v2583 = vadd.f32 %v2581, %v2582
      %v2584 = vsel %vm373, %v2535, 0.0
      %v2585 = vadd.f32 %v2583, %v2584
      %v2586 = vsel %vm373, %v2536, 0.0
      %v2587 = vadd.f32 %v2585, %v2586
      %v2588 = vsel %vm373, %v2537, 0.0
      %v2589 = vadd.f32 %v2587, %v2588
      %v2590 = vsel %vm373, %v2538, 0.0
      %v2591 = vadd.f32 %v2589, %v2590
      %v2592 = vsel %vm373, %v2539, 0.0
      %v2593 = vadd.f32 %v2591, %v2592
      %v2594 = vsel %vm373, %v2540, 0.0
      %v2595 = vadd.f32 %v2593, %v2594
      %v2596 = vsel %vm373, %v2541, 0.0
      %v2597 = vadd.f32 %v2595, %v2596
      %v2598 = vsel %vm373, %v2542, 0.0
      %v2599 = vadd.f32 %v2597, %v2598
      %v2600 = vsel %vm373, %v2543, 0.0
      %v2601 = vadd.f32 %v2599, %v2600
      %v2602 = vsel %vm373, %v2544, 0.0
      %v2603 = vadd.f32 %v2601, %v2602
      %v2604 = vsel %vm373, %v2545, 0.0
      %v2605 = vadd.f32 %v2603, %v2604
      %v2606 = vsel %vm373, %v2546, 0.0
      %v2607 = vadd.f32 %v2605, %v2606
      %v2608 = vsel %vm373, %v2547, 0.0
      %v2609 = vadd.f32 %v2607, %v2608
      %v2610 = vsel %vm373, %v2548, 0.0
      %v2611 = vadd.f32 %v2609, %v2610
      %v2612 = vrot.slane %v2611, 4
      %v2613 = vadd.f32 %v2611, %v2612
      %v2614 = vrot.slane %v2613, 2
      %v2615 = vadd.f32 %v2613, %v2614
      %v2616 = vrot.slane %v2615, 1
      %v2617 = vadd.f32 %v2615, %v2616
      %vm2618 = vcmask 1040384
      %v2619 = vsel %vm2618, %v2516, %v2617
      %2620 = vst.msk [vmem:[%s208] sm:$0x3] %vm376, %v2619
      %p2621 = scmp.lt.s32.totalorder %s16, 1
      %s2622 = scalar_select %p2621, %s16, 1
      %s2623 = smul.addr %s2622, 32
      %s2624 = smul.addr %s2623, 4
      %s2625 = scalar_lea.vmem %s3, %s2624
      %p2626 = scmp.lt.s32.totalorder %s16, 1
      %s2627 = scalar_select %p2626, %s16, 1
      %s2628 = smul.addr %s2627, 2
      %s2629 = scalar_lea.vmem %s4, %s2628
      // Predicated region
      $region33: #{bottleneck_forward.5} parent=31 // pred_check
        %p2630 = pneg %p102
      $region34: #{bottleneck_forward.5} parent=31 // pred_check_branch
        %2632 = sbr.rel (%p2630) target = $region36
      $region35: #{bottleneck_forward.5} parent=31 // pred_region
        _
      $region36: #{bottleneck_forward.5} parent=31 // pred_fallthru
        _
      // Predicated region
      $region37: #{bottleneck_forward.5} parent=31 // pred_check
        %p2633 = pneg %p128
      $region38: #{bottleneck_forward.5} parent=31 // pred_check_branch
        %2635 = sbr.rel (%p2633) target = $region40
      $region39: #{bottleneck_forward.5} parent=31 // pred_region
        _
      $region40: #{bottleneck_forward.5} parent=31 // pred_fallthru
        _
    $region32: #{bottleneck_forward.5} parent=5 // pred_fallthru
      _
    %p2636 = scmp.le.s32.totalorder 2, %s11
    // Predicated region
    $region41: #{bottleneck_forward.5} parent=5 // pred_check
      %p2637 = pneg %p2636
    $region42: #{bottleneck_forward.5} parent=5 // pred_check_branch
      %2639 = sbr.rel (%p2637) target = $region44
    $region43: #{bottleneck_forward.5} parent=5 // pred_region
      %s2640 = ssub.s32 %s11, 2
      // Predicated region
      $region45: #{bottleneck_forward.5} parent=43 // pred_check
        %p2641 = pneg %p108
      $region46: #{bottleneck_forward.5} parent=43 // pred_check_branch
        %2643 = sbr.rel (%p2641) target = $region48
      $region47: #{bottleneck_forward.5} parent=43 // pred_region
        %p2644 = scmp.lt.s32.totalorder %s17, 1
        %s2645 = scalar_select %p2644, %s17, 1
        %s2646 = smul.addr %s2645, 32
        %s2647 = smul.addr %s2646, 4
        %s2648 = scalar_lea.vmem %s3, %s2647
      $region48: #{bottleneck_forward.5} parent=43 // pred_fallthru
        _
      // Predicated region
      $region49: #{bottleneck_forward.5} parent=43 // pred_check
        %p2649 = pneg %p134
      $region50: #{bottleneck_forward.5} parent=43 // pred_check_branch
        %2651 = sbr.rel (%p2649) target = $region52
      $region51: #{bottleneck_forward.5} parent=43 // pred_region
        %p2652 = scmp.lt.s32.totalorder %s17, 1
        %s2653 = scalar_select %p2652, %s17, 1
        %s2654 = smul.addr %s2653, 2
        %s2655 = scalar_lea.vmem %s4, %s2654
      $region52: #{bottleneck_forward.5} parent=43 // pred_fallthru
        _
    $region44: #{bottleneck_forward.5} parent=5 // pred_fallthru
      _
  $region6: #{bottleneck_forward.5} parent=0 // loop_footer
    %s15 = sadd.s32 1, %s11
  $region7: #{bottleneck_forward.5} parent=0 // loop_footer_branch
    %10 = sbr.rel target = $region3
  $region8: #{bottleneck_forward.5} parent=0 // loop_exit
    _

</llo_original>
